<compile_context>
chip_gen: v7x
topology: tpu7x:2x2x1
jax: 0.10.0
libtpu: 0.0.40
codegen_flags: <defaults>
</compile_context>

<pallas_src>
import math
from functools import partial

import jax
import jax.numpy as jnp
from jax.experimental import pallas as pl
from jax.experimental.pallas import tpu as pltpu

LN_EPS = 1e-5

PACKED_ORDER = (
    "sa_wqk", "sa_bqk", "sa_wv", "sa_bv", "sa_wo", "sa_bo",
    "ca_wq", "ca_bq", "ca_wkv", "ca_bkv", "ca_wo", "ca_bo",
    "l1_w", "l1_b", "l2_w", "l2_b",
    "n1_w", "n1_b", "n2_w", "n2_b", "n3_w", "n3_b",
)


def _layernorm(x, w, b):
    mu = jnp.mean(x, axis=-1, keepdims=True)
    var = jnp.mean((x - mu) ** 2, axis=-1, keepdims=True)
    return (x - mu) * jax.lax.rsqrt(var + LN_EPS) * w + b


# ------------------------------ the fused kernel ------------------------------

def make_decoder_layer_kernel(d_model: int, nhead: int):
    D = d_model
    H = nhead
    HD = D // H
    BF = jnp.bfloat16

    def _mm(a_f32, w_ref, b_ref):
        # bf16 MXU operands, f32 accumulation, f32 bias add.
        return jnp.dot(a_f32.astype(BF), w_ref[...],
                       preferred_element_type=jnp.float32) + b_ref[...]

    def kernel(tgt_ref, mem_ref, qpos_ref,
               sa_wqk_ref, sa_bqk_ref, sa_wv_ref, sa_bv_ref, sa_wo_ref, sa_bo_ref,
               ca_wq_ref, ca_bq_ref, ca_wkv_ref, ca_bkv_ref, ca_wo_ref, ca_bo_ref,
               l1_w_ref, l1_b_ref, l2_w_ref, l2_b_ref,
               n1_w_ref, n1_b_ref, n2_w_ref, n2_b_ref, n3_w_ref, n3_b_ref,
               out_ref, attn_scr):

        def _attn(q, k, v):
            # q: (Tq, D) f32, k/v: (Tk, D) f32.
            # Scores via dot_general contracting last dims (q @ k^T, no transposed
            # activation materialized). Each head writes its output slice straight
            # into VMEM scratch so only one (Tq, Tk) score tile is live at a time.
            qb, kb, vb = q.astype(BF), k.astype(BF), v.astype(BF)
            for h in range(H):                       # H small & static (unrolled)
                sl = slice(h * HD, (h + 1) * HD)
                s = jax.lax.dot_general(
                    qb[:, sl], kb[:, sl],
                    dimension_numbers=(((1,), (1,)), ((), ())),
                    preferred_element_type=jnp.float32)          # (Tq, Tk) f32
                s = s - jnp.max(s, axis=-1, keepdims=True)
                p = jnp.exp(s)
                p = p * pl.reciprocal(jnp.sum(p, axis=-1, keepdims=True),
                                      approx=True)               # EUP slot
                attn_scr[:, sl] = jnp.dot(p.astype(BF), vb[:, sl],
                                          preferred_element_type=jnp.float32)
            return attn_scr[...]

        tgt = tgt_ref[0].astype(jnp.float32)     # (T, D)
        mem = mem_ref[0].astype(jnp.float32)     # (S, D)
        qpos = qpos_ref[0].astype(jnp.float32)   # (T, D)

        # --- self-attention: q = k = tgt + query_pos, value = norm1(tgt) ---
        qk = _mm(tgt + qpos, sa_wqk_ref, sa_bqk_ref)                     # (T, 2D)
        v = _mm(_layernorm(tgt, n1_w_ref[...], n1_b_ref[...]),
                sa_wv_ref, sa_bv_ref)                                     # (T, D)
        o = _attn(qk[:, :D], qk[:, D:], v)
        tgt = tgt + _mm(o, sa_wo_ref, sa_bo_ref)       # dropout1 == identity

        # --- cross-attention: q = norm2(tgt) + query_pos, k = v = memory ---
        q = _mm(_layernorm(tgt, n2_w_ref[...], n2_b_ref[...]) + qpos,
                ca_wq_ref, ca_bq_ref)                                     # (T, D)
        kv = _mm(mem, ca_wkv_ref, ca_bkv_ref)                             # (S, 2D)
        o = _attn(q, kv[:, :D], kv[:, D:])
        tgt = tgt + _mm(o, ca_wo_ref, ca_bo_ref)       # dropout2 == identity

        # --- feed-forward ---
        t2 = _layernorm(tgt, n3_w_ref[...], n3_b_ref[...])
        hid = jnp.maximum(_mm(t2, l1_w_ref, l1_b_ref), 0.0)
        tgt = tgt + _mm(hid, l2_w_ref, l2_b_ref)       # dropout3 == identity

        out_ref[0] = tgt.astype(out_ref.dtype)

    return kernel


# --------------------------------- wrapper ------------------------------------

@partial(jax.jit, static_argnames=("nhead",))
def decoder_layer_forward(tgt, memory, query_pos, packed, *, nhead):
    """PyTorch-convention inputs: tgt/query_pos (T, B, D), memory (S, B, D)."""
    T, B, D = tgt.shape
    S = memory.shape[0]

    # Batch-major layout so the grid can stream one (T, D)/(S, D) tile per step.
    tgt_b = jnp.transpose(tgt, (1, 0, 2))          # (B, T, D)
    mem_b = jnp.transpose(memory, (1, 0, 2))       # (B, S, D)
    qpos_b = jnp.transpose(query_pos, (1, 0, 2))   # (B, T, D)

    weights = [packed[k] for k in PACKED_ORDER]

    def batch_spec(n_rows):
        return pl.BlockSpec((1, n_rows, D), lambda b: (b, 0, 0))

    def resident_spec(w):   # weights: constant block index -> fetched once, resident
        return pl.BlockSpec(w.shape, lambda b: (0, 0))

    in_specs = ([batch_spec(T), batch_spec(S), batch_spec(T)]
                + [resident_spec(w) for w in weights])

    out_b = pl.pallas_call(
        make_decoder_layer_kernel(D, nhead),
        out_shape=jax.ShapeDtypeStruct((B, T, D), tgt.dtype),
        grid=(B,),
        in_specs=in_specs,
        out_specs=pl.BlockSpec((1, T, D), lambda b: (b, 0, 0)),
        scratch_shapes=[pltpu.VMEM((T, D), jnp.float32)],   # per-head attn output slab
        compiler_params=pltpu.CompilerParams(
            dimension_semantics=("parallel",)),              # v7x: 2 TCs split batches
    )(tgt_b, mem_b, qpos_b, *weights)
    return jnp.transpose(out_b, (1, 0, 2))


# --------------------- parameters (PyTorch layout) + packing -------------------

def init_layer_params(key, d_model, dim_feedforward):
    D, FF = d_model, dim_feedforward
    ks = jax.random.split(key, 12)
    n = lambda k, shape, s=0.02: (s * jax.random.normal(k, shape)).astype(jnp.float32)
    return {
        "sa_in_w": n(ks[0], (3 * D, D)), "sa_in_b": n(ks[1], (3 * D,)),
        "sa_out_w": n(ks[2], (D, D)),    "sa_out_b": n(ks[3], (D,)),
        "ca_in_w": n(ks[4], (3 * D, D)), "ca_in_b": n(ks[5], (3 * D,)),
        "ca_out_w": n(ks[6], (D, D)),    "ca_out_b": n(ks[7], (D,)),
        "l1_w": n(ks[8], (FF, D)), "l1_b": n(ks[9], (FF,)),
        "l2_w": n(ks[10], (D, FF)), "l2_b": n(ks[11], (D,)),
        "n1_w": jnp.ones((D,), jnp.float32), "n1_b": jnp.zeros((D,), jnp.float32),
        "n2_w": jnp.ones((D,), jnp.float32), "n2_b": jnp.zeros((D,), jnp.float32),
        "n3_w": jnp.ones((D,), jnp.float32), "n3_b": jnp.zeros((D,), jnp.float32),
    }


def pack_layer_params(p, *, nhead):
    """Host-side, one-time: pre-transpose to x@W form, fuse QK/KV projections,
    fold softmax scale into q weights/bias, cast matmul weights to bf16."""
    D = p["n1_w"].shape[0]
    HD = D // nhead
    scale = 1.0 / math.sqrt(HD)
    row = lambda v: v.reshape(1, -1).astype(jnp.float32)   # f32 biases / LN params
    bf = lambda w: w.astype(jnp.bfloat16)                  # bf16 MXU weights

    def split3(w, b):
        return w[:D], w[D:2 * D], w[2 * D:], b[:D], b[D:2 * D], b[2 * D:]

    wq, wk, wv, bq, bk, bv = split3(p["sa_in_w"], p["sa_in_b"])
    cwq, cwk, cwv, cbq, cbk, cbv = split3(p["ca_in_w"], p["ca_in_b"])

    return {
        # self-attn: q and k share input (tgt + query_pos) -> fused (D, 2D) proj
        "sa_wqk": bf(jnp.concatenate([wq.T * scale, wk.T], axis=1)),
        "sa_bqk": row(jnp.concatenate([bq * scale, bk])),
        "sa_wv": bf(wv.T), "sa_bv": row(bv),
        "sa_wo": bf(p["sa_out_w"].T), "sa_bo": row(p["sa_out_b"]),
        # cross-attn: k and v share input (memory) -> fused (D, 2D) proj
        "ca_wq": bf(cwq.T * scale), "ca_bq": row(cbq * scale),
        "ca_wkv": bf(jnp.concatenate([cwk.T, cwv.T], axis=1)),
        "ca_bkv": row(jnp.concatenate([cbk, cbv])),
        "ca_wo": bf(p["ca_out_w"].T), "ca_bo": row(p["ca_out_b"]),
        "l1_w": bf(p["l1_w"].T), "l1_b": row(p["l1_b"]),
        "l2_w": bf(p["l2_w"].T), "l2_b": row(p["l2_b"]),
        "n1_w": row(p["n1_w"]), "n1_b": row(p["n1_b"]),
        "n2_w": row(p["n2_w"]), "n2_b": row(p["n2_b"]),
        "n3_w": row(p["n3_w"]), "n3_b": row(p["n3_b"]),
    }


# ------------------------- pure-JAX reference (spec) ---------------------------

def reference_decoder_layer(tgt, memory, query_pos, p, *, nhead):
    """Mirror of the PyTorch TransformerDecoderLayer.forward (eval mode), f32."""
    D = tgt.shape[-1]
    H = nhead
    HD = D // H

    def ln(x, w, b):
        mu = x.mean(-1, keepdims=True)
        var = ((x - mu) ** 2).mean(-1, keepdims=True)
        return (x - mu) / jnp.sqrt(var + LN_EPS) * w + b

    def mha(q, k, v, in_w, in_b, out_w, out_b):
        Lq, B, _ = q.shape
        Lk = k.shape[0]
        qp = q @ in_w[:D].T + in_b[:D]
        kp = k @ in_w[D:2 * D].T + in_b[D:2 * D]
        vp = v @ in_w[2 * D:].T + in_b[2 * D:]
        heads = lambda x, L: x.reshape(L, B, H, HD).transpose(1, 2, 0, 3)
        qh, kh, vh = heads(qp, Lq), heads(kp, Lk), heads(vp, Lk)
        s = jnp.einsum("bhqd,bhkd->bhqk", qh, kh) / math.sqrt(HD)
        a = jax.nn.softmax(s, axis=-1)
        o = jnp.einsum("bhqk,bhkd->bhqd", a, vh).transpose(2, 0, 1, 3).reshape(Lq, B, D)
        return o @ out_w.T + out_b

    x = tgt
    qk = x + query_pos
    t2 = ln(x, p["n1_w"], p["n1_b"])
    x = x + mha(qk, qk, t2, p["sa_in_w"], p["sa_in_b"], p["sa_out_w"], p["sa_out_b"])
    t2 = ln(x, p["n2_w"], p["n2_b"])
    x = x + mha(t2 + query_pos, memory, memory,
                p["ca_in_w"], p["ca_in_b"], p["ca_out_w"], p["ca_out_b"])
    t2 = ln(x, p["n3_w"], p["n3_b"])
    hid = jax.nn.relu(t2 @ p["l1_w"].T + p["l1_b"])
    return x + hid @ p["l2_w"].T + p["l2_b"]


# ----------------------------------- main --------------------------------------

if __name__ == "__main__":
    T, B, S = 8, 2, 16          # tgt_len, batch, src_len
    D, H, FF = 32, 4, 64        # d_model, nhead, dim_feedforward

    root = jax.random.PRNGKey(0)
    k_tgt, k_mem, k_pos, k_par = jax.random.split(root, 4)

    tgt = jax.random.normal(k_tgt, (T, B, D), dtype=jnp.float32)
    memory = jax.random.normal(k_mem, (S, B, D), dtype=jnp.float32)
    query_pos = jax.random.normal(k_pos, (T, B, D), dtype=jnp.float32)

    params = init_layer_params(k_par, D, FF)
    packed = pack_layer_params(params, nhead=H)

    out = decoder_layer_forward(tgt, memory, query_pos, packed, nhead=H)
    out = jax.block_until_ready(out)

    assert out.shape == (T, B, D)
    assert bool(jnp.all(jnp.isfinite(out)))

    ref = reference_decoder_layer(tgt, memory, query_pos, params, nhead=H)
    max_err = float(jnp.max(jnp.abs(out - ref)))
    # bf16 matmul operands (f32 accumulate) + approx reciprocal -> ~1e-3 level error.
    assert max_err < 5e-3, f"max abs error vs reference: {max_err}"

    print("KERNEL_OK")
</pallas_src>

<mosaic_0001>
module attributes {stable_mosaic.version = 11 : i64} {
  func.func @kernel(%arg0: i32, %arg1: memref<1x8x32xf32, #tpu.memory_space<vmem>>, %arg2: memref<1x16x32xf32, #tpu.memory_space<vmem>>, %arg3: memref<1x8x32xf32, #tpu.memory_space<vmem>>, %arg4: memref<32x64xbf16, #tpu.memory_space<vmem>>, %arg5: memref<1x64xf32, #tpu.memory_space<vmem>>, %arg6: memref<32x32xbf16, #tpu.memory_space<vmem>>, %arg7: memref<1x32xf32, #tpu.memory_space<vmem>>, %arg8: memref<32x32xbf16, #tpu.memory_space<vmem>>, %arg9: memref<1x32xf32, #tpu.memory_space<vmem>>, %arg10: memref<32x32xbf16, #tpu.memory_space<vmem>>, %arg11: memref<1x32xf32, #tpu.memory_space<vmem>>, %arg12: memref<32x64xbf16, #tpu.memory_space<vmem>>, %arg13: memref<1x64xf32, #tpu.memory_space<vmem>>, %arg14: memref<32x32xbf16, #tpu.memory_space<vmem>>, %arg15: memref<1x32xf32, #tpu.memory_space<vmem>>, %arg16: memref<32x64xbf16, #tpu.memory_space<vmem>>, %arg17: memref<1x64xf32, #tpu.memory_space<vmem>>, %arg18: memref<64x32xbf16, #tpu.memory_space<vmem>>, %arg19: memref<1x32xf32, #tpu.memory_space<vmem>>, %arg20: memref<1x32xf32, #tpu.memory_space<vmem>>, %arg21: memref<1x32xf32, #tpu.memory_space<vmem>>, %arg22: memref<1x32xf32, #tpu.memory_space<vmem>>, %arg23: memref<1x32xf32, #tpu.memory_space<vmem>>, %arg24: memref<1x32xf32, #tpu.memory_space<vmem>>, %arg25: memref<1x32xf32, #tpu.memory_space<vmem>>, %arg26: memref<1x8x32xf32, #tpu.memory_space<vmem>>, %arg27: memref<8x32xf32, #tpu.memory_space<vmem>>) attributes {dimension_semantics = [#tpu.dimension_semantics<parallel>], iteration_bounds = array<i64: 2>, scalar_prefetch = 0 : i64, scratch_operands = 1 : i64, tpu.core_type = #tpu.core_type<tc>, window_params = [{transform_indices = @transform_0, window_bounds = array<i64: 1, 8, 32>}, {transform_indices = @transform_1, window_bounds = array<i64: 1, 16, 32>}, {transform_indices = @transform_2, window_bounds = array<i64: 1, 8, 32>}, {pipeline_mode = #tpu.pipeline_mode<synchronous>, transform_indices = @transform_3, window_bounds = array<i64: 32, 64>}, {pipeline_mode = #tpu.pipeline_mode<synchronous>, transform_indices = @transform_4, window_bounds = array<i64: 1, 64>}, {pipeline_mode = #tpu.pipeline_mode<synchronous>, transform_indices = @transform_5, window_bounds = array<i64: 32, 32>}, {pipeline_mode = #tpu.pipeline_mode<synchronous>, transform_indices = @transform_6, window_bounds = array<i64: 1, 32>}, {pipeline_mode = #tpu.pipeline_mode<synchronous>, transform_indices = @transform_7, window_bounds = array<i64: 32, 32>}, {pipeline_mode = #tpu.pipeline_mode<synchronous>, transform_indices = @transform_8, window_bounds = array<i64: 1, 32>}, {pipeline_mode = #tpu.pipeline_mode<synchronous>, transform_indices = @transform_9, window_bounds = array<i64: 32, 32>}, {pipeline_mode = #tpu.pipeline_mode<synchronous>, transform_indices = @transform_10, window_bounds = array<i64: 1, 32>}, {pipeline_mode = #tpu.pipeline_mode<synchronous>, transform_indices = @transform_11, window_bounds = array<i64: 32, 64>}, {pipeline_mode = #tpu.pipeline_mode<synchronous>, transform_indices = @transform_12, window_bounds = array<i64: 1, 64>}, {pipeline_mode = #tpu.pipeline_mode<synchronous>, transform_indices = @transform_13, window_bounds = array<i64: 32, 32>}, {pipeline_mode = #tpu.pipeline_mode<synchronous>, transform_indices = @transform_14, window_bounds = array<i64: 1, 32>}, {pipeline_mode = #tpu.pipeline_mode<synchronous>, transform_indices = @transform_15, window_bounds = array<i64: 32, 64>}, {pipeline_mode = #tpu.pipeline_mode<synchronous>, transform_indices = @transform_16, window_bounds = array<i64: 1, 64>}, {pipeline_mode = #tpu.pipeline_mode<synchronous>, transform_indices = @transform_17, window_bounds = array<i64: 64, 32>}, {pipeline_mode = #tpu.pipeline_mode<synchronous>, transform_indices = @transform_18, window_bounds = array<i64: 1, 32>}, {pipeline_mode = #tpu.pipeline_mode<synchronous>, transform_indices = @transform_19, window_bounds = array<i64: 1, 32>}, {pipeline_mode = #tpu.pipeline_mode<synchronous>, transform_indices = @transform_20, window_bounds = array<i64: 1, 32>}, {pipeline_mode = #tpu.pipeline_mode<synchronous>, transform_indices = @transform_21, window_bounds = array<i64: 1, 32>}, {pipeline_mode = #tpu.pipeline_mode<synchronous>, transform_indices = @transform_22, window_bounds = array<i64: 1, 32>}, {pipeline_mode = #tpu.pipeline_mode<synchronous>, transform_indices = @transform_23, window_bounds = array<i64: 1, 32>}, {pipeline_mode = #tpu.pipeline_mode<synchronous>, transform_indices = @transform_24, window_bounds = array<i64: 1, 32>}, {transform_indices = @transform_25, window_bounds = array<i64: 1, 8, 32>}]} {
    %c0 = arith.constant 0 : index
    %c0_0 = arith.constant 0 : index
    %c0_1 = arith.constant 0 : index
    %0 = vector.load %arg1[%c0, %c0_0, %c0_1] : memref<1x8x32xf32, #tpu.memory_space<vmem>>, vector<1x8x32xf32>
    %1 = vector.shape_cast %0 : vector<1x8x32xf32> to vector<8x32xf32>
    %c0_2 = arith.constant 0 : index
    %c0_3 = arith.constant 0 : index
    %c0_4 = arith.constant 0 : index
    %2 = vector.load %arg2[%c0_2, %c0_3, %c0_4] : memref<1x16x32xf32, #tpu.memory_space<vmem>>, vector<1x16x32xf32>
    %3 = vector.shape_cast %2 : vector<1x16x32xf32> to vector<16x32xf32>
    %c0_5 = arith.constant 0 : index
    %c0_6 = arith.constant 0 : index
    %c0_7 = arith.constant 0 : index
    %4 = vector.load %arg3[%c0_5, %c0_6, %c0_7] : memref<1x8x32xf32, #tpu.memory_space<vmem>>, vector<1x8x32xf32>
    %5 = vector.shape_cast %4 : vector<1x8x32xf32> to vector<8x32xf32>
    %6 = arith.addf %1, %5 : vector<8x32xf32>
    %7 = arith.truncf %6 : vector<8x32xf32> to vector<8x32xbf16>
    %c0_8 = arith.constant 0 : index
    %c0_9 = arith.constant 0 : index
    %8 = vector.load %arg4[%c0_8, %c0_9] : memref<32x64xbf16, #tpu.memory_space<vmem>>, vector<32x64xbf16>
    %cst = arith.constant dense<0.000000e+00> : vector<8x64xf32>
    %9 = tpu.matmul %7, %8, %cst {dimension_numbers = #tpu.dot_dimension_numbers<[1], [0], [0], [1], [0, 0, 1, 1], [], []>} : vector<8x32xbf16>, vector<32x64xbf16>, vector<8x64xf32> -> vector<8x64xf32>
    %c0_10 = arith.constant 0 : index
    %c0_11 = arith.constant 0 : index
    %10 = vector.load %arg5[%c0_10, %c0_11] : memref<1x64xf32, #tpu.memory_space<vmem>>, vector<1x64xf32>
    %11 = vector.broadcast %10 : vector<1x64xf32> to vector<8x64xf32>
    %12 = arith.addf %9, %11 : vector<8x64xf32>
    %c0_12 = arith.constant 0 : index
    %c0_13 = arith.constant 0 : index
    %13 = vector.load %arg20[%c0_12, %c0_13] : memref<1x32xf32, #tpu.memory_space<vmem>>, vector<1x32xf32>
    %c0_14 = arith.constant 0 : index
    %c0_15 = arith.constant 0 : index
    %14 = vector.load %arg21[%c0_14, %c0_15] : memref<1x32xf32, #tpu.memory_space<vmem>>, vector<1x32xf32>
    %cst_16 = arith.constant dense<0.000000e+00> : vector<8xf32>
    %15 = vector.multi_reduction <add>, %1, %cst_16 [1] : vector<8x32xf32> to vector<8xf32>
    %16 = vector.shape_cast %15 : vector<8xf32> to vector<8x1xf32>
    %cst_17 = arith.constant 3.200000e+01 : f32
    %17 = vector.broadcast %cst_17 : f32 to vector<8x1xf32>
    %18 = arith.divf %16, %17 : vector<8x1xf32>
    %19 = vector.broadcast %18 : vector<8x1xf32> to vector<8x32xf32>
    %20 = arith.subf %1, %19 : vector<8x32xf32>
    %21 = arith.mulf %20, %20 : vector<8x32xf32>
    %cst_18 = arith.constant dense<0.000000e+00> : vector<8xf32>
    %22 = vector.multi_reduction <add>, %21, %cst_18 [1] : vector<8x32xf32> to vector<8xf32>
    %23 = vector.shape_cast %22 : vector<8xf32> to vector<8x1xf32>
    %cst_19 = arith.constant 3.200000e+01 : f32
    %24 = vector.broadcast %cst_19 : f32 to vector<8x1xf32>
    %25 = arith.divf %23, %24 : vector<8x1xf32>
    %26 = vector.broadcast %18 : vector<8x1xf32> to vector<8x32xf32>
    %27 = arith.subf %1, %26 : vector<8x32xf32>
    %cst_20 = arith.constant 9.99999974E-6 : f32
    %28 = vector.broadcast %cst_20 : f32 to vector<8x1xf32>
    %29 = arith.addf %25, %28 : vector<8x1xf32>
    %30 = math.rsqrt %29 : vector<8x1xf32>
    %31 = vector.broadcast %30 : vector<8x1xf32> to vector<8x32xf32>
    %32 = arith.mulf %27, %31 : vector<8x32xf32>
    %33 = vector.broadcast %13 : vector<1x32xf32> to vector<8x32xf32>
    %34 = arith.mulf %32, %33 : vector<8x32xf32>
    %35 = vector.broadcast %14 : vector<1x32xf32> to vector<8x32xf32>
    %36 = arith.addf %34, %35 : vector<8x32xf32>
    %37 = arith.truncf %36 : vector<8x32xf32> to vector<8x32xbf16>
    %c0_21 = arith.constant 0 : index
    %c0_22 = arith.constant 0 : index
    %38 = vector.load %arg6[%c0_21, %c0_22] : memref<32x32xbf16, #tpu.memory_space<vmem>>, vector<32x32xbf16>
    %cst_23 = arith.constant dense<0.000000e+00> : vector<8x32xf32>
    %39 = tpu.matmul %37, %38, %cst_23 {dimension_numbers = #tpu.dot_dimension_numbers<[1], [0], [0], [1], [0, 0, 1, 1], [], []>} : vector<8x32xbf16>, vector<32x32xbf16>, vector<8x32xf32> -> vector<8x32xf32>
    %c0_24 = arith.constant 0 : index
    %c0_25 = arith.constant 0 : index
    %40 = vector.load %arg7[%c0_24, %c0_25] : memref<1x32xf32, #tpu.memory_space<vmem>>, vector<1x32xf32>
    %41 = vector.broadcast %40 : vector<1x32xf32> to vector<8x32xf32>
    %42 = arith.addf %39, %41 : vector<8x32xf32>
    %43 = vector.extract_strided_slice %12 {offsets = [0, 0], sizes = [8, 32], strides = [1, 1]} : vector<8x64xf32> to vector<8x32xf32>
    %44 = vector.extract_strided_slice %12 {offsets = [0, 32], sizes = [8, 32], strides = [1, 1]} : vector<8x64xf32> to vector<8x32xf32>
    %45 = arith.truncf %43 : vector<8x32xf32> to vector<8x32xbf16>
    %46 = arith.truncf %44 : vector<8x32xf32> to vector<8x32xbf16>
    %47 = arith.truncf %42 : vector<8x32xf32> to vector<8x32xbf16>
    %48 = vector.extract_strided_slice %45 {offsets = [0, 0], sizes = [8, 8], strides = [1, 1]} : vector<8x32xbf16> to vector<8x8xbf16>
    %49 = vector.extract_strided_slice %46 {offsets = [0, 0], sizes = [8, 8], strides = [1, 1]} : vector<8x32xbf16> to vector<8x8xbf16>
    %cst_26 = arith.constant dense<0.000000e+00> : vector<8x8xf32>
    %50 = tpu.matmul %48, %49, %cst_26 {dimension_numbers = #tpu.dot_dimension_numbers<[1], [1], [0], [0], [0, 0, 1, 0], [], []>} : vector<8x8xbf16>, vector<8x8xbf16>, vector<8x8xf32> -> vector<8x8xf32>
    %cst_27 = arith.constant dense<0xFF800000> : vector<8xf32>
    %51 = vector.multi_reduction <maximumf>, %50, %cst_27 [1] : vector<8x8xf32> to vector<8xf32>
    %52 = vector.shape_cast %51 : vector<8xf32> to vector<8x1xf32>
    %53 = vector.broadcast %52 : vector<8x1xf32> to vector<8x8xf32>
    %54 = arith.subf %50, %53 : vector<8x8xf32>
    %55 = math.exp %54 : vector<8x8xf32>
    %cst_28 = arith.constant dense<0.000000e+00> : vector<8xf32>
    %56 = vector.multi_reduction <add>, %55, %cst_28 [1] : vector<8x8xf32> to vector<8xf32>
    %57 = vector.shape_cast %56 : vector<8xf32> to vector<8x1xf32>
    %58 = tpu.reciprocal %57 {approx = true} : vector<8x1xf32> -> vector<8x1xf32>
    %59 = vector.broadcast %58 : vector<8x1xf32> to vector<8x8xf32>
    %60 = arith.mulf %55, %59 : vector<8x8xf32>
    %61 = arith.truncf %60 : vector<8x8xf32> to vector<8x8xbf16>
    %62 = vector.extract_strided_slice %47 {offsets = [0, 0], sizes = [8, 8], strides = [1, 1]} : vector<8x32xbf16> to vector<8x8xbf16>
    %cst_29 = arith.constant dense<0.000000e+00> : vector<8x8xf32>
    %63 = tpu.matmul %61, %62, %cst_29 {dimension_numbers = #tpu.dot_dimension_numbers<[1], [0], [0], [1], [0, 0, 1, 1], [], []>} : vector<8x8xbf16>, vector<8x8xbf16>, vector<8x8xf32> -> vector<8x8xf32>
    %c0_30 = arith.constant 0 : index
    %c0_31 = arith.constant 0 : index
    %64 = vector.load %arg27[%c0_30, %c0_31] : memref<8x32xf32, #tpu.memory_space<vmem>>, vector<8x8xf32>
    tpu.vector_store %arg27[%c0_30, %c0_31], %63 {strides = array<i32>} : memref<8x32xf32, #tpu.memory_space<vmem>>, vector<8x8xf32>,
    %65 = vector.extract_strided_slice %45 {offsets = [0, 8], sizes = [8, 8], strides = [1, 1]} : vector<8x32xbf16> to vector<8x8xbf16>
    %66 = vector.extract_strided_slice %46 {offsets = [0, 8], sizes = [8, 8], strides = [1, 1]} : vector<8x32xbf16> to vector<8x8xbf16>
    %cst_32 = arith.constant dense<0.000000e+00> : vector<8x8xf32>
    %67 = tpu.matmul %65, %66, %cst_32 {dimension_numbers = #tpu.dot_dimension_numbers<[1], [1], [0], [0], [0, 0, 1, 0], [], []>} : vector<8x8xbf16>, vector<8x8xbf16>, vector<8x8xf32> -> vector<8x8xf32>
    %cst_33 = arith.constant dense<0xFF800000> : vector<8xf32>
    %68 = vector.multi_reduction <maximumf>, %67, %cst_33 [1] : vector<8x8xf32> to vector<8xf32>
    %69 = vector.shape_cast %68 : vector<8xf32> to vector<8x1xf32>
    %70 = vector.broadcast %69 : vector<8x1xf32> to vector<8x8xf32>
    %71 = arith.subf %67, %70 : vector<8x8xf32>
    %72 = math.exp %71 : vector<8x8xf32>
    %cst_34 = arith.constant dense<0.000000e+00> : vector<8xf32>
    %73 = vector.multi_reduction <add>, %72, %cst_34 [1] : vector<8x8xf32> to vector<8xf32>
    %74 = vector.shape_cast %73 : vector<8xf32> to vector<8x1xf32>
    %75 = tpu.reciprocal %74 {approx = true} : vector<8x1xf32> -> vector<8x1xf32>
    %76 = vector.broadcast %75 : vector<8x1xf32> to vector<8x8xf32>
    %77 = arith.mulf %72, %76 : vector<8x8xf32>
    %78 = arith.truncf %77 : vector<8x8xf32> to vector<8x8xbf16>
    %79 = vector.extract_strided_slice %47 {offsets = [0, 8], sizes = [8, 8], strides = [1, 1]} : vector<8x32xbf16> to vector<8x8xbf16>
    %cst_35 = arith.constant dense<0.000000e+00> : vector<8x8xf32>
    %80 = tpu.matmul %78, %79, %cst_35 {dimension_numbers = #tpu.dot_dimension_numbers<[1], [0], [0], [1], [0, 0, 1, 1], [], []>} : vector<8x8xbf16>, vector<8x8xbf16>, vector<8x8xf32> -> vector<8x8xf32>
    %c0_36 = arith.constant 0 : index
    %c8 = arith.constant 8 : index
    %81 = vector.load %arg27[%c0_36, %c8] : memref<8x32xf32, #tpu.memory_space<vmem>>, vector<8x8xf32>
    tpu.vector_store %arg27[%c0_36, %c8], %80 {strides = array<i32>} : memref<8x32xf32, #tpu.memory_space<vmem>>, vector<8x8xf32>,
    %82 = vector.extract_strided_slice %45 {offsets = [0, 16], sizes = [8, 8], strides = [1, 1]} : vector<8x32xbf16> to vector<8x8xbf16>
    %83 = vector.extract_strided_slice %46 {offsets = [0, 16], sizes = [8, 8], strides = [1, 1]} : vector<8x32xbf16> to vector<8x8xbf16>
    %cst_37 = arith.constant dense<0.000000e+00> : vector<8x8xf32>
    %84 = tpu.matmul %82, %83, %cst_37 {dimension_numbers = #tpu.dot_dimension_numbers<[1], [1], [0], [0], [0, 0, 1, 0], [], []>} : vector<8x8xbf16>, vector<8x8xbf16>, vector<8x8xf32> -> vector<8x8xf32>
    %cst_38 = arith.constant dense<0xFF800000> : vector<8xf32>
    %85 = vector.multi_reduction <maximumf>, %84, %cst_38 [1] : vector<8x8xf32> to vector<8xf32>
    %86 = vector.shape_cast %85 : vector<8xf32> to vector<8x1xf32>
    %87 = vector.broadcast %86 : vector<8x1xf32> to vector<8x8xf32>
    %88 = arith.subf %84, %87 : vector<8x8xf32>
    %89 = math.exp %88 : vector<8x8xf32>
    %cst_39 = arith.constant dense<0.000000e+00> : vector<8xf32>
    %90 = vector.multi_reduction <add>, %89, %cst_39 [1] : vector<8x8xf32> to vector<8xf32>
    %91 = vector.shape_cast %90 : vector<8xf32> to vector<8x1xf32>
    %92 = tpu.reciprocal %91 {approx = true} : vector<8x1xf32> -> vector<8x1xf32>
    %93 = vector.broadcast %92 : vector<8x1xf32> to vector<8x8xf32>
    %94 = arith.mulf %89, %93 : vector<8x8xf32>
    %95 = arith.truncf %94 : vector<8x8xf32> to vector<8x8xbf16>
    %96 = vector.extract_strided_slice %47 {offsets = [0, 16], sizes = [8, 8], strides = [1, 1]} : vector<8x32xbf16> to vector<8x8xbf16>
    %cst_40 = arith.constant dense<0.000000e+00> : vector<8x8xf32>
    %97 = tpu.matmul %95, %96, %cst_40 {dimension_numbers = #tpu.dot_dimension_numbers<[1], [0], [0], [1], [0, 0, 1, 1], [], []>} : vector<8x8xbf16>, vector<8x8xbf16>, vector<8x8xf32> -> vector<8x8xf32>
    %c0_41 = arith.constant 0 : index
    %c16 = arith.constant 16 : index
    %98 = vector.load %arg27[%c0_41, %c16] : memref<8x32xf32, #tpu.memory_space<vmem>>, vector<8x8xf32>
    tpu.vector_store %arg27[%c0_41, %c16], %97 {strides = array<i32>} : memref<8x32xf32, #tpu.memory_space<vmem>>, vector<8x8xf32>,
    %99 = vector.extract_strided_slice %45 {offsets = [0, 24], sizes = [8, 8], strides = [1, 1]} : vector<8x32xbf16> to vector<8x8xbf16>
    %100 = vector.extract_strided_slice %46 {offsets = [0, 24], sizes = [8, 8], strides = [1, 1]} : vector<8x32xbf16> to vector<8x8xbf16>
    %cst_42 = arith.constant dense<0.000000e+00> : vector<8x8xf32>
    %101 = tpu.matmul %99, %100, %cst_42 {dimension_numbers = #tpu.dot_dimension_numbers<[1], [1], [0], [0], [0, 0, 1, 0], [], []>} : vector<8x8xbf16>, vector<8x8xbf16>, vector<8x8xf32> -> vector<8x8xf32>
    %cst_43 = arith.constant dense<0xFF800000> : vector<8xf32>
    %102 = vector.multi_reduction <maximumf>, %101, %cst_43 [1] : vector<8x8xf32> to vector<8xf32>
    %103 = vector.shape_cast %102 : vector<8xf32> to vector<8x1xf32>
    %104 = vector.broadcast %103 : vector<8x1xf32> to vector<8x8xf32>
    %105 = arith.subf %101, %104 : vector<8x8xf32>
    %106 = math.exp %105 : vector<8x8xf32>
    %cst_44 = arith.constant dense<0.000000e+00> : vector<8xf32>
    %107 = vector.multi_reduction <add>, %106, %cst_44 [1] : vector<8x8xf32> to vector<8xf32>
    %108 = vector.shape_cast %107 : vector<8xf32> to vector<8x1xf32>
    %109 = tpu.reciprocal %108 {approx = true} : vector<8x1xf32> -> vector<8x1xf32>
    %110 = vector.broadcast %109 : vector<8x1xf32> to vector<8x8xf32>
    %111 = arith.mulf %106, %110 : vector<8x8xf32>
    %112 = arith.truncf %111 : vector<8x8xf32> to vector<8x8xbf16>
    %113 = vector.extract_strided_slice %47 {offsets = [0, 24], sizes = [8, 8], strides = [1, 1]} : vector<8x32xbf16> to vector<8x8xbf16>
    %cst_45 = arith.constant dense<0.000000e+00> : vector<8x8xf32>
    %114 = tpu.matmul %112, %113, %cst_45 {dimension_numbers = #tpu.dot_dimension_numbers<[1], [0], [0], [1], [0, 0, 1, 1], [], []>} : vector<8x8xbf16>, vector<8x8xbf16>, vector<8x8xf32> -> vector<8x8xf32>
    %c0_46 = arith.constant 0 : index
    %c24 = arith.constant 24 : index
    %115 = vector.load %arg27[%c0_46, %c24] : memref<8x32xf32, #tpu.memory_space<vmem>>, vector<8x8xf32>
    tpu.vector_store %arg27[%c0_46, %c24], %114 {strides = array<i32>} : memref<8x32xf32, #tpu.memory_space<vmem>>, vector<8x8xf32>,
    %c0_47 = arith.constant 0 : index
    %c0_48 = arith.constant 0 : index
    %116 = vector.load %arg27[%c0_47, %c0_48] : memref<8x32xf32, #tpu.memory_space<vmem>>, vector<8x32xf32>
    %117 = arith.truncf %116 : vector<8x32xf32> to vector<8x32xbf16>
    %c0_49 = arith.constant 0 : index
    %c0_50 = arith.constant 0 : index
    %118 = vector.load %arg8[%c0_49, %c0_50] : memref<32x32xbf16, #tpu.memory_space<vmem>>, vector<32x32xbf16>
    %cst_51 = arith.constant dense<0.000000e+00> : vector<8x32xf32>
    %119 = tpu.matmul %117, %118, %cst_51 {dimension_numbers = #tpu.dot_dimension_numbers<[1], [0], [0], [1], [0, 0, 1, 1], [], []>} : vector<8x32xbf16>, vector<32x32xbf16>, vector<8x32xf32> -> vector<8x32xf32>
    %c0_52 = arith.constant 0 : index
    %c0_53 = arith.constant 0 : index
    %120 = vector.load %arg9[%c0_52, %c0_53] : memref<1x32xf32, #tpu.memory_space<vmem>>, vector<1x32xf32>
    %121 = vector.broadcast %120 : vector<1x32xf32> to vector<8x32xf32>
    %122 = arith.addf %119, %121 : vector<8x32xf32>
    %123 = arith.addf %1, %122 : vector<8x32xf32>
    %c0_54 = arith.constant 0 : index
    %c0_55 = arith.constant 0 : index
    %124 = vector.load %arg22[%c0_54, %c0_55] : memref<1x32xf32, #tpu.memory_space<vmem>>, vector<1x32xf32>
    %c0_56 = arith.constant 0 : index
    %c0_57 = arith.constant 0 : index
    %125 = vector.load %arg23[%c0_56, %c0_57] : memref<1x32xf32, #tpu.memory_space<vmem>>, vector<1x32xf32>
    %cst_58 = arith.constant dense<0.000000e+00> : vector<8xf32>
    %126 = vector.multi_reduction <add>, %123, %cst_58 [1] : vector<8x32xf32> to vector<8xf32>
    %127 = vector.shape_cast %126 : vector<8xf32> to vector<8x1xf32>
    %cst_59 = arith.constant 3.200000e+01 : f32
    %128 = vector.broadcast %cst_59 : f32 to vector<8x1xf32>
    %129 = arith.divf %127, %128 : vector<8x1xf32>
    %130 = vector.broadcast %129 : vector<8x1xf32> to vector<8x32xf32>
    %131 = arith.subf %123, %130 : vector<8x32xf32>
    %132 = arith.mulf %131, %131 : vector<8x32xf32>
    %cst_60 = arith.constant dense<0.000000e+00> : vector<8xf32>
    %133 = vector.multi_reduction <add>, %132, %cst_60 [1] : vector<8x32xf32> to vector<8xf32>
    %134 = vector.shape_cast %133 : vector<8xf32> to vector<8x1xf32>
    %cst_61 = arith.constant 3.200000e+01 : f32
    %135 = vector.broadcast %cst_61 : f32 to vector<8x1xf32>
    %136 = arith.divf %134, %135 : vector<8x1xf32>
    %137 = vector.broadcast %129 : vector<8x1xf32> to vector<8x32xf32>
    %138 = arith.subf %123, %137 : vector<8x32xf32>
    %cst_62 = arith.constant 9.99999974E-6 : f32
    %139 = vector.broadcast %cst_62 : f32 to vector<8x1xf32>
    %140 = arith.addf %136, %139 : vector<8x1xf32>
    %141 = math.rsqrt %140 : vector<8x1xf32>
    %142 = vector.broadcast %141 : vector<8x1xf32> to vector<8x32xf32>
    %143 = arith.mulf %138, %142 : vector<8x32xf32>
    %144 = vector.broadcast %124 : vector<1x32xf32> to vector<8x32xf32>
    %145 = arith.mulf %143, %144 : vector<8x32xf32>
    %146 = vector.broadcast %125 : vector<1x32xf32> to vector<8x32xf32>
    %147 = arith.addf %145, %146 : vector<8x32xf32>
    %148 = arith.addf %147, %5 : vector<8x32xf32>
    %149 = arith.truncf %148 : vector<8x32xf32> to vector<8x32xbf16>
    %c0_63 = arith.constant 0 : index
    %c0_64 = arith.constant 0 : index
    %150 = vector.load %arg10[%c0_63, %c0_64] : memref<32x32xbf16, #tpu.memory_space<vmem>>, vector<32x32xbf16>
    %cst_65 = arith.constant dense<0.000000e+00> : vector<8x32xf32>
    %151 = tpu.matmul %149, %150, %cst_65 {dimension_numbers = #tpu.dot_dimension_numbers<[1], [0], [0], [1], [0, 0, 1, 1], [], []>} : vector<8x32xbf16>, vector<32x32xbf16>, vector<8x32xf32> -> vector<8x32xf32>
    %c0_66 = arith.constant 0 : index
    %c0_67 = arith.constant 0 : index
    %152 = vector.load %arg11[%c0_66, %c0_67] : memref<1x32xf32, #tpu.memory_space<vmem>>, vector<1x32xf32>
    %153 = vector.broadcast %152 : vector<1x32xf32> to vector<8x32xf32>
    %154 = arith.addf %151, %153 : vector<8x32xf32>
    %155 = arith.truncf %3 : vector<16x32xf32> to vector<16x32xbf16>
    %c0_68 = arith.constant 0 : index
    %c0_69 = arith.constant 0 : index
    %156 = vector.load %arg12[%c0_68, %c0_69] : memref<32x64xbf16, #tpu.memory_space<vmem>>, vector<32x64xbf16>
    %cst_70 = arith.constant dense<0.000000e+00> : vector<16x64xf32>
    %157 = tpu.matmul %155, %156, %cst_70 {dimension_numbers = #tpu.dot_dimension_numbers<[1], [0], [0], [1], [0, 0, 1, 1], [], []>} : vector<16x32xbf16>, vector<32x64xbf16>, vector<16x64xf32> -> vector<16x64xf32>
    %c0_71 = arith.constant 0 : index
    %c0_72 = arith.constant 0 : index
    %158 = vector.load %arg13[%c0_71, %c0_72] : memref<1x64xf32, #tpu.memory_space<vmem>>, vector<1x64xf32>
    %159 = vector.broadcast %158 : vector<1x64xf32> to vector<16x64xf32>
    %160 = arith.addf %157, %159 : vector<16x64xf32>
    %161 = vector.extract_strided_slice %160 {offsets = [0, 0], sizes = [16, 32], strides = [1, 1]} : vector<16x64xf32> to vector<16x32xf32>
    %162 = vector.extract_strided_slice %160 {offsets = [0, 32], sizes = [16, 32], strides = [1, 1]} : vector<16x64xf32> to vector<16x32xf32>
    %163 = arith.truncf %154 : vector<8x32xf32> to vector<8x32xbf16>
    %164 = arith.truncf %161 : vector<16x32xf32> to vector<16x32xbf16>
    %165 = arith.truncf %162 : vector<16x32xf32> to vector<16x32xbf16>
    %166 = vector.extract_strided_slice %163 {offsets = [0, 0], sizes = [8, 8], strides = [1, 1]} : vector<8x32xbf16> to vector<8x8xbf16>
    %167 = vector.extract_strided_slice %164 {offsets = [0, 0], sizes = [16, 8], strides = [1, 1]} : vector<16x32xbf16> to vector<16x8xbf16>
    %cst_73 = arith.constant dense<0.000000e+00> : vector<8x16xf32>
    %168 = tpu.matmul %166, %167, %cst_73 {dimension_numbers = #tpu.dot_dimension_numbers<[1], [1], [0], [0], [0, 0, 1, 0], [], []>} : vector<8x8xbf16>, vector<16x8xbf16>, vector<8x16xf32> -> vector<8x16xf32>
    %cst_74 = arith.constant dense<0xFF800000> : vector<8xf32>
    %169 = vector.multi_reduction <maximumf>, %168, %cst_74 [1] : vector<8x16xf32> to vector<8xf32>
    %170 = vector.shape_cast %169 : vector<8xf32> to vector<8x1xf32>
    %171 = vector.broadcast %170 : vector<8x1xf32> to vector<8x16xf32>
    %172 = arith.subf %168, %171 : vector<8x16xf32>
    %173 = math.exp %172 : vector<8x16xf32>
    %cst_75 = arith.constant dense<0.000000e+00> : vector<8xf32>
    %174 = vector.multi_reduction <add>, %173, %cst_75 [1] : vector<8x16xf32> to vector<8xf32>
    %175 = vector.shape_cast %174 : vector<8xf32> to vector<8x1xf32>
    %176 = tpu.reciprocal %175 {approx = true} : vector<8x1xf32> -> vector<8x1xf32>
    %177 = vector.broadcast %176 : vector<8x1xf32> to vector<8x16xf32>
    %178 = arith.mulf %173, %177 : vector<8x16xf32>
    %179 = arith.truncf %178 : vector<8x16xf32> to vector<8x16xbf16>
    %180 = vector.extract_strided_slice %165 {offsets = [0, 0], sizes = [16, 8], strides = [1, 1]} : vector<16x32xbf16> to vector<16x8xbf16>
    %cst_76 = arith.constant dense<0.000000e+00> : vector<8x8xf32>
    %181 = tpu.matmul %179, %180, %cst_76 {dimension_numbers = #tpu.dot_dimension_numbers<[1], [0], [0], [1], [0, 0, 1, 1], [], []>} : vector<8x16xbf16>, vector<16x8xbf16>, vector<8x8xf32> -> vector<8x8xf32>
    %c0_77 = arith.constant 0 : index
    %c0_78 = arith.constant 0 : index
    %182 = vector.load %arg27[%c0_77, %c0_78] : memref<8x32xf32, #tpu.memory_space<vmem>>, vector<8x8xf32>
    tpu.vector_store %arg27[%c0_77, %c0_78], %181 {strides = array<i32>} : memref<8x32xf32, #tpu.memory_space<vmem>>, vector<8x8xf32>,
    %183 = vector.extract_strided_slice %163 {offsets = [0, 8], sizes = [8, 8], strides = [1, 1]} : vector<8x32xbf16> to vector<8x8xbf16>
    %184 = vector.extract_strided_slice %164 {offsets = [0, 8], sizes = [16, 8], strides = [1, 1]} : vector<16x32xbf16> to vector<16x8xbf16>
    %cst_79 = arith.constant dense<0.000000e+00> : vector<8x16xf32>
    %185 = tpu.matmul %183, %184, %cst_79 {dimension_numbers = #tpu.dot_dimension_numbers<[1], [1], [0], [0], [0, 0, 1, 0], [], []>} : vector<8x8xbf16>, vector<16x8xbf16>, vector<8x16xf32> -> vector<8x16xf32>
    %cst_80 = arith.constant dense<0xFF800000> : vector<8xf32>
    %186 = vector.multi_reduction <maximumf>, %185, %cst_80 [1] : vector<8x16xf32> to vector<8xf32>
    %187 = vector.shape_cast %186 : vector<8xf32> to vector<8x1xf32>
    %188 = vector.broadcast %187 : vector<8x1xf32> to vector<8x16xf32>
    %189 = arith.subf %185, %188 : vector<8x16xf32>
    %190 = math.exp %189 : vector<8x16xf32>
    %cst_81 = arith.constant dense<0.000000e+00> : vector<8xf32>
    %191 = vector.multi_reduction <add>, %190, %cst_81 [1] : vector<8x16xf32> to vector<8xf32>
    %192 = vector.shape_cast %191 : vector<8xf32> to vector<8x1xf32>
    %193 = tpu.reciprocal %192 {approx = true} : vector<8x1xf32> -> vector<8x1xf32>
    %194 = vector.broadcast %193 : vector<8x1xf32> to vector<8x16xf32>
    %195 = arith.mulf %190, %194 : vector<8x16xf32>
    %196 = arith.truncf %195 : vector<8x16xf32> to vector<8x16xbf16>
    %197 = vector.extract_strided_slice %165 {offsets = [0, 8], sizes = [16, 8], strides = [1, 1]} : vector<16x32xbf16> to vector<16x8xbf16>
    %cst_82 = arith.constant dense<0.000000e+00> : vector<8x8xf32>
    %198 = tpu.matmul %196, %197, %cst_82 {dimension_numbers = #tpu.dot_dimension_numbers<[1], [0], [0], [1], [0, 0, 1, 1], [], []>} : vector<8x16xbf16>, vector<16x8xbf16>, vector<8x8xf32> -> vector<8x8xf32>
    %c0_83 = arith.constant 0 : index
    %c8_84 = arith.constant 8 : index
    %199 = vector.load %arg27[%c0_83, %c8_84] : memref<8x32xf32, #tpu.memory_space<vmem>>, vector<8x8xf32>
    tpu.vector_store %arg27[%c0_83, %c8_84], %198 {strides = array<i32>} : memref<8x32xf32, #tpu.memory_space<vmem>>, vector<8x8xf32>,
    %200 = vector.extract_strided_slice %163 {offsets = [0, 16], sizes = [8, 8], strides = [1, 1]} : vector<8x32xbf16> to vector<8x8xbf16>
    %201 = vector.extract_strided_slice %164 {offsets = [0, 16], sizes = [16, 8], strides = [1, 1]} : vector<16x32xbf16> to vector<16x8xbf16>
    %cst_85 = arith.constant dense<0.000000e+00> : vector<8x16xf32>
    %202 = tpu.matmul %200, %201, %cst_85 {dimension_numbers = #tpu.dot_dimension_numbers<[1], [1], [0], [0], [0, 0, 1, 0], [], []>} : vector<8x8xbf16>, vector<16x8xbf16>, vector<8x16xf32> -> vector<8x16xf32>
    %cst_86 = arith.constant dense<0xFF800000> : vector<8xf32>
    %203 = vector.multi_reduction <maximumf>, %202, %cst_86 [1] : vector<8x16xf32> to vector<8xf32>
    %204 = vector.shape_cast %203 : vector<8xf32> to vector<8x1xf32>
    %205 = vector.broadcast %204 : vector<8x1xf32> to vector<8x16xf32>
    %206 = arith.subf %202, %205 : vector<8x16xf32>
    %207 = math.exp %206 : vector<8x16xf32>
    %cst_87 = arith.constant dense<0.000000e+00> : vector<8xf32>
    %208 = vector.multi_reduction <add>, %207, %cst_87 [1] : vector<8x16xf32> to vector<8xf32>
    %209 = vector.shape_cast %208 : vector<8xf32> to vector<8x1xf32>
    %210 = tpu.reciprocal %209 {approx = true} : vector<8x1xf32> -> vector<8x1xf32>
    %211 = vector.broadcast %210 : vector<8x1xf32> to vector<8x16xf32>
    %212 = arith.mulf %207, %211 : vector<8x16xf32>
    %213 = arith.truncf %212 : vector<8x16xf32> to vector<8x16xbf16>
    %214 = vector.extract_strided_slice %165 {offsets = [0, 16], sizes = [16, 8], strides = [1, 1]} : vector<16x32xbf16> to vector<16x8xbf16>
    %cst_88 = arith.constant dense<0.000000e+00> : vector<8x8xf32>
    %215 = tpu.matmul %213, %214, %cst_88 {dimension_numbers = #tpu.dot_dimension_numbers<[1], [0], [0], [1], [0, 0, 1, 1], [], []>} : vector<8x16xbf16>, vector<16x8xbf16>, vector<8x8xf32> -> vector<8x8xf32>
    %c0_89 = arith.constant 0 : index
    %c16_90 = arith.constant 16 : index
    %216 = vector.load %arg27[%c0_89, %c16_90] : memref<8x32xf32, #tpu.memory_space<vmem>>, vector<8x8xf32>
    tpu.vector_store %arg27[%c0_89, %c16_90], %215 {strides = array<i32>} : memref<8x32xf32, #tpu.memory_space<vmem>>, vector<8x8xf32>,
    %217 = vector.extract_strided_slice %163 {offsets = [0, 24], sizes = [8, 8], strides = [1, 1]} : vector<8x32xbf16> to vector<8x8xbf16>
    %218 = vector.extract_strided_slice %164 {offsets = [0, 24], sizes = [16, 8], strides = [1, 1]} : vector<16x32xbf16> to vector<16x8xbf16>
    %cst_91 = arith.constant dense<0.000000e+00> : vector<8x16xf32>
    %219 = tpu.matmul %217, %218, %cst_91 {dimension_numbers = #tpu.dot_dimension_numbers<[1], [1], [0], [0], [0, 0, 1, 0], [], []>} : vector<8x8xbf16>, vector<16x8xbf16>, vector<8x16xf32> -> vector<8x16xf32>
    %cst_92 = arith.constant dense<0xFF800000> : vector<8xf32>
    %220 = vector.multi_reduction <maximumf>, %219, %cst_92 [1] : vector<8x16xf32> to vector<8xf32>
    %221 = vector.shape_cast %220 : vector<8xf32> to vector<8x1xf32>
    %222 = vector.broadcast %221 : vector<8x1xf32> to vector<8x16xf32>
    %223 = arith.subf %219, %222 : vector<8x16xf32>
    %224 = math.exp %223 : vector<8x16xf32>
    %cst_93 = arith.constant dense<0.000000e+00> : vector<8xf32>
    %225 = vector.multi_reduction <add>, %224, %cst_93 [1] : vector<8x16xf32> to vector<8xf32>
    %226 = vector.shape_cast %225 : vector<8xf32> to vector<8x1xf32>
    %227 = tpu.reciprocal %226 {approx = true} : vector<8x1xf32> -> vector<8x1xf32>
    %228 = vector.broadcast %227 : vector<8x1xf32> to vector<8x16xf32>
    %229 = arith.mulf %224, %228 : vector<8x16xf32>
    %230 = arith.truncf %229 : vector<8x16xf32> to vector<8x16xbf16>
    %231 = vector.extract_strided_slice %165 {offsets = [0, 24], sizes = [16, 8], strides = [1, 1]} : vector<16x32xbf16> to vector<16x8xbf16>
    %cst_94 = arith.constant dense<0.000000e+00> : vector<8x8xf32>
    %232 = tpu.matmul %230, %231, %cst_94 {dimension_numbers = #tpu.dot_dimension_numbers<[1], [0], [0], [1], [0, 0, 1, 1], [], []>} : vector<8x16xbf16>, vector<16x8xbf16>, vector<8x8xf32> -> vector<8x8xf32>
    %c0_95 = arith.constant 0 : index
    %c24_96 = arith.constant 24 : index
    %233 = vector.load %arg27[%c0_95, %c24_96] : memref<8x32xf32, #tpu.memory_space<vmem>>, vector<8x8xf32>
    tpu.vector_store %arg27[%c0_95, %c24_96], %232 {strides = array<i32>} : memref<8x32xf32, #tpu.memory_space<vmem>>, vector<8x8xf32>,
    %c0_97 = arith.constant 0 : index
    %c0_98 = arith.constant 0 : index
    %234 = vector.load %arg27[%c0_97, %c0_98] : memref<8x32xf32, #tpu.memory_space<vmem>>, vector<8x32xf32>
    %235 = arith.truncf %234 : vector<8x32xf32> to vector<8x32xbf16>
    %c0_99 = arith.constant 0 : index
    %c0_100 = arith.constant 0 : index
    %236 = vector.load %arg14[%c0_99, %c0_100] : memref<32x32xbf16, #tpu.memory_space<vmem>>, vector<32x32xbf16>
    %cst_101 = arith.constant dense<0.000000e+00> : vector<8x32xf32>
    %237 = tpu.matmul %235, %236, %cst_101 {dimension_numbers = #tpu.dot_dimension_numbers<[1], [0], [0], [1], [0, 0, 1, 1], [], []>} : vector<8x32xbf16>, vector<32x32xbf16>, vector<8x32xf32> -> vector<8x32xf32>
    %c0_102 = arith.constant 0 : index
    %c0_103 = arith.constant 0 : index
    %238 = vector.load %arg15[%c0_102, %c0_103] : memref<1x32xf32, #tpu.memory_space<vmem>>, vector<1x32xf32>
    %239 = vector.broadcast %238 : vector<1x32xf32> to vector<8x32xf32>
    %240 = arith.addf %237, %239 : vector<8x32xf32>
    %241 = arith.addf %123, %240 : vector<8x32xf32>
    %c0_104 = arith.constant 0 : index
    %c0_105 = arith.constant 0 : index
    %242 = vector.load %arg24[%c0_104, %c0_105] : memref<1x32xf32, #tpu.memory_space<vmem>>, vector<1x32xf32>
    %c0_106 = arith.constant 0 : index
    %c0_107 = arith.constant 0 : index
    %243 = vector.load %arg25[%c0_106, %c0_107] : memref<1x32xf32, #tpu.memory_space<vmem>>, vector<1x32xf32>
    %cst_108 = arith.constant dense<0.000000e+00> : vector<8xf32>
    %244 = vector.multi_reduction <add>, %241, %cst_108 [1] : vector<8x32xf32> to vector<8xf32>
    %245 = vector.shape_cast %244 : vector<8xf32> to vector<8x1xf32>
    %cst_109 = arith.constant 3.200000e+01 : f32
    %246 = vector.broadcast %cst_109 : f32 to vector<8x1xf32>
    %247 = arith.divf %245, %246 : vector<8x1xf32>
    %248 = vector.broadcast %247 : vector<8x1xf32> to vector<8x32xf32>
    %249 = arith.subf %241, %248 : vector<8x32xf32>
    %250 = arith.mulf %249, %249 : vector<8x32xf32>
    %cst_110 = arith.constant dense<0.000000e+00> : vector<8xf32>
    %251 = vector.multi_reduction <add>, %250, %cst_110 [1] : vector<8x32xf32> to vector<8xf32>
    %252 = vector.shape_cast %251 : vector<8xf32> to vector<8x1xf32>
    %cst_111 = arith.constant 3.200000e+01 : f32
    %253 = vector.broadcast %cst_111 : f32 to vector<8x1xf32>
    %254 = arith.divf %252, %253 : vector<8x1xf32>
    %255 = vector.broadcast %247 : vector<8x1xf32> to vector<8x32xf32>
    %256 = arith.subf %241, %255 : vector<8x32xf32>
    %cst_112 = arith.constant 9.99999974E-6 : f32
    %257 = vector.broadcast %cst_112 : f32 to vector<8x1xf32>
    %258 = arith.addf %254, %257 : vector<8x1xf32>
    %259 = math.rsqrt %258 : vector<8x1xf32>
    %260 = vector.broadcast %259 : vector<8x1xf32> to vector<8x32xf32>
    %261 = arith.mulf %256, %260 : vector<8x32xf32>
    %262 = vector.broadcast %242 : vector<1x32xf32> to vector<8x32xf32>
    %263 = arith.mulf %261, %262 : vector<8x32xf32>
    %264 = vector.broadcast %243 : vector<1x32xf32> to vector<8x32xf32>
    %265 = arith.addf %263, %264 : vector<8x32xf32>
    %266 = arith.truncf %265 : vector<8x32xf32> to vector<8x32xbf16>
    %c0_113 = arith.constant 0 : index
    %c0_114 = arith.constant 0 : index
    %267 = vector.load %arg16[%c0_113, %c0_114] : memref<32x64xbf16, #tpu.memory_space<vmem>>, vector<32x64xbf16>
    %cst_115 = arith.constant dense<0.000000e+00> : vector<8x64xf32>
    %268 = tpu.matmul %266, %267, %cst_115 {dimension_numbers = #tpu.dot_dimension_numbers<[1], [0], [0], [1], [0, 0, 1, 1], [], []>} : vector<8x32xbf16>, vector<32x64xbf16>, vector<8x64xf32> -> vector<8x64xf32>
    %c0_116 = arith.constant 0 : index
    %c0_117 = arith.constant 0 : index
    %269 = vector.load %arg17[%c0_116, %c0_117] : memref<1x64xf32, #tpu.memory_space<vmem>>, vector<1x64xf32>
    %270 = vector.broadcast %269 : vector<1x64xf32> to vector<8x64xf32>
    %271 = arith.addf %268, %270 : vector<8x64xf32>
    %cst_118 = arith.constant 0.000000e+00 : f32
    %272 = vector.broadcast %cst_118 : f32 to vector<8x64xf32>
    %273 = arith.maximumf %271, %272 : vector<8x64xf32>
    %274 = arith.truncf %273 : vector<8x64xf32> to vector<8x64xbf16>
    %c0_119 = arith.constant 0 : index
    %c0_120 = arith.constant 0 : index
    %275 = vector.load %arg18[%c0_119, %c0_120] : memref<64x32xbf16, #tpu.memory_space<vmem>>, vector<64x32xbf16>
    %cst_121 = arith.constant dense<0.000000e+00> : vector<8x32xf32>
    %276 = tpu.matmul %274, %275, %cst_121 {dimension_numbers = #tpu.dot_dimension_numbers<[1], [0], [0], [1], [0, 0, 1, 1], [], []>} : vector<8x64xbf16>, vector<64x32xbf16>, vector<8x32xf32> -> vector<8x32xf32>
    %c0_122 = arith.constant 0 : index
    %c0_123 = arith.constant 0 : index
    %277 = vector.load %arg19[%c0_122, %c0_123] : memref<1x32xf32, #tpu.memory_space<vmem>>, vector<1x32xf32>
    %278 = vector.broadcast %277 : vector<1x32xf32> to vector<8x32xf32>
    %279 = arith.addf %276, %278 : vector<8x32xf32>
    %280 = arith.addf %241, %279 : vector<8x32xf32>
    %c0_124 = arith.constant 0 : index
    %c0_125 = arith.constant 0 : index
    %c0_126 = arith.constant 0 : index
    %281 = vector.load %arg26[%c0_124, %c0_125, %c0_126] : memref<1x8x32xf32, #tpu.memory_space<vmem>>, vector<1x8x32xf32>
    %282 = vector.shape_cast %281 : vector<1x8x32xf32> to vector<8x32xf32>
    %283 = vector.shape_cast %280 : vector<8x32xf32> to vector<1x8x32xf32>
    tpu.vector_store %arg26[%c0_124, %c0_125, %c0_126], %283 {strides = array<i32>} : memref<1x8x32xf32, #tpu.memory_space<vmem>>, vector<1x8x32xf32>,
    return
  }
  func.func @transform_0(%arg0: i32) -> (i32, i32, i32) {
    %c0_i32 = arith.constant 0 : i32
    %c0_i32_0 = arith.constant 0 : i32
    %c0_i32_1 = arith.constant 0 : i32
    return %arg0, %c0_i32, %c0_i32_0 : i32, i32, i32
  }
  func.func @transform_1(%arg0: i32) -> (i32, i32, i32) {
    %c0_i32 = arith.constant 0 : i32
    %c0_i32_0 = arith.constant 0 : i32
    %c0_i32_1 = arith.constant 0 : i32
    return %arg0, %c0_i32, %c0_i32_0 : i32, i32, i32
  }
  func.func @transform_2(%arg0: i32) -> (i32, i32, i32) {
    %c0_i32 = arith.constant 0 : i32
    %c0_i32_0 = arith.constant 0 : i32
    %c0_i32_1 = arith.constant 0 : i32
    return %arg0, %c0_i32, %c0_i32_0 : i32, i32, i32
  }
  func.func @transform_3(%arg0: i32) -> (i32, i32) {
    %c0_i32 = arith.constant 0 : i32
    %c0_i32_0 = arith.constant 0 : i32
    %c0_i32_1 = arith.constant 0 : i32
    return %c0_i32, %c0_i32_0 : i32, i32
  }
  func.func @transform_4(%arg0: i32) -> (i32, i32) {
    %c0_i32 = arith.constant 0 : i32
    %c0_i32_0 = arith.constant 0 : i32
    %c0_i32_1 = arith.constant 0 : i32
    return %c0_i32, %c0_i32_0 : i32, i32
  }
  func.func @transform_5(%arg0: i32) -> (i32, i32) {
    %c0_i32 = arith.constant 0 : i32
    %c0_i32_0 = arith.constant 0 : i32
    %c0_i32_1 = arith.constant 0 : i32
    return %c0_i32, %c0_i32_0 : i32, i32
  }
  func.func @transform_6(%arg0: i32) -> (i32, i32) {
    %c0_i32 = arith.constant 0 : i32
    %c0_i32_0 = arith.constant 0 : i32
    %c0_i32_1 = arith.constant 0 : i32
    return %c0_i32, %c0_i32_0 : i32, i32
  }
  func.func @transform_7(%arg0: i32) -> (i32, i32) {
    %c0_i32 = arith.constant 0 : i32
    %c0_i32_0 = arith.constant 0 : i32
    %c0_i32_1 = arith.constant 0 : i32
    return %c0_i32, %c0_i32_0 : i32, i32
  }
  func.func @transform_8(%arg0: i32) -> (i32, i32) {
    %c0_i32 = arith.constant 0 : i32
    %c0_i32_0 = arith.constant 0 : i32
    %c0_i32_1 = arith.constant 0 : i32
    return %c0_i32, %c0_i32_0 : i32, i32
  }
  func.func @transform_9(%arg0: i32) -> (i32, i32) {
    %c0_i32 = arith.constant 0 : i32
    %c0_i32_0 = arith.constant 0 : i32
    %c0_i32_1 = arith.constant 0 : i32
    return %c0_i32, %c0_i32_0 : i32, i32
  }
  func.func @transform_10(%arg0: i32) -> (i32, i32) {
    %c0_i32 = arith.constant 0 : i32
    %c0_i32_0 = arith.constant 0 : i32
    %c0_i32_1 = arith.constant 0 : i32
    return %c0_i32, %c0_i32_0 : i32, i32
  }
  func.func @transform_11(%arg0: i32) -> (i32, i32) {
    %c0_i32 = arith.constant 0 : i32
    %c0_i32_0 = arith.constant 0 : i32
    %c0_i32_1 = arith.constant 0 : i32
    return %c0_i32, %c0_i32_0 : i32, i32
  }
  func.func @transform_12(%arg0: i32) -> (i32, i32) {
    %c0_i32 = arith.constant 0 : i32
    %c0_i32_0 = arith.constant 0 : i32
    %c0_i32_1 = arith.constant 0 : i32
    return %c0_i32, %c0_i32_0 : i32, i32
  }
  func.func @transform_13(%arg0: i32) -> (i32, i32) {
    %c0_i32 = arith.constant 0 : i32
    %c0_i32_0 = arith.constant 0 : i32
    %c0_i32_1 = arith.constant 0 : i32
    return %c0_i32, %c0_i32_0 : i32, i32
  }
  func.func @transform_14(%arg0: i32) -> (i32, i32) {
    %c0_i32 = arith.constant 0 : i32
    %c0_i32_0 = arith.constant 0 : i32
    %c0_i32_1 = arith.constant 0 : i32
    return %c0_i32, %c0_i32_0 : i32, i32
  }
  func.func @transform_15(%arg0: i32) -> (i32, i32) {
    %c0_i32 = arith.constant 0 : i32
    %c0_i32_0 = arith.constant 0 : i32
    %c0_i32_1 = arith.constant 0 : i32
    return %c0_i32, %c0_i32_0 : i32, i32
  }
  func.func @transform_16(%arg0: i32) -> (i32, i32) {
    %c0_i32 = arith.constant 0 : i32
    %c0_i32_0 = arith.constant 0 : i32
    %c0_i32_1 = arith.constant 0 : i32
    return %c0_i32, %c0_i32_0 : i32, i32
  }
  func.func @transform_17(%arg0: i32) -> (i32, i32) {
    %c0_i32 = arith.constant 0 : i32
    %c0_i32_0 = arith.constant 0 : i32
    %c0_i32_1 = arith.constant 0 : i32
    return %c0_i32, %c0_i32_0 : i32, i32
  }
  func.func @transform_18(%arg0: i32) -> (i32, i32) {
    %c0_i32 = arith.constant 0 : i32
    %c0_i32_0 = arith.constant 0 : i32
    %c0_i32_1 = arith.constant 0 : i32
    return %c0_i32, %c0_i32_0 : i32, i32
  }
  func.func @transform_19(%arg0: i32) -> (i32, i32) {
    %c0_i32 = arith.constant 0 : i32
    %c0_i32_0 = arith.constant 0 : i32
    %c0_i32_1 = arith.constant 0 : i32
    return %c0_i32, %c0_i32_0 : i32, i32
  }
  func.func @transform_20(%arg0: i32) -> (i32, i32) {
    %c0_i32 = arith.constant 0 : i32
    %c0_i32_0 = arith.constant 0 : i32
    %c0_i32_1 = arith.constant 0 : i32
    return %c0_i32, %c0_i32_0 : i32, i32
  }
  func.func @transform_21(%arg0: i32) -> (i32, i32) {
    %c0_i32 = arith.constant 0 : i32
    %c0_i32_0 = arith.constant 0 : i32
    %c0_i32_1 = arith.constant 0 : i32
    return %c0_i32, %c0_i32_0 : i32, i32
  }
  func.func @transform_22(%arg0: i32) -> (i32, i32) {
    %c0_i32 = arith.constant 0 : i32
    %c0_i32_0 = arith.constant 0 : i32
    %c0_i32_1 = arith.constant 0 : i32
    return %c0_i32, %c0_i32_0 : i32, i32
  }
  func.func @transform_23(%arg0: i32) -> (i32, i32) {
    %c0_i32 = arith.constant 0 : i32
    %c0_i32_0 = arith.constant 0 : i32
    %c0_i32_1 = arith.constant 0 : i32
    return %c0_i32, %c0_i32_0 : i32, i32
  }
  func.func @transform_24(%arg0: i32) -> (i32, i32) {
    %c0_i32 = arith.constant 0 : i32
    %c0_i32_0 = arith.constant 0 : i32
    %c0_i32_1 = arith.constant 0 : i32
    return %c0_i32, %c0_i32_0 : i32, i32
  }
  func.func @transform_25(%arg0: i32) -> (i32, i32, i32) {
    %c0_i32 = arith.constant 0 : i32
    %c0_i32_0 = arith.constant 0 : i32
    %c0_i32_1 = arith.constant 0 : i32
    return %arg0, %c0_i32, %c0_i32_0 : i32, i32, i32
  }
}

</mosaic_0001>

<llo_original>
// kernel: decoder_layer_forward.1
$region0: #{decoder_layer_forward.1}
  #allocation0 [shape = 'u32[]', space=smem, size = 0x4, offset = 0x4, fixed_abs, tag = 'smem constant byte address 0x4 - core index']
  #allocation1 [shape = 'u32[144,128]{1,0:T(1,128)}', space=vmem, size = 0x12000, scoped, tag = 'internal scratch']
  #allocation2 [shape = 'f32[8,32]{1,0:T(8,128)}', space=vmem, size = 0x1000, scoped, tag = 'scratch operand']
  %s0 = inlined_call_operand.vmem [shape: f32[2,8,32], index: 0, kind: input, shape index: {}]
  %s1 = inlined_call_operand.vmem [shape: f32[2,16,32], index: 1, kind: input, shape index: {}]
  %s2 = inlined_call_operand.vmem [shape: f32[2,8,32], index: 2, kind: input, shape index: {}]
  %s3 = inlined_call_operand.vmem [shape: bf16[32,64], index: 3, kind: input, shape index: {}]
  %s4 = inlined_call_operand.vmem [shape: f32[1,64], index: 4, kind: input, shape index: {}]
  %s5 = inlined_call_operand.vmem [shape: bf16[32,32], index: 5, kind: input, shape index: {}]
  %s6 = inlined_call_operand.vmem [shape: f32[1,32], index: 6, kind: input, shape index: {}]
  %s7 = inlined_call_operand.vmem [shape: bf16[32,32], index: 7, kind: input, shape index: {}]
  %s8 = inlined_call_operand.vmem [shape: f32[1,32], index: 8, kind: input, shape index: {}]
  %s9 = inlined_call_operand.vmem [shape: bf16[32,32], index: 9, kind: input, shape index: {}]
  %s10 = inlined_call_operand.vmem [shape: f32[1,32], index: 10, kind: input, shape index: {}]
  %s11 = inlined_call_operand.vmem [shape: bf16[32,64], index: 11, kind: input, shape index: {}]
  %s12 = inlined_call_operand.vmem [shape: f32[1,64], index: 12, kind: input, shape index: {}]
  %s13 = inlined_call_operand.vmem [shape: bf16[32,32], index: 13, kind: input, shape index: {}]
  %s14 = inlined_call_operand.vmem [shape: f32[1,32], index: 14, kind: input, shape index: {}]
  %s15 = inlined_call_operand.vmem [shape: bf16[32,64], index: 15, kind: input, shape index: {}]
  %s16 = inlined_call_operand.vmem [shape: f32[1,64], index: 16, kind: input, shape index: {}]
  %s17 = inlined_call_operand.vmem [shape: bf16[64,32], index: 17, kind: input, shape index: {}]
  %s18 = inlined_call_operand.vmem [shape: f32[1,32], index: 18, kind: input, shape index: {}]
  %s19 = inlined_call_operand.vmem [shape: f32[1,32], index: 19, kind: input, shape index: {}]
  %s20 = inlined_call_operand.vmem [shape: f32[1,32], index: 20, kind: input, shape index: {}]
  %s21 = inlined_call_operand.vmem [shape: f32[1,32], index: 21, kind: input, shape index: {}]
  %s22 = inlined_call_operand.vmem [shape: f32[1,32], index: 22, kind: input, shape index: {}]
  %s23 = inlined_call_operand.vmem [shape: f32[1,32], index: 23, kind: input, shape index: {}]
  %s24 = inlined_call_operand.vmem [shape: f32[1,32], index: 24, kind: input, shape index: {}]
  %s25 = inlined_call_operand.vmem [shape: f32[2,8,32], index: 25, kind: output, shape index: {}]
  %s26 = sld [smem:[#allocation0]]
  $region133: #{decoder_layer_forward.1} parent=0
    _
  %s28 = ssub.s32 1, %s26
  %s29 = scalar_select 0, %s28, %s26
  loop: start=0, step=1, limit=4
  $region2: #{decoder_layer_forward.1} parent=0 // loop_pre_header
    _
  $region3: #{decoder_layer_forward.1} parent=0 // loop_header
    %s31 = sphi 0, %s35
    %p32 = scmp.ge.s32.totalorder %s31, 4
    %s41 = sphi 0, %s43
    %s44 = sphi 0, %s41
    %s45 = sphi 0, %s44
    %s61 = sphi 0, %s45
    %s67 = sphi 0, %s69
    %s70 = sphi 0, %s67
    %s71 = sphi 0, %s70
    %s87 = sphi 0, %s71
    %s93 = sphi 0, %s95
    %s96 = sphi 0, %s93
    %s97 = sphi 0, %s96
    %s113 = sphi 0, %s97
    %s117 = sphi 0, %s117
    %s119 = sphi 0, %s117
    %s120 = sphi 0, %s119
    %s134 = sphi 0, %s120
    %s138 = sphi 0, %s138
    %s140 = sphi 0, %s138
    %s141 = sphi 0, %s140
    %s155 = sphi 0, %s141
    %s159 = sphi 0, %s159
    %s161 = sphi 0, %s159
    %s162 = sphi 0, %s161
    %s176 = sphi 0, %s162
    %s180 = sphi 0, %s180
    %s182 = sphi 0, %s180
    %s183 = sphi 0, %s182
    %s197 = sphi 0, %s183
    %s201 = sphi 0, %s201
    %s203 = sphi 0, %s201
    %s204 = sphi 0, %s203
    %s218 = sphi 0, %s204
    %s222 = sphi 0, %s222
    %s224 = sphi 0, %s222
    %s225 = sphi 0, %s224
    %s239 = sphi 0, %s225
    %s243 = sphi 0, %s243
    %s245 = sphi 0, %s243
    %s246 = sphi 0, %s245
    %s260 = sphi 0, %s246
    %s264 = sphi 0, %s264
    %s266 = sphi 0, %s264
    %s267 = sphi 0, %s266
    %s281 = sphi 0, %s267
    %s285 = sphi 0, %s285
    %s287 = sphi 0, %s285
    %s288 = sphi 0, %s287
    %s302 = sphi 0, %s288
    %s306 = sphi 0, %s306
    %s308 = sphi 0, %s306
    %s309 = sphi 0, %s308
    %s323 = sphi 0, %s309
    %s327 = sphi 0, %s327
    %s329 = sphi 0, %s327
    %s330 = sphi 0, %s329
    %s344 = sphi 0, %s330
    %s348 = sphi 0, %s348
    %s350 = sphi 0, %s348
    %s351 = sphi 0, %s350
    %s365 = sphi 0, %s351
    %s369 = sphi 0, %s369
    %s371 = sphi 0, %s369
    %s372 = sphi 0, %s371
    %s386 = sphi 0, %s372
    %s390 = sphi 0, %s390
    %s392 = sphi 0, %s390
    %s393 = sphi 0, %s392
    %s407 = sphi 0, %s393
    %s411 = sphi 0, %s411
    %s413 = sphi 0, %s411
    %s414 = sphi 0, %s413
    %s428 = sphi 0, %s414
    %s432 = sphi 0, %s432
    %s434 = sphi 0, %s432
    %s435 = sphi 0, %s434
    %s449 = sphi 0, %s435
    %s453 = sphi 0, %s453
    %s455 = sphi 0, %s453
    %s456 = sphi 0, %s455
    %s470 = sphi 0, %s456
    %s474 = sphi 0, %s474
    %s476 = sphi 0, %s474
    %s477 = sphi 0, %s476
    %s491 = sphi 0, %s477
    %s495 = sphi 0, %s495
    %s497 = sphi 0, %s495
    %s498 = sphi 0, %s497
    %s512 = sphi 0, %s498
    %s516 = sphi 0, %s516
    %s518 = sphi 0, %s516
    %s519 = sphi 0, %s518
    %s533 = sphi 0, %s519
    %s537 = sphi 0, %s537
    %s539 = sphi 0, %s537
    %s540 = sphi 0, %s539
    %s554 = sphi 0, %s540
    %s558 = sphi 0, %s558
    %s560 = sphi 0, %s558
    %s561 = sphi 0, %s560
    %s575 = sphi 0, %s561
    %s581 = sphi 0, %s583
    %s584 = sphi 0, %s581
    %s585 = sphi 0, %s584
    %s601 = sphi 0, %s585
  $region4: #{decoder_layer_forward.1} parent=0 // loop_header_branch
    %34 = sbr.rel (%p32) target = $region8
  $region5: #{decoder_layer_forward.1} parent=0 // loop_body
    %s36 = ssub.s32 %s31, 1
    %s37 = ssub.s32 %s31, 2
    %s38 = sadd.s32 %s31, 1
    %s39 = ssub.s32 %s31, %s38
    %p40 = scmp.eq.s32.totalorder %s39, 0
    %s42 = sadd.s32 %s41, 1
    %s43 = scalar_select %p40, %s41, %s42
    %p46 = pneg %p40
    %p47 = scmp.eq.s32.totalorder %s31, 1
    %p48 = por %p46, %p47
    %p49 = scmp.ne.s32.totalorder %s41, %s44
    %p50 = scmp.eq.s32.totalorder %s31, 0
    %p51 = por %p49, %p50
    %p52 = scmp.ne.s32.totalorder %s41, %s44
    %p53 = scmp.eq.s32.totalorder %s36, 1
    %p54 = por %p52, %p53
    %p55 = scmp.ne.s32.totalorder %s44, %s45
    %p56 = scmp.eq.s32.totalorder %s36, 0
    %p57 = por %p55, %p56
    %p58 = scmp.ne.s32.totalorder %s44, %s45
    %p59 = scmp.eq.s32.totalorder %s37, 1
    %p60 = por %p58, %p59
    %p62 = scmp.ne.s32.totalorder %s45, %s61
    %p63 = scmp.eq.s32.totalorder %s37, 0
    %p64 = por %p62, %p63
    %s65 = ssub.s32 %s31, %s38
    %p66 = scmp.eq.s32.totalorder %s65, 0
    %s68 = sadd.s32 %s67, 1
    %s69 = scalar_select %p66, %s67, %s68
    %p72 = pneg %p66
    %p73 = scmp.eq.s32.totalorder %s31, 1
    %p74 = por %p72, %p73
    %p75 = scmp.ne.s32.totalorder %s67, %s70
    %p76 = scmp.eq.s32.totalorder %s31, 0
    %p77 = por %p75, %p76
    %p78 = scmp.ne.s32.totalorder %s67, %s70
    %p79 = scmp.eq.s32.totalorder %s36, 1
    %p80 = por %p78, %p79
    %p81 = scmp.ne.s32.totalorder %s70, %s71
    %p82 = scmp.eq.s32.totalorder %s36, 0
    %p83 = por %p81, %p82
    %p84 = scmp.ne.s32.totalorder %s70, %s71
    %p85 = scmp.eq.s32.totalorder %s37, 1
    %p86 = por %p84, %p85
    %p88 = scmp.ne.s32.totalorder %s71, %s87
    %p89 = scmp.eq.s32.totalorder %s37, 0
    %p90 = por %p88, %p89
    %s91 = ssub.s32 %s31, %s38
    %p92 = scmp.eq.s32.totalorder %s91, 0
    %s94 = sadd.s32 %s93, 1
    %s95 = scalar_select %p92, %s93, %s94
    %p98 = pneg %p92
    %p99 = scmp.eq.s32.totalorder %s31, 1
    %p100 = por %p98, %p99
    %p101 = scmp.ne.s32.totalorder %s93, %s96
    %p102 = scmp.eq.s32.totalorder %s31, 0
    %p103 = por %p101, %p102
    %p104 = scmp.ne.s32.totalorder %s93, %s96
    %p105 = scmp.eq.s32.totalorder %s36, 1
    %p106 = por %p104, %p105
    %p107 = scmp.ne.s32.totalorder %s96, %s97
    %p108 = scmp.eq.s32.totalorder %s36, 0
    %p109 = por %p107, %p108
    %p110 = scmp.ne.s32.totalorder %s96, %s97
    %p111 = scmp.eq.s32.totalorder %s37, 1
    %p112 = por %p110, %p111
    %p114 = scmp.ne.s32.totalorder %s97, %s113
    %p115 = scmp.eq.s32.totalorder %s37, 0
    %p116 = por %p114, %p115
    %s118 = sadd.s32 %s117, 1
    %p121 = scmp.eq.s32.totalorder %s31, 1
    %p122 = scmp.ne.s32.totalorder %s117, %s119
    %p123 = scmp.eq.s32.totalorder %s31, 0
    %p124 = por %p122, %p123
    %p125 = scmp.ne.s32.totalorder %s117, %s119
    %p126 = scmp.eq.s32.totalorder %s36, 1
    %p127 = por %p125, %p126
    %p128 = scmp.ne.s32.totalorder %s119, %s120
    %p129 = scmp.eq.s32.totalorder %s36, 0
    %p130 = por %p128, %p129
    %p131 = scmp.ne.s32.totalorder %s119, %s120
    %p132 = scmp.eq.s32.totalorder %s37, 1
    %p133 = por %p131, %p132
    %p135 = scmp.ne.s32.totalorder %s120, %s134
    %p136 = scmp.eq.s32.totalorder %s37, 0
    %p137 = por %p135, %p136
    %s139 = sadd.s32 %s138, 1
    %p142 = scmp.eq.s32.totalorder %s31, 1
    %p143 = scmp.ne.s32.totalorder %s138, %s140
    %p144 = scmp.eq.s32.totalorder %s31, 0
    %p145 = por %p143, %p144
    %p146 = scmp.ne.s32.totalorder %s138, %s140
    %p147 = scmp.eq.s32.totalorder %s36, 1
    %p148 = por %p146, %p147
    %p149 = scmp.ne.s32.totalorder %s140, %s141
    %p150 = scmp.eq.s32.totalorder %s36, 0
    %p151 = por %p149, %p150
    %p152 = scmp.ne.s32.totalorder %s140, %s141
    %p153 = scmp.eq.s32.totalorder %s37, 1
    %p154 = por %p152, %p153
    %p156 = scmp.ne.s32.totalorder %s141, %s155
    %p157 = scmp.eq.s32.totalorder %s37, 0
    %p158 = por %p156, %p157
    %s160 = sadd.s32 %s159, 1
    %p163 = scmp.eq.s32.totalorder %s31, 1
    %p164 = scmp.ne.s32.totalorder %s159, %s161
    %p165 = scmp.eq.s32.totalorder %s31, 0
    %p166 = por %p164, %p165
    %p167 = scmp.ne.s32.totalorder %s159, %s161
    %p168 = scmp.eq.s32.totalorder %s36, 1
    %p169 = por %p167, %p168
    %p170 = scmp.ne.s32.totalorder %s161, %s162
    %p171 = scmp.eq.s32.totalorder %s36, 0
    %p172 = por %p170, %p171
    %p173 = scmp.ne.s32.totalorder %s161, %s162
    %p174 = scmp.eq.s32.totalorder %s37, 1
    %p175 = por %p173, %p174
    %p177 = scmp.ne.s32.totalorder %s162, %s176
    %p178 = scmp.eq.s32.totalorder %s37, 0
    %p179 = por %p177, %p178
    %s181 = sadd.s32 %s180, 1
    %p184 = scmp.eq.s32.totalorder %s31, 1
    %p185 = scmp.ne.s32.totalorder %s180, %s182
    %p186 = scmp.eq.s32.totalorder %s31, 0
    %p187 = por %p185, %p186
    %p188 = scmp.ne.s32.totalorder %s180, %s182
    %p189 = scmp.eq.s32.totalorder %s36, 1
    %p190 = por %p188, %p189
    %p191 = scmp.ne.s32.totalorder %s182, %s183
    %p192 = scmp.eq.s32.totalorder %s36, 0
    %p193 = por %p191, %p192
    %p194 = scmp.ne.s32.totalorder %s182, %s183
    %p195 = scmp.eq.s32.totalorder %s37, 1
    %p196 = por %p194, %p195
    %p198 = scmp.ne.s32.totalorder %s183, %s197
    %p199 = scmp.eq.s32.totalorder %s37, 0
    %p200 = por %p198, %p199
    %s202 = sadd.s32 %s201, 1
    %p205 = scmp.eq.s32.totalorder %s31, 1
    %p206 = scmp.ne.s32.totalorder %s201, %s203
    %p207 = scmp.eq.s32.totalorder %s31, 0
    %p208 = por %p206, %p207
    %p209 = scmp.ne.s32.totalorder %s201, %s203
    %p210 = scmp.eq.s32.totalorder %s36, 1
    %p211 = por %p209, %p210
    %p212 = scmp.ne.s32.totalorder %s203, %s204
    %p213 = scmp.eq.s32.totalorder %s36, 0
    %p214 = por %p212, %p213
    %p215 = scmp.ne.s32.totalorder %s203, %s204
    %p216 = scmp.eq.s32.totalorder %s37, 1
    %p217 = por %p215, %p216
    %p219 = scmp.ne.s32.totalorder %s204, %s218
    %p220 = scmp.eq.s32.totalorder %s37, 0
    %p221 = por %p219, %p220
    %s223 = sadd.s32 %s222, 1
    %p226 = scmp.eq.s32.totalorder %s31, 1
    %p227 = scmp.ne.s32.totalorder %s222, %s224
    %p228 = scmp.eq.s32.totalorder %s31, 0
    %p229 = por %p227, %p228
    %p230 = scmp.ne.s32.totalorder %s222, %s224
    %p231 = scmp.eq.s32.totalorder %s36, 1
    %p232 = por %p230, %p231
    %p233 = scmp.ne.s32.totalorder %s224, %s225
    %p234 = scmp.eq.s32.totalorder %s36, 0
    %p235 = por %p233, %p234
    %p236 = scmp.ne.s32.totalorder %s224, %s225
    %p237 = scmp.eq.s32.totalorder %s37, 1
    %p238 = por %p236, %p237
    %p240 = scmp.ne.s32.totalorder %s225, %s239
    %p241 = scmp.eq.s32.totalorder %s37, 0
    %p242 = por %p240, %p241
    %s244 = sadd.s32 %s243, 1
    %p247 = scmp.eq.s32.totalorder %s31, 1
    %p248 = scmp.ne.s32.totalorder %s243, %s245
    %p249 = scmp.eq.s32.totalorder %s31, 0
    %p250 = por %p248, %p249
    %p251 = scmp.ne.s32.totalorder %s243, %s245
    %p252 = scmp.eq.s32.totalorder %s36, 1
    %p253 = por %p251, %p252
    %p254 = scmp.ne.s32.totalorder %s245, %s246
    %p255 = scmp.eq.s32.totalorder %s36, 0
    %p256 = por %p254, %p255
    %p257 = scmp.ne.s32.totalorder %s245, %s246
    %p258 = scmp.eq.s32.totalorder %s37, 1
    %p259 = por %p257, %p258
    %p261 = scmp.ne.s32.totalorder %s246, %s260
    %p262 = scmp.eq.s32.totalorder %s37, 0
    %p263 = por %p261, %p262
    %s265 = sadd.s32 %s264, 1
    %p268 = scmp.eq.s32.totalorder %s31, 1
    %p269 = scmp.ne.s32.totalorder %s264, %s266
    %p270 = scmp.eq.s32.totalorder %s31, 0
    %p271 = por %p269, %p270
    %p272 = scmp.ne.s32.totalorder %s264, %s266
    %p273 = scmp.eq.s32.totalorder %s36, 1
    %p274 = por %p272, %p273
    %p275 = scmp.ne.s32.totalorder %s266, %s267
    %p276 = scmp.eq.s32.totalorder %s36, 0
    %p277 = por %p275, %p276
    %p278 = scmp.ne.s32.totalorder %s266, %s267
    %p279 = scmp.eq.s32.totalorder %s37, 1
    %p280 = por %p278, %p279
    %p282 = scmp.ne.s32.totalorder %s267, %s281
    %p283 = scmp.eq.s32.totalorder %s37, 0
    %p284 = por %p282, %p283
    %s286 = sadd.s32 %s285, 1
    %p289 = scmp.eq.s32.totalorder %s31, 1
    %p290 = scmp.ne.s32.totalorder %s285, %s287
    %p291 = scmp.eq.s32.totalorder %s31, 0
    %p292 = por %p290, %p291
    %p293 = scmp.ne.s32.totalorder %s285, %s287
    %p294 = scmp.eq.s32.totalorder %s36, 1
    %p295 = por %p293, %p294
    %p296 = scmp.ne.s32.totalorder %s287, %s288
    %p297 = scmp.eq.s32.totalorder %s36, 0
    %p298 = por %p296, %p297
    %p299 = scmp.ne.s32.totalorder %s287, %s288
    %p300 = scmp.eq.s32.totalorder %s37, 1
    %p301 = por %p299, %p300
    %p303 = scmp.ne.s32.totalorder %s288, %s302
    %p304 = scmp.eq.s32.totalorder %s37, 0
    %p305 = por %p303, %p304
    %s307 = sadd.s32 %s306, 1
    %p310 = scmp.eq.s32.totalorder %s31, 1
    %p311 = scmp.ne.s32.totalorder %s306, %s308
    %p312 = scmp.eq.s32.totalorder %s31, 0
    %p313 = por %p311, %p312
    %p314 = scmp.ne.s32.totalorder %s306, %s308
    %p315 = scmp.eq.s32.totalorder %s36, 1
    %p316 = por %p314, %p315
    %p317 = scmp.ne.s32.totalorder %s308, %s309
    %p318 = scmp.eq.s32.totalorder %s36, 0
    %p319 = por %p317, %p318
    %p320 = scmp.ne.s32.totalorder %s308, %s309
    %p321 = scmp.eq.s32.totalorder %s37, 1
    %p322 = por %p320, %p321
    %p324 = scmp.ne.s32.totalorder %s309, %s323
    %p325 = scmp.eq.s32.totalorder %s37, 0
    %p326 = por %p324, %p325
    %s328 = sadd.s32 %s327, 1
    %p331 = scmp.eq.s32.totalorder %s31, 1
    %p332 = scmp.ne.s32.totalorder %s327, %s329
    %p333 = scmp.eq.s32.totalorder %s31, 0
    %p334 = por %p332, %p333
    %p335 = scmp.ne.s32.totalorder %s327, %s329
    %p336 = scmp.eq.s32.totalorder %s36, 1
    %p337 = por %p335, %p336
    %p338 = scmp.ne.s32.totalorder %s329, %s330
    %p339 = scmp.eq.s32.totalorder %s36, 0
    %p340 = por %p338, %p339
    %p341 = scmp.ne.s32.totalorder %s329, %s330
    %p342 = scmp.eq.s32.totalorder %s37, 1
    %p343 = por %p341, %p342
    %p345 = scmp.ne.s32.totalorder %s330, %s344
    %p346 = scmp.eq.s32.totalorder %s37, 0
    %p347 = por %p345, %p346
    %s349 = sadd.s32 %s348, 1
    %p352 = scmp.eq.s32.totalorder %s31, 1
    %p353 = scmp.ne.s32.totalorder %s348, %s350
    %p354 = scmp.eq.s32.totalorder %s31, 0
    %p355 = por %p353, %p354
    %p356 = scmp.ne.s32.totalorder %s348, %s350
    %p357 = scmp.eq.s32.totalorder %s36, 1
    %p358 = por %p356, %p357
    %p359 = scmp.ne.s32.totalorder %s350, %s351
    %p360 = scmp.eq.s32.totalorder %s36, 0
    %p361 = por %p359, %p360
    %p362 = scmp.ne.s32.totalorder %s350, %s351
    %p363 = scmp.eq.s32.totalorder %s37, 1
    %p364 = por %p362, %p363
    %p366 = scmp.ne.s32.totalorder %s351, %s365
    %p367 = scmp.eq.s32.totalorder %s37, 0
    %p368 = por %p366, %p367
    %s370 = sadd.s32 %s369, 1
    %p373 = scmp.eq.s32.totalorder %s31, 1
    %p374 = scmp.ne.s32.totalorder %s369, %s371
    %p375 = scmp.eq.s32.totalorder %s31, 0
    %p376 = por %p374, %p375
    %p377 = scmp.ne.s32.totalorder %s369, %s371
    %p378 = scmp.eq.s32.totalorder %s36, 1
    %p379 = por %p377, %p378
    %p380 = scmp.ne.s32.totalorder %s371, %s372
    %p381 = scmp.eq.s32.totalorder %s36, 0
    %p382 = por %p380, %p381
    %p383 = scmp.ne.s32.totalorder %s371, %s372
    %p384 = scmp.eq.s32.totalorder %s37, 1
    %p385 = por %p383, %p384
    %p387 = scmp.ne.s32.totalorder %s372, %s386
    %p388 = scmp.eq.s32.totalorder %s37, 0
    %p389 = por %p387, %p388
    %s391 = sadd.s32 %s390, 1
    %p394 = scmp.eq.s32.totalorder %s31, 1
    %p395 = scmp.ne.s32.totalorder %s390, %s392
    %p396 = scmp.eq.s32.totalorder %s31, 0
    %p397 = por %p395, %p396
    %p398 = scmp.ne.s32.totalorder %s390, %s392
    %p399 = scmp.eq.s32.totalorder %s36, 1
    %p400 = por %p398, %p399
    %p401 = scmp.ne.s32.totalorder %s392, %s393
    %p402 = scmp.eq.s32.totalorder %s36, 0
    %p403 = por %p401, %p402
    %p404 = scmp.ne.s32.totalorder %s392, %s393
    %p405 = scmp.eq.s32.totalorder %s37, 1
    %p406 = por %p404, %p405
    %p408 = scmp.ne.s32.totalorder %s393, %s407
    %p409 = scmp.eq.s32.totalorder %s37, 0
    %p410 = por %p408, %p409
    %s412 = sadd.s32 %s411, 1
    %p415 = scmp.eq.s32.totalorder %s31, 1
    %p416 = scmp.ne.s32.totalorder %s411, %s413
    %p417 = scmp.eq.s32.totalorder %s31, 0
    %p418 = por %p416, %p417
    %p419 = scmp.ne.s32.totalorder %s411, %s413
    %p420 = scmp.eq.s32.totalorder %s36, 1
    %p421 = por %p419, %p420
    %p422 = scmp.ne.s32.totalorder %s413, %s414
    %p423 = scmp.eq.s32.totalorder %s36, 0
    %p424 = por %p422, %p423
    %p425 = scmp.ne.s32.totalorder %s413, %s414
    %p426 = scmp.eq.s32.totalorder %s37, 1
    %p427 = por %p425, %p426
    %p429 = scmp.ne.s32.totalorder %s414, %s428
    %p430 = scmp.eq.s32.totalorder %s37, 0
    %p431 = por %p429, %p430
    %s433 = sadd.s32 %s432, 1
    %p436 = scmp.eq.s32.totalorder %s31, 1
    %p437 = scmp.ne.s32.totalorder %s432, %s434
    %p438 = scmp.eq.s32.totalorder %s31, 0
    %p439 = por %p437, %p438
    %p440 = scmp.ne.s32.totalorder %s432, %s434
    %p441 = scmp.eq.s32.totalorder %s36, 1
    %p442 = por %p440, %p441
    %p443 = scmp.ne.s32.totalorder %s434, %s435
    %p444 = scmp.eq.s32.totalorder %s36, 0
    %p445 = por %p443, %p444
    %p446 = scmp.ne.s32.totalorder %s434, %s435
    %p447 = scmp.eq.s32.totalorder %s37, 1
    %p448 = por %p446, %p447
    %p450 = scmp.ne.s32.totalorder %s435, %s449
    %p451 = scmp.eq.s32.totalorder %s37, 0
    %p452 = por %p450, %p451
    %s454 = sadd.s32 %s453, 1
    %p457 = scmp.eq.s32.totalorder %s31, 1
    %p458 = scmp.ne.s32.totalorder %s453, %s455
    %p459 = scmp.eq.s32.totalorder %s31, 0
    %p460 = por %p458, %p459
    %p461 = scmp.ne.s32.totalorder %s453, %s455
    %p462 = scmp.eq.s32.totalorder %s36, 1
    %p463 = por %p461, %p462
    %p464 = scmp.ne.s32.totalorder %s455, %s456
    %p465 = scmp.eq.s32.totalorder %s36, 0
    %p466 = por %p464, %p465
    %p467 = scmp.ne.s32.totalorder %s455, %s456
    %p468 = scmp.eq.s32.totalorder %s37, 1
    %p469 = por %p467, %p468
    %p471 = scmp.ne.s32.totalorder %s456, %s470
    %p472 = scmp.eq.s32.totalorder %s37, 0
    %p473 = por %p471, %p472
    %s475 = sadd.s32 %s474, 1
    %p478 = scmp.eq.s32.totalorder %s31, 1
    %p479 = scmp.ne.s32.totalorder %s474, %s476
    %p480 = scmp.eq.s32.totalorder %s31, 0
    %p481 = por %p479, %p480
    %p482 = scmp.ne.s32.totalorder %s474, %s476
    %p483 = scmp.eq.s32.totalorder %s36, 1
    %p484 = por %p482, %p483
    %p485 = scmp.ne.s32.totalorder %s476, %s477
    %p486 = scmp.eq.s32.totalorder %s36, 0
    %p487 = por %p485, %p486
    %p488 = scmp.ne.s32.totalorder %s476, %s477
    %p489 = scmp.eq.s32.totalorder %s37, 1
    %p490 = por %p488, %p489
    %p492 = scmp.ne.s32.totalorder %s477, %s491
    %p493 = scmp.eq.s32.totalorder %s37, 0
    %p494 = por %p492, %p493
    %s496 = sadd.s32 %s495, 1
    %p499 = scmp.eq.s32.totalorder %s31, 1
    %p500 = scmp.ne.s32.totalorder %s495, %s497
    %p501 = scmp.eq.s32.totalorder %s31, 0
    %p502 = por %p500, %p501
    %p503 = scmp.ne.s32.totalorder %s495, %s497
    %p504 = scmp.eq.s32.totalorder %s36, 1
    %p505 = por %p503, %p504
    %p506 = scmp.ne.s32.totalorder %s497, %s498
    %p507 = scmp.eq.s32.totalorder %s36, 0
    %p508 = por %p506, %p507
    %p509 = scmp.ne.s32.totalorder %s497, %s498
    %p510 = scmp.eq.s32.totalorder %s37, 1
    %p511 = por %p509, %p510
    %p513 = scmp.ne.s32.totalorder %s498, %s512
    %p514 = scmp.eq.s32.totalorder %s37, 0
    %p515 = por %p513, %p514
    %s517 = sadd.s32 %s516, 1
    %p520 = scmp.eq.s32.totalorder %s31, 1
    %p521 = scmp.ne.s32.totalorder %s516, %s518
    %p522 = scmp.eq.s32.totalorder %s31, 0
    %p523 = por %p521, %p522
    %p524 = scmp.ne.s32.totalorder %s516, %s518
    %p525 = scmp.eq.s32.totalorder %s36, 1
    %p526 = por %p524, %p525
    %p527 = scmp.ne.s32.totalorder %s518, %s519
    %p528 = scmp.eq.s32.totalorder %s36, 0
    %p529 = por %p527, %p528
    %p530 = scmp.ne.s32.totalorder %s518, %s519
    %p531 = scmp.eq.s32.totalorder %s37, 1
    %p532 = por %p530, %p531
    %p534 = scmp.ne.s32.totalorder %s519, %s533
    %p535 = scmp.eq.s32.totalorder %s37, 0
    %p536 = por %p534, %p535
    %s538 = sadd.s32 %s537, 1
    %p541 = scmp.eq.s32.totalorder %s31, 1
    %p542 = scmp.ne.s32.totalorder %s537, %s539
    %p543 = scmp.eq.s32.totalorder %s31, 0
    %p544 = por %p542, %p543
    %p545 = scmp.ne.s32.totalorder %s537, %s539
    %p546 = scmp.eq.s32.totalorder %s36, 1
    %p547 = por %p545, %p546
    %p548 = scmp.ne.s32.totalorder %s539, %s540
    %p549 = scmp.eq.s32.totalorder %s36, 0
    %p550 = por %p548, %p549
    %p551 = scmp.ne.s32.totalorder %s539, %s540
    %p552 = scmp.eq.s32.totalorder %s37, 1
    %p553 = por %p551, %p552
    %p555 = scmp.ne.s32.totalorder %s540, %s554
    %p556 = scmp.eq.s32.totalorder %s37, 0
    %p557 = por %p555, %p556
    %s559 = sadd.s32 %s558, 1
    %p562 = scmp.eq.s32.totalorder %s31, 1
    %p563 = scmp.ne.s32.totalorder %s558, %s560
    %p564 = scmp.eq.s32.totalorder %s31, 0
    %p565 = por %p563, %p564
    %p566 = scmp.ne.s32.totalorder %s558, %s560
    %p567 = scmp.eq.s32.totalorder %s36, 1
    %p568 = por %p566, %p567
    %p569 = scmp.ne.s32.totalorder %s560, %s561
    %p570 = scmp.eq.s32.totalorder %s36, 0
    %p571 = por %p569, %p570
    %p572 = scmp.ne.s32.totalorder %s560, %s561
    %p573 = scmp.eq.s32.totalorder %s37, 1
    %p574 = por %p572, %p573
    %p576 = scmp.ne.s32.totalorder %s561, %s575
    %p577 = scmp.eq.s32.totalorder %s37, 0
    %p578 = por %p576, %p577
    %s579 = ssub.s32 %s31, %s38
    %p580 = scmp.eq.s32.totalorder %s579, 0
    %s582 = sadd.s32 %s581, 1
    %s583 = scalar_select %p580, %s581, %s582
    %p586 = pneg %p580
    %p587 = scmp.eq.s32.totalorder %s31, 1
    %p588 = por %p586, %p587
    %p589 = scmp.ne.s32.totalorder %s581, %s584
    %p590 = scmp.eq.s32.totalorder %s31, 0
    %p591 = por %p589, %p590
    %p592 = scmp.ne.s32.totalorder %s581, %s584
    %p593 = scmp.eq.s32.totalorder %s36, 1
    %p594 = por %p592, %p593
    %p595 = scmp.ne.s32.totalorder %s584, %s585
    %p596 = scmp.eq.s32.totalorder %s36, 0
    %p597 = por %p595, %p596
    %p598 = scmp.ne.s32.totalorder %s584, %s585
    %p599 = scmp.eq.s32.totalorder %s37, 1
    %p600 = por %p598, %p599
    %p602 = scmp.ne.s32.totalorder %s585, %s601
    %p603 = scmp.eq.s32.totalorder %s37, 0
    %p604 = por %p602, %p603
    %p605 = scmp.le.s32.totalorder 1, %s31
    %p606 = scmp.lt.s32.totalorder %s31, 3
    %p607 = pnand %p605, %p606
    %p608 = pneg %p607
    // Predicated region
    $region9: #{decoder_layer_forward.1} parent=5 // pred_check
      _
    $region10: #{decoder_layer_forward.1} parent=5 // pred_check_branch
      %610 = sbr.rel (%p607) target = $region12
    $region11: #{decoder_layer_forward.1} parent=5 // pred_region
      %s611 = ssub.s32 %s31, 1
      // Predicated region
      $region13: #{decoder_layer_forward.1} parent=11 // pred_check
        %p612 = pneg %p130
      $region14: #{decoder_layer_forward.1} parent=11 // pred_check_branch
        %614 = sbr.rel (%p612) target = $region16
      $region15: #{decoder_layer_forward.1} parent=11 // pred_region
        _
      $region16: #{decoder_layer_forward.1} parent=11 // pred_fallthru
        _
      // Predicated region
      $region17: #{decoder_layer_forward.1} parent=11 // pred_check
        %p615 = pneg %p151
      $region18: #{decoder_layer_forward.1} parent=11 // pred_check_branch
        %617 = sbr.rel (%p615) target = $region20
      $region19: #{decoder_layer_forward.1} parent=11 // pred_region
        _
      $region20: #{decoder_layer_forward.1} parent=11 // pred_fallthru
        _
      // Predicated region
      $region21: #{decoder_layer_forward.1} parent=11 // pred_check
        %p618 = pneg %p172
      $region22: #{decoder_layer_forward.1} parent=11 // pred_check_branch
        %620 = sbr.rel (%p618) target = $region24
      $region23: #{decoder_layer_forward.1} parent=11 // pred_region
        _
      $region24: #{decoder_layer_forward.1} parent=11 // pred_fallthru
        _
      // Predicated region
      $region25: #{decoder_layer_forward.1} parent=11 // pred_check
        %p621 = pneg %p193
      $region26: #{decoder_layer_forward.1} parent=11 // pred_check_branch
        %623 = sbr.rel (%p621) target = $region28
      $region27: #{decoder_layer_forward.1} parent=11 // pred_region
        _
      $region28: #{decoder_layer_forward.1} parent=11 // pred_fallthru
        _
      // Predicated region
      $region29: #{decoder_layer_forward.1} parent=11 // pred_check
        %p624 = pneg %p214
      $region30: #{decoder_layer_forward.1} parent=11 // pred_check_branch
        %626 = sbr.rel (%p624) target = $region32
      $region31: #{decoder_layer_forward.1} parent=11 // pred_region
        _
      $region32: #{decoder_layer_forward.1} parent=11 // pred_fallthru
        _
      // Predicated region
      $region33: #{decoder_layer_forward.1} parent=11 // pred_check
        %p627 = pneg %p235
      $region34: #{decoder_layer_forward.1} parent=11 // pred_check_branch
        %629 = sbr.rel (%p627) target = $region36
      $region35: #{decoder_layer_forward.1} parent=11 // pred_region
        _
      $region36: #{decoder_layer_forward.1} parent=11 // pred_fallthru
        _
      // Predicated region
      $region37: #{decoder_layer_forward.1} parent=11 // pred_check
        %p630 = pneg %p256
      $region38: #{decoder_layer_forward.1} parent=11 // pred_check_branch
        %632 = sbr.rel (%p630) target = $region40
      $region39: #{decoder_layer_forward.1} parent=11 // pred_region
        _
      $region40: #{decoder_layer_forward.1} parent=11 // pred_fallthru
        _
      // Predicated region
      $region41: #{decoder_layer_forward.1} parent=11 // pred_check
        %p633 = pneg %p277
      $region42: #{decoder_layer_forward.1} parent=11 // pred_check_branch
        %635 = sbr.rel (%p633) target = $region44
      $region43: #{decoder_layer_forward.1} parent=11 // pred_region
        _
      $region44: #{decoder_layer_forward.1} parent=11 // pred_fallthru
        _
      // Predicated region
      $region45: #{decoder_layer_forward.1} parent=11 // pred_check
        %p636 = pneg %p298
      $region46: #{decoder_layer_forward.1} parent=11 // pred_check_branch
        %638 = sbr.rel (%p636) target = $region48
      $region47: #{decoder_layer_forward.1} parent=11 // pred_region
        _
      $region48: #{decoder_layer_forward.1} parent=11 // pred_fallthru
        _
      // Predicated region
      $region49: #{decoder_layer_forward.1} parent=11 // pred_check
        %p639 = pneg %p319
      $region50: #{decoder_layer_forward.1} parent=11 // pred_check_branch
        %641 = sbr.rel (%p639) target = $region52
      $region51: #{decoder_layer_forward.1} parent=11 // pred_region
        _
      $region52: #{decoder_layer_forward.1} parent=11 // pred_fallthru
        _
      // Predicated region
      $region53: #{decoder_layer_forward.1} parent=11 // pred_check
        %p642 = pneg %p340
      $region54: #{decoder_layer_forward.1} parent=11 // pred_check_branch
        %644 = sbr.rel (%p642) target = $region56
      $region55: #{decoder_layer_forward.1} parent=11 // pred_region
        _
      $region56: #{decoder_layer_forward.1} parent=11 // pred_fallthru
        _
      // Predicated region
      $region57: #{decoder_layer_forward.1} parent=11 // pred_check
        %p645 = pneg %p361
      $region58: #{decoder_layer_forward.1} parent=11 // pred_check_branch
        %647 = sbr.rel (%p645) target = $region60
      $region59: #{decoder_layer_forward.1} parent=11 // pred_region
        _
      $region60: #{decoder_layer_forward.1} parent=11 // pred_fallthru
        _
      // Predicated region
      $region61: #{decoder_layer_forward.1} parent=11 // pred_check
        %p648 = pneg %p382
      $region62: #{decoder_layer_forward.1} parent=11 // pred_check_branch
        %650 = sbr.rel (%p648) target = $region64
      $region63: #{decoder_layer_forward.1} parent=11 // pred_region
        _
      $region64: #{decoder_layer_forward.1} parent=11 // pred_fallthru
        _
      // Predicated region
      $region65: #{decoder_layer_forward.1} parent=11 // pred_check
        %p651 = pneg %p403
      $region66: #{decoder_layer_forward.1} parent=11 // pred_check_branch
        %653 = sbr.rel (%p651) target = $region68
      $region67: #{decoder_layer_forward.1} parent=11 // pred_region
        _
      $region68: #{decoder_layer_forward.1} parent=11 // pred_fallthru
        _
      // Predicated region
      $region69: #{decoder_layer_forward.1} parent=11 // pred_check
        %p654 = pneg %p424
      $region70: #{decoder_layer_forward.1} parent=11 // pred_check_branch
        %656 = sbr.rel (%p654) target = $region72
      $region71: #{decoder_layer_forward.1} parent=11 // pred_region
        _
      $region72: #{decoder_layer_forward.1} parent=11 // pred_fallthru
        _
      // Predicated region
      $region73: #{decoder_layer_forward.1} parent=11 // pred_check
        %p657 = pneg %p445
      $region74: #{decoder_layer_forward.1} parent=11 // pred_check_branch
        %659 = sbr.rel (%p657) target = $region76
      $region75: #{decoder_layer_forward.1} parent=11 // pred_region
        _
      $region76: #{decoder_layer_forward.1} parent=11 // pred_fallthru
        _
      // Predicated region
      $region77: #{decoder_layer_forward.1} parent=11 // pred_check
        %p660 = pneg %p466
      $region78: #{decoder_layer_forward.1} parent=11 // pred_check_branch
        %662 = sbr.rel (%p660) target = $region80
      $region79: #{decoder_layer_forward.1} parent=11 // pred_region
        _
      $region80: #{decoder_layer_forward.1} parent=11 // pred_fallthru
        _
      // Predicated region
      $region81: #{decoder_layer_forward.1} parent=11 // pred_check
        %p663 = pneg %p487
      $region82: #{decoder_layer_forward.1} parent=11 // pred_check_branch
        %665 = sbr.rel (%p663) target = $region84
      $region83: #{decoder_layer_forward.1} parent=11 // pred_region
        _
      $region84: #{decoder_layer_forward.1} parent=11 // pred_fallthru
        _
      // Predicated region
      $region85: #{decoder_layer_forward.1} parent=11 // pred_check
        %p666 = pneg %p508
      $region86: #{decoder_layer_forward.1} parent=11 // pred_check_branch
        %668 = sbr.rel (%p666) target = $region88
      $region87: #{decoder_layer_forward.1} parent=11 // pred_region
        _
      $region88: #{decoder_layer_forward.1} parent=11 // pred_fallthru
        _
      // Predicated region
      $region89: #{decoder_layer_forward.1} parent=11 // pred_check
        %p669 = pneg %p529
      $region90: #{decoder_layer_forward.1} parent=11 // pred_check_branch
        %671 = sbr.rel (%p669) target = $region92
      $region91: #{decoder_layer_forward.1} parent=11 // pred_region
        _
      $region92: #{decoder_layer_forward.1} parent=11 // pred_fallthru
        _
      // Predicated region
      $region93: #{decoder_layer_forward.1} parent=11 // pred_check
        %p672 = pneg %p550
      $region94: #{decoder_layer_forward.1} parent=11 // pred_check_branch
        %674 = sbr.rel (%p672) target = $region96
      $region95: #{decoder_layer_forward.1} parent=11 // pred_region
        _
      $region96: #{decoder_layer_forward.1} parent=11 // pred_fallthru
        _
      // Predicated region
      $region97: #{decoder_layer_forward.1} parent=11 // pred_check
        %p675 = pneg %p571
      $region98: #{decoder_layer_forward.1} parent=11 // pred_check_branch
        %677 = sbr.rel (%p675) target = $region100
      $region99: #{decoder_layer_forward.1} parent=11 // pred_region
        _
      $region100: #{decoder_layer_forward.1} parent=11 // pred_fallthru
        _
    $region12: #{decoder_layer_forward.1} parent=5 // pred_fallthru
      _
    %p678 = scmp.lt.s32.totalorder %s31, 2
    // Predicated region
    $region101: #{decoder_layer_forward.1} parent=5 // pred_check
      %p679 = pneg %p678
    $region102: #{decoder_layer_forward.1} parent=5 // pred_check_branch
      %681 = sbr.rel (%p679) target = $region104
    $region103: #{decoder_layer_forward.1} parent=5 // pred_region
      // Predicated region
      $region105: #{decoder_layer_forward.1} parent=103 // pred_check
        %p682 = pneg %p51
      $region106: #{decoder_layer_forward.1} parent=103 // pred_check_branch
        %684 = sbr.rel (%p682) target = $region108
      $region107: #{decoder_layer_forward.1} parent=103 // pred_region
        %p685 = scmp.lt.s32.totalorder %s31, 1
        %s686 = scalar_select %p685, %s31, 1
        %s687 = smul.addr %s686, 8
        %s688 = scalar_lea.vmem %s0, %s687
      $region108: #{decoder_layer_forward.1} parent=103 // pred_fallthru
        _
      // Predicated region
      $region109: #{decoder_layer_forward.1} parent=103 // pred_check
        %p689 = pneg %p77
      $region110: #{decoder_layer_forward.1} parent=103 // pred_check_branch
        %691 = sbr.rel (%p689) target = $region112
      $region111: #{decoder_layer_forward.1} parent=103 // pred_region
        %p692 = scmp.lt.s32.totalorder %s31, 1
        %s693 = scalar_select %p692, %s31, 1
        %s694 = smul.addr %s693, 2
        %s695 = smul.addr %s694, 8
        %s696 = scalar_lea.vmem %s1, %s695
      $region112: #{decoder_layer_forward.1} parent=103 // pred_fallthru
        _
      // Predicated region
      $region113: #{decoder_layer_forward.1} parent=103 // pred_check
        %p697 = pneg %p103
      $region114: #{decoder_layer_forward.1} parent=103 // pred_check_branch
        %699 = sbr.rel (%p697) target = $region116
      $region115: #{decoder_layer_forward.1} parent=103 // pred_region
        %p700 = scmp.lt.s32.totalorder %s31, 1
        %s701 = scalar_select %p700, %s31, 1
        %s702 = smul.addr %s701, 8
        %s703 = scalar_lea.vmem %s2, %s702
      $region116: #{decoder_layer_forward.1} parent=103 // pred_fallthru
        _
    $region104: #{decoder_layer_forward.1} parent=5 // pred_fallthru
      _
    %p704 = scmp.le.s32.totalorder 1, %s31
    %p705 = scmp.lt.s32.totalorder %s31, 3
    %p706 = pnand %p704, %p705
    %p707 = pneg %p706
    // Predicated region
    $region117: #{decoder_layer_forward.1} parent=5 // pred_check
      _
    $region118: #{decoder_layer_forward.1} parent=5 // pred_check_branch
      %709 = sbr.rel (%p706) target = $region120
    $region119: #{decoder_layer_forward.1} parent=5 // pred_region
      %s710 = ssub.s32 %s31, 1
      %p711 = scmp.lt.s32.totalorder %s36, 1
      %s712 = scalar_select %p711, %s36, 1
      %s713 = smul.addr %s712, 8
      %s714 = scalar_lea.vmem %s0, %s713
      %p715 = pneg %p57
      %p716 = pneg %p54
      %p717 = scmp.lt.s32.totalorder %s36, 1
      %s718 = scalar_select %p717, %s36, 1
      %s719 = smul.addr %s718, 2
      %s720 = smul.addr %s719, 8
      %s721 = scalar_lea.vmem %s1, %s720
      %p722 = pneg %p83
      %p723 = pneg %p80
      %p724 = scmp.lt.s32.totalorder %s36, 1
      %s725 = scalar_select %p724, %s36, 1
      %s726 = smul.addr %s725, 8
      %s727 = scalar_lea.vmem %s2, %s726
      %p728 = pneg %p109
      %p729 = pneg %p106
      %p730 = pneg %p130
      %p731 = pneg %p127
      %p732 = pneg %p151
      %p733 = pneg %p148
      %p734 = pneg %p172
      %p735 = pneg %p169
      %p736 = pneg %p193
      %p737 = pneg %p190
      %p738 = pneg %p214
      %p739 = pneg %p211
      %p740 = pneg %p235
      %p741 = pneg %p232
      %p742 = pneg %p256
      %p743 = pneg %p253
      %p744 = pneg %p277
      %p745 = pneg %p274
      %p746 = pneg %p298
      %p747 = pneg %p295
      %p748 = pneg %p319
      %p749 = pneg %p316
      %p750 = pneg %p340
      %p751 = pneg %p337
      %p752 = pneg %p361
      %p753 = pneg %p358
      %p754 = pneg %p382
      %p755 = pneg %p379
      %p756 = pneg %p403
      %p757 = pneg %p400
      %p758 = pneg %p424
      %p759 = pneg %p421
      %p760 = pneg %p445
      %p761 = pneg %p442
      %p762 = pneg %p466
      %p763 = pneg %p463
      %p764 = pneg %p487
      %p765 = pneg %p484
      %p766 = pneg %p508
      %p767 = pneg %p505
      %p768 = pneg %p529
      %p769 = pneg %p526
      %p770 = pneg %p550
      %p771 = pneg %p547
      %p772 = pneg %p571
      %p773 = pneg %p568
      %p774 = pneg %p597
      %p775 = pneg %p594
      %p776 = scmp.lt.s32.totalorder %s36, 1
      %s777 = scalar_select %p776, %s36, 1
      %s778 = smul.addr %s777, 8
      %s779 = scalar_lea.vmem %s25, %s778
      %p780 = scmp.lt.s32.totalorder %s36, 1
      %s781 = scalar_select %p780, %s36, 1
      %s782 = smul.addr %s781, 8
      %s783 = scalar_lea.vmem %s0, %s782
      %p784 = scmp.lt.s32.totalorder %s36, 1
      %s785 = scalar_select %p784, %s36, 1
      %s786 = smul.addr %s785, 2
      %s787 = smul.addr %s786, 8
      %s788 = scalar_lea.vmem %s1, %s787
      %p789 = scmp.lt.s32.totalorder %s36, 1
      %s790 = scalar_select %p789, %s36, 1
      %s791 = smul.addr %s790, 8
      %s792 = scalar_lea.vmem %s2, %s791
      %p793 = scmp.lt.s32.totalorder %s36, 1
      %s794 = scalar_select %p793, %s36, 1
      %s795 = smul.addr %s794, 8
      %s796 = scalar_lea.vmem %s25, %s795
      %v798 = vld [vmem:[%s783] sm:$0xff]
      %v799 = vld [vmem:[%s788] sm:$0xff]
      %v800 = vld [vmem:[%s788 + $0x8] sm:$0xff]
      %v801 = vld [vmem:[%s792] sm:$0xff]
      %v802 = vadd.f32 %v798, %v801
      %v803 = vpack.c.bf16 %v802, %v802
      %v804 = vld [vmem:[%s3] sm:$0xf]
      %v805 = vld [vmem:[%s3 + $0x4] sm:$0xf]
      %v806 = vld [vmem:[%s3 + $0x8] sm:$0xf]
      %v807 = vld [vmem:[%s3 + $0xc] sm:$0xf]
      %v808 = vld [vmem:[%s4] sm:$0x1]
      %v810 = vlaneseq
      %v811 = vshrl.u32 %v810, 7
      %v812 = vsub.s32 0, %v811
      %v813 = vrot.slane %v808, %v812
      %v819 = vunpack.c.l.b16 %v804
      %v820 = vunpack.c.l.b16 %v805
      %v821 = vunpack.c.l.b16 %v806
      %v822 = vunpack.c.l.b16 %v807
      %v823 = vpack.c.b16 %v820, %v819
      %v824 = vpack.c.b16 %v822, %v821
      %vm827 = vcmask 261120
      %v829 = vsel %vm827, %v803, 0
      %831 = vmatprep.subr.bf16.mxu0 0
      %832 = vmatpush1.bf16.msra.mxu0 %v823
      %833 = vmatprep.subr.bf16.mxu0 0
      %834 = vmatpush1.bf16.msra.mxu0 %v824
      %835 = vmatprep.subr.bf16.mxu0 0
      %836 = vmatpush1.bf16.msra.mxu0 0
      %837 = vmatprep.subr.bf16.mxu0 0
      %838 = vmatpush1.bf16.msra.mxu0 0
      %839 = vmatprep.subr.bf16.mxu0 0
      %840 = vmatpush1.bf16.msra.mxu0 0
      %841 = vmatprep.subr.bf16.mxu0 0
      %842 = vmatpush1.bf16.msra.mxu0 0
      %843 = vmatprep.subr.bf16.mxu0 0
      %844 = vmatpush1.bf16.msra.mxu0 0
      %845 = vmatprep.subr.bf16.mxu0 0
      %846 = vmatpush1.bf16.msra.mxu0 0
      %847 = vmatprep.subr.bf16.mxu0 0
      %848 = vmatpush1.bf16.msra.mxu0 0
      %849 = vmatprep.subr.bf16.mxu0 0
      %850 = vmatpush1.bf16.msra.mxu0 0
      %851 = vmatprep.subr.bf16.mxu0 0
      %852 = vmatpush1.bf16.msra.mxu0 0
      %853 = vmatprep.subr.bf16.mxu0 0
      %854 = vmatpush1.bf16.msra.mxu0 0
      %855 = vmatprep.subr.bf16.mxu0 0
      %856 = vmatpush1.bf16.msra.mxu0 0
      %857 = vmatprep.subr.bf16.mxu0 0
      %858 = vmatpush1.bf16.msra.mxu0 0
      %859 = vmatprep.subr.bf16.mxu0 0
      %860 = vmatpush1.bf16.msra.mxu0 0
      %861 = vmatprep.subr.bf16.mxu0 0
      %862 = vmatpush1.bf16.msra.mxu0 0
      %863 = vmatprep.mubr.bf16.mxu0 0
      %864 = vmatmul.mubr.bf16.gmra.mrb[0].mxu0 %v829
      %v865 = vpop.f32.mrb[0].mxu0
      %v866 = vadd.f32 %v813, %v865
      %v867 = vpop.f32.mrb[0].mxu0
      %v868 = vpop.f32.mrb[0].mxu0
      %v869 = vpop.f32.mrb[0].mxu0
      %870 = vdwg.mxu0
      %v871 = vld [vmem:[%s19] sm:$0x1]
      %v872 = vld [vmem:[%s20] sm:$0x1]
      %v873 = vsel %vm827, %v798, 0.0
      %874 = vadd.xlane.f32.xlu0 %v873
      %v875 = vpop.xlane.xlu0 %874
      %v876 = vrcp.pop 32.0
      %v877 = vmul.f32 %v875, %v876
      %v878 = vsub.f32 %v798, %v877
      %v879 = vmul.f32 %v878, %v878
      %v880 = vsel %vm827, %v879, 0.0
      %881 = vadd.xlane.f32.xlu0 %v880
      %v882 = vpop.xlane.xlu0 %881
      %v883 = vmul.f32 %v882, %v876
      %v884 = vadd.f32 %v883, 1e-05
      %v885 = vrsqrt.pop %v884
      %v886 = vmul.f32 %v878, %v885
      %v888 = vlaneseq
      %v889 = vshrl.u32 %v888, 7
      %v890 = vsub.s32 0, %v889
      %v891 = vrot.slane %v871, %v890
      %v893 = vmul.f32 %v886, %v891
      %v895 = vlaneseq
      %v896 = vshrl.u32 %v895, 7
      %v897 = vsub.s32 0, %v896
      %v898 = vrot.slane %v872, %v897
      %v900 = vadd.f32 %v893, %v898
      %v901 = vpack.c.bf16 %v900, %v900
      %v902 = vld [vmem:[%s5] sm:$0xf]
      %v903 = vld [vmem:[%s5 + $0x4] sm:$0xf]
      %v904 = vld [vmem:[%s5 + $0x8] sm:$0xf]
      %v905 = vld [vmem:[%s5 + $0xc] sm:$0xf]
      %v906 = vld [vmem:[%s6] sm:$0x1]
      %v908 = vlaneseq
      %v909 = vshrl.u32 %v908, 7
      %v910 = vsub.s32 0, %v909
      %v911 = vrot.slane %v906, %v910
      %v917 = vunpack.c.l.b16 %v902
      %v918 = vunpack.c.l.b16 %v903
      %v919 = vunpack.c.l.b16 %v904
      %v920 = vunpack.c.l.b16 %v905
      %v921 = vpack.c.b16 %v918, %v917
      %v922 = vpack.c.b16 %v920, %v919
      %v926 = vsel %vm827, %v901, 0
      %928 = vmatprep.subr.bf16.mxu0 0
      %929 = vmatpush1.bf16.msra.mxu0 %v921
      %930 = vmatprep.subr.bf16.mxu0 0
      %931 = vmatpush1.bf16.msra.mxu0 %v922
      %932 = vmatprep.subr.bf16.mxu0 0
      %933 = vmatpush1.bf16.msra.mxu0 0
      %934 = vmatprep.subr.bf16.mxu0 0
      %935 = vmatpush1.bf16.msra.mxu0 0
      %936 = vmatprep.subr.bf16.mxu0 0
      %937 = vmatpush1.bf16.msra.mxu0 0
      %938 = vmatprep.subr.bf16.mxu0 0
      %939 = vmatpush1.bf16.msra.mxu0 0
      %940 = vmatprep.subr.bf16.mxu0 0
      %941 = vmatpush1.bf16.msra.mxu0 0
      %942 = vmatprep.subr.bf16.mxu0 0
      %943 = vmatpush1.bf16.msra.mxu0 0
      %944 = vmatprep.subr.bf16.mxu0 0
      %945 = vmatpush1.bf16.msra.mxu0 0
      %946 = vmatprep.subr.bf16.mxu0 0
      %947 = vmatpush1.bf16.msra.mxu0 0
      %948 = vmatprep.subr.bf16.mxu0 0
      %949 = vmatpush1.bf16.msra.mxu0 0
      %950 = vmatprep.subr.bf16.mxu0 0
      %951 = vmatpush1.bf16.msra.mxu0 0
      %952 = vmatprep.subr.bf16.mxu0 0
      %953 = vmatpush1.bf16.msra.mxu0 0
      %954 = vmatprep.subr.bf16.mxu0 0
      %955 = vmatpush1.bf16.msra.mxu0 0
      %956 = vmatprep.subr.bf16.mxu0 0
      %957 = vmatpush1.bf16.msra.mxu0 0
      %958 = vmatprep.subr.bf16.mxu0 0
      %959 = vmatpush1.bf16.msra.mxu0 0
      %960 = vmatprep.mubr.bf16.mxu0 0
      %961 = vmatmul.mubr.bf16.gmra.mrb[0].mxu0 %v926
      %v962 = vpop.f32.mrb[0].mxu0
      %v963 = vadd.f32 %v911, %v962
      %v964 = vpop.f32.mrb[0].mxu0
      %v965 = vpop.f32.mrb[0].mxu0
      %v966 = vpop.f32.mrb[0].mxu0
      %967 = vdwg.mxu0
      %v968 = vpack.c.bf16 %v866, %v866
      %v969 = vpack.c.bf16 %v963, %v963
      %971 = vrot.lane.b32.xlu0 %v968, 96
      %v972 = vpop.permute.xlu0 %971
      %vm973 = vcmask 64512
      %v975 = vsel %vm973, %v968, 0
      %v978 = vsel %vm973, %v972, 0
      %980 = vmatprep.subr.bf16.mxu0 0
      %981 = vmatpush1.bf16.xpose.msra.mxu0 %v978
      %982 = vmatprep.subr.bf16.mxu0 0
      %983 = vmatpush1.bf16.xpose.msra.mxu0 0
      %984 = vmatprep.subr.bf16.mxu0 0
      %985 = vmatpush1.bf16.xpose.msra.mxu0 0
      %986 = vmatprep.subr.bf16.mxu0 0
      %987 = vmatpush1.bf16.xpose.msra.mxu0 0
      %988 = vmatprep.subr.bf16.mxu0 0
      %989 = vmatpush1.bf16.xpose.msra.mxu0 0
      %990 = vmatprep.subr.bf16.mxu0 0
      %991 = vmatpush1.bf16.xpose.msra.mxu0 0
      %992 = vmatprep.subr.bf16.mxu0 0
      %993 = vmatpush1.bf16.xpose.msra.mxu0 0
      %994 = vmatprep.subr.bf16.mxu0 0
      %995 = vmatpush1.bf16.xpose.msra.mxu0 0
      %996 = vmatprep.subr.bf16.mxu0 0
      %997 = vmatpush1.bf16.xpose.msra.mxu0 0
      %998 = vmatprep.subr.bf16.mxu0 0
      %999 = vmatpush1.bf16.xpose.msra.mxu0 0
      %1000 = vmatprep.subr.bf16.mxu0 0
      %1001 = vmatpush1.bf16.xpose.msra.mxu0 0
      %1002 = vmatprep.subr.bf16.mxu0 0
      %1003 = vmatpush1.bf16.xpose.msra.mxu0 0
      %1004 = vmatprep.subr.bf16.mxu0 0
      %1005 = vmatpush1.bf16.xpose.msra.mxu0 0
      %1006 = vmatprep.subr.bf16.mxu0 0
      %1007 = vmatpush1.bf16.xpose.msra.mxu0 0
      %1008 = vmatprep.subr.bf16.mxu0 0
      %1009 = vmatpush1.bf16.xpose.msra.mxu0 0
      %1010 = vmatprep.subr.bf16.mxu0 0
      %1011 = vmatpush1.bf16.xpose.msra.mxu0 0
      %1012 = vmatprep.mubr.bf16.mxu0 0
      %1013 = vmatmul.mubr.bf16.gmra.mrb[0].mxu0 %v975
      %v1014 = vpop.f32.mrb[0].mxu0
      %v1015 = vadd.f32 0.0, %v1014
      %v1016 = vpop.f32.mrb[0].mxu0
      %v1017 = vpop.f32.mrb[0].mxu0
      %v1018 = vpop.f32.mrb[0].mxu0
      %1019 = vdwg.mxu0
      %v1020 = vsel %vm973, %v1015, -inf
      %1021 = vmax.xlane.f32.xlu0 %v1020
      %v1022 = vpop.xlane.xlu0 %1021
      %v1023 = vsub.f32 %v1015, %v1022
      %v1024 = vmul.f32 %v1023, 1.442695
      %v1025 = vpow.pop %v1024
      %v1026 = vsel %vm973, %v1025, 0.0
      %1027 = vadd.xlane.f32.xlu0 %v1026
      %v1028 = vpop.xlane.xlu0 %1027
      %v1029 = vrcp.pop %v1028
      %v1030 = vmul.f32 %v1025, %v1029
      %v1031 = vpack.c.bf16 %v1030, %v1030
      %v1033 = vsel %vm973, %v1031, 0
      %vm1035 = vcmask 1043456
      %v1037 = vsel %vm1035, %v969, 0
      %1039 = vmatprep.subr.bf16.mxu0 0
      %1040 = vmatpush1.bf16.msra.mxu0 %v1037
      %1041 = vmatprep.subr.bf16.mxu0 0
      %1042 = vmatpush1.bf16.msra.mxu0 0
      %1043 = vmatprep.subr.bf16.mxu0 0
      %1044 = vmatpush1.bf16.msra.mxu0 0
      %1045 = vmatprep.subr.bf16.mxu0 0
      %1046 = vmatpush1.bf16.msra.mxu0 0
      %1047 = vmatprep.subr.bf16.mxu0 0
      %1048 = vmatpush1.bf16.msra.mxu0 0
      %1049 = vmatprep.subr.bf16.mxu0 0
      %1050 = vmatpush1.bf16.msra.mxu0 0
      %1051 = vmatprep.subr.bf16.mxu0 0
      %1052 = vmatpush1.bf16.msra.mxu0 0
      %1053 = vmatprep.subr.bf16.mxu0 0
      %1054 = vmatpush1.bf16.msra.mxu0 0
      %1055 = vmatprep.subr.bf16.mxu0 0
      %1056 = vmatpush1.bf16.msra.mxu0 0
      %1057 = vmatprep.subr.bf16.mxu0 0
      %1058 = vmatpush1.bf16.msra.mxu0 0
      %1059 = vmatprep.subr.bf16.mxu0 0
      %1060 = vmatpush1.bf16.msra.mxu0 0
      %1061 = vmatprep.subr.bf16.mxu0 0
      %1062 = vmatpush1.bf16.msra.mxu0 0
      %1063 = vmatprep.subr.bf16.mxu0 0
      %1064 = vmatpush1.bf16.msra.mxu0 0
      %1065 = vmatprep.subr.bf16.mxu0 0
      %1066 = vmatpush1.bf16.msra.mxu0 0
      %1067 = vmatprep.subr.bf16.mxu0 0
      %1068 = vmatpush1.bf16.msra.mxu0 0
      %1069 = vmatprep.subr.bf16.mxu0 0
      %1070 = vmatpush1.bf16.msra.mxu0 0
      %1071 = vmatprep.mubr.bf16.mxu0 0
      %1072 = vmatmul.mubr.bf16.gmra.mrb[0].mxu0 %v1033
      %v1073 = vpop.f32.mrb[0].mxu0
      %v1074 = vadd.f32 0.0, %v1073
      %v1075 = vpop.f32.mrb[0].mxu0
      %v1076 = vpop.f32.mrb[0].mxu0
      %v1077 = vpop.f32.mrb[0].mxu0
      %1078 = vdwg.mxu0
      %1079 = vst.msk [vmem:[#allocation2] sm:$0xff] %vm973, %v1074
      %1080 = vrot.lane.b32.xlu0 %v968, 120
      %v1081 = vpop.permute.xlu0 %1080
      %1082 = vrot.lane.b32.xlu0 %v968, 88
      %v1083 = vpop.permute.xlu0 %1082
      %v1085 = vsel %vm973, %v1081, 0
      %v1088 = vsel %vm973, %v1083, 0
      %1090 = vmatprep.subr.bf16.mxu0 0
      %1091 = vmatpush1.bf16.xpose.msra.mxu0 %v1088
      %1092 = vmatprep.subr.bf16.mxu0 0
      %1093 = vmatpush1.bf16.xpose.msra.mxu0 0
      %1094 = vmatprep.subr.bf16.mxu0 0
      %1095 = vmatpush1.bf16.xpose.msra.mxu0 0
      %1096 = vmatprep.subr.bf16.mxu0 0
      %1097 = vmatpush1.bf16.xpose.msra.mxu0 0
      %1098 = vmatprep.subr.bf16.mxu0 0
      %1099 = vmatpush1.bf16.xpose.msra.mxu0 0
      %1100 = vmatprep.subr.bf16.mxu0 0
      %1101 = vmatpush1.bf16.xpose.msra.mxu0 0
      %1102 = vmatprep.subr.bf16.mxu0 0
      %1103 = vmatpush1.bf16.xpose.msra.mxu0 0
      %1104 = vmatprep.subr.bf16.mxu0 0
      %1105 = vmatpush1.bf16.xpose.msra.mxu0 0
      %1106 = vmatprep.subr.bf16.mxu0 0
      %1107 = vmatpush1.bf16.xpose.msra.mxu0 0
      %1108 = vmatprep.subr.bf16.mxu0 0
      %1109 = vmatpush1.bf16.xpose.msra.mxu0 0
      %1110 = vmatprep.subr.bf16.mxu0 0
      %1111 = vmatpush1.bf16.xpose.msra.mxu0 0
      %1112 = vmatprep.subr.bf16.mxu0 0
      %1113 = vmatpush1.bf16.xpose.msra.mxu0 0
      %1114 = vmatprep.subr.bf16.mxu0 0
      %1115 = vmatpush1.bf16.xpose.msra.mxu0 0
      %1116 = vmatprep.subr.bf16.mxu0 0
      %1117 = vmatpush1.bf16.xpose.msra.mxu0 0
      %1118 = vmatprep.subr.bf16.mxu0 0
      %1119 = vmatpush1.bf16.xpose.msra.mxu0 0
      %1120 = vmatprep.subr.bf16.mxu0 0
      %1121 = vmatpush1.bf16.xpose.msra.mxu0 0
      %1122 = vmatprep.mubr.bf16.mxu0 0
      %1123 = vmatmul.mubr.bf16.gmra.mrb[0].mxu0 %v1085
      %v1124 = vpop.f32.mrb[0].mxu0
      %v1125 = vadd.f32 0.0, %v1124
      %v1126 = vpop.f32.mrb[0].mxu0
      %v1127 = vpop.f32.mrb[0].mxu0
      %v1128 = vpop.f32.mrb[0].mxu0
      %1129 = vdwg.mxu0
      %v1130 = vsel %vm973, %v1125, -inf
      %1131 = vmax.xlane.f32.xlu0 %v1130
      %v1132 = vpop.xlane.xlu0 %1131
      %v1133 = vsub.f32 %v1125, %v1132
      %v1134 = vmul.f32 %v1133, 1.442695
      %v1135 = vpow.pop %v1134
      %v1136 = vsel %vm973, %v1135, 0.0
      %1137 = vadd.xlane.f32.xlu0 %v1136
      %v1138 = vpop.xlane.xlu0 %1137
      %v1139 = vrcp.pop %v1138
      %v1140 = vmul.f32 %v1135, %v1139
      %v1141 = vpack.c.bf16 %v1140, %v1140
      %1143 = vrot.lane.b32.xlu0 %v969, 120
      %v1144 = vpop.permute.xlu0 %1143
      %v1146 = vsel %vm973, %v1141, 0
      %v1149 = vsel %vm1035, %v1144, 0
      %1151 = vmatprep.subr.bf16.mxu0 0
      %1152 = vmatpush1.bf16.msra.mxu0 %v1149
      %1153 = vmatprep.subr.bf16.mxu0 0
      %1154 = vmatpush1.bf16.msra.mxu0 0
      %1155 = vmatprep.subr.bf16.mxu0 0
      %1156 = vmatpush1.bf16.msra.mxu0 0
      %1157 = vmatprep.subr.bf16.mxu0 0
      %1158 = vmatpush1.bf16.msra.mxu0 0
      %1159 = vmatprep.subr.bf16.mxu0 0
      %1160 = vmatpush1.bf16.msra.mxu0 0
      %1161 = vmatprep.subr.bf16.mxu0 0
      %1162 = vmatpush1.bf16.msra.mxu0 0
      %1163 = vmatprep.subr.bf16.mxu0 0
      %1164 = vmatpush1.bf16.msra.mxu0 0
      %1165 = vmatprep.subr.bf16.mxu0 0
      %1166 = vmatpush1.bf16.msra.mxu0 0
      %1167 = vmatprep.subr.bf16.mxu0 0
      %1168 = vmatpush1.bf16.msra.mxu0 0
      %1169 = vmatprep.subr.bf16.mxu0 0
      %1170 = vmatpush1.bf16.msra.mxu0 0
      %1171 = vmatprep.subr.bf16.mxu0 0
      %1172 = vmatpush1.bf16.msra.mxu0 0
      %1173 = vmatprep.subr.bf16.mxu0 0
      %1174 = vmatpush1.bf16.msra.mxu0 0
      %1175 = vmatprep.subr.bf16.mxu0 0
      %1176 = vmatpush1.bf16.msra.mxu0 0
      %1177 = vmatprep.subr.bf16.mxu0 0
      %1178 = vmatpush1.bf16.msra.mxu0 0
      %1179 = vmatprep.subr.bf16.mxu0 0
      %1180 = vmatpush1.bf16.msra.mxu0 0
      %1181 = vmatprep.subr.bf16.mxu0 0
      %1182 = vmatpush1.bf16.msra.mxu0 0
      %1183 = vmatprep.mubr.bf16.mxu0 0
      %1184 = vmatmul.mubr.bf16.gmra.mrb[0].mxu0 %v1146
      %v1185 = vpop.f32.mrb[0].mxu0
      %v1186 = vadd.f32 0.0, %v1185
      %v1187 = vpop.f32.mrb[0].mxu0
      %v1188 = vpop.f32.mrb[0].mxu0
      %v1189 = vpop.f32.mrb[0].mxu0
      %1190 = vdwg.mxu0
      %1192 = vrot.lane.b32.xlu0 %v1186, 8
      %v1193 = vpop.permute.xlu0 %1192
      %vm1195 = vcmask 130112
      %1196 = vst.msk [vmem:[#allocation2] sm:$0xff] %vm1195, %v1193
      %1197 = vrot.lane.b32.xlu0 %v968, 112
      %v1198 = vpop.permute.xlu0 %1197
      %1199 = vrot.lane.b32.xlu0 %v968, 80
      %v1200 = vpop.permute.xlu0 %1199
      %v1202 = vsel %vm973, %v1198, 0
      %v1205 = vsel %vm973, %v1200, 0
      %1207 = vmatprep.subr.bf16.mxu0 0
      %1208 = vmatpush1.bf16.xpose.msra.mxu0 %v1205
      %1209 = vmatprep.subr.bf16.mxu0 0
      %1210 = vmatpush1.bf16.xpose.msra.mxu0 0
      %1211 = vmatprep.subr.bf16.mxu0 0
      %1212 = vmatpush1.bf16.xpose.msra.mxu0 0
      %1213 = vmatprep.subr.bf16.mxu0 0
      %1214 = vmatpush1.bf16.xpose.msra.mxu0 0
      %1215 = vmatprep.subr.bf16.mxu0 0
      %1216 = vmatpush1.bf16.xpose.msra.mxu0 0
      %1217 = vmatprep.subr.bf16.mxu0 0
      %1218 = vmatpush1.bf16.xpose.msra.mxu0 0
      %1219 = vmatprep.subr.bf16.mxu0 0
      %1220 = vmatpush1.bf16.xpose.msra.mxu0 0
      %1221 = vmatprep.subr.bf16.mxu0 0
      %1222 = vmatpush1.bf16.xpose.msra.mxu0 0
      %1223 = vmatprep.subr.bf16.mxu0 0
      %1224 = vmatpush1.bf16.xpose.msra.mxu0 0
      %1225 = vmatprep.subr.bf16.mxu0 0
      %1226 = vmatpush1.bf16.xpose.msra.mxu0 0
      %1227 = vmatprep.subr.bf16.mxu0 0
      %1228 = vmatpush1.bf16.xpose.msra.mxu0 0
      %1229 = vmatprep.subr.bf16.mxu0 0
      %1230 = vmatpush1.bf16.xpose.msra.mxu0 0
      %1231 = vmatprep.subr.bf16.mxu0 0
      %1232 = vmatpush1.bf16.xpose.msra.mxu0 0
      %1233 = vmatprep.subr.bf16.mxu0 0
      %1234 = vmatpush1.bf16.xpose.msra.mxu0 0
      %1235 = vmatprep.subr.bf16.mxu0 0
      %1236 = vmatpush1.bf16.xpose.msra.mxu0 0
      %1237 = vmatprep.subr.bf16.mxu0 0
      %1238 = vmatpush1.bf16.xpose.msra.mxu0 0
      %1239 = vmatprep.mubr.bf16.mxu0 0
      %1240 = vmatmul.mubr.bf16.gmra.mrb[0].mxu0 %v1202
      %v1241 = vpop.f32.mrb[0].mxu0
      %v1242 = vadd.f32 0.0, %v1241
      %v1243 = vpop.f32.mrb[0].mxu0
      %v1244 = vpop.f32.mrb[0].mxu0
      %v1245 = vpop.f32.mrb[0].mxu0
      %1246 = vdwg.mxu0
      %v1247 = vsel %vm973, %v1242, -inf
      %1248 = vmax.xlane.f32.xlu0 %v1247
      %v1249 = vpop.xlane.xlu0 %1248
      %v1250 = vsub.f32 %v1242, %v1249
      %v1251 = vmul.f32 %v1250, 1.442695
      %v1252 = vpow.pop %v1251
      %v1253 = vsel %vm973, %v1252, 0.0
      %1254 = vadd.xlane.f32.xlu0 %v1253
      %v1255 = vpop.xlane.xlu0 %1254
      %v1256 = vrcp.pop %v1255
      %v1257 = vmul.f32 %v1252, %v1256
      %v1258 = vpack.c.bf16 %v1257, %v1257
      %1259 = vrot.lane.b32.xlu0 %v969, 112
      %v1260 = vpop.permute.xlu0 %1259
      %v1262 = vsel %vm973, %v1258, 0
      %v1265 = vsel %vm1035, %v1260, 0
      %1267 = vmatprep.subr.bf16.mxu0 0
      %1268 = vmatpush1.bf16.msra.mxu0 %v1265
      %1269 = vmatprep.subr.bf16.mxu0 0
      %1270 = vmatpush1.bf16.msra.mxu0 0
      %1271 = vmatprep.subr.bf16.mxu0 0
      %1272 = vmatpush1.bf16.msra.mxu0 0
      %1273 = vmatprep.subr.bf16.mxu0 0
      %1274 = vmatpush1.bf16.msra.mxu0 0
      %1275 = vmatprep.subr.bf16.mxu0 0
      %1276 = vmatpush1.bf16.msra.mxu0 0
      %1277 = vmatprep.subr.bf16.mxu0 0
      %1278 = vmatpush1.bf16.msra.mxu0 0
      %1279 = vmatprep.subr.bf16.mxu0 0
      %1280 = vmatpush1.bf16.msra.mxu0 0
      %1281 = vmatprep.subr.bf16.mxu0 0
      %1282 = vmatpush1.bf16.msra.mxu0 0
      %1283 = vmatprep.subr.bf16.mxu0 0
      %1284 = vmatpush1.bf16.msra.mxu0 0
      %1285 = vmatprep.subr.bf16.mxu0 0
      %1286 = vmatpush1.bf16.msra.mxu0 0
      %1287 = vmatprep.subr.bf16.mxu0 0
      %1288 = vmatpush1.bf16.msra.mxu0 0
      %1289 = vmatprep.subr.bf16.mxu0 0
      %1290 = vmatpush1.bf16.msra.mxu0 0
      %1291 = vmatprep.subr.bf16.mxu0 0
      %1292 = vmatpush1.bf16.msra.mxu0 0
      %1293 = vmatprep.subr.bf16.mxu0 0
      %1294 = vmatpush1.bf16.msra.mxu0 0
      %1295 = vmatprep.subr.bf16.mxu0 0
      %1296 = vmatpush1.bf16.msra.mxu0 0
      %1297 = vmatprep.subr.bf16.mxu0 0
      %1298 = vmatpush1.bf16.msra.mxu0 0
      %1299 = vmatprep.mubr.bf16.mxu0 0
      %1300 = vmatmul.mubr.bf16.gmra.mrb[0].mxu0 %v1262
      %v1301 = vpop.f32.mrb[0].mxu0
      %v1302 = vadd.f32 0.0, %v1301
      %v1303 = vpop.f32.mrb[0].mxu0
      %v1304 = vpop.f32.mrb[0].mxu0
      %v1305 = vpop.f32.mrb[0].mxu0
      %1306 = vdwg.mxu0
      %1308 = vrot.lane.b32.xlu0 %v1302, 16
      %v1309 = vpop.permute.xlu0 %1308
      %vm1311 = vcmask 195712
      %1312 = vst.msk [vmem:[#allocation2] sm:$0xff] %vm1311, %v1309
      %1313 = vrot.lane.b32.xlu0 %v968, 104
      %v1314 = vpop.permute.xlu0 %1313
      %1315 = vrot.lane.b32.xlu0 %v968, 72
      %v1316 = vpop.permute.xlu0 %1315
      %v1318 = vsel %vm973, %v1314, 0
      %v1321 = vsel %vm973, %v1316, 0
      %1323 = vmatprep.subr.bf16.mxu0 0
      %1324 = vmatpush1.bf16.xpose.msra.mxu0 %v1321
      %1325 = vmatprep.subr.bf16.mxu0 0
      %1326 = vmatpush1.bf16.xpose.msra.mxu0 0
      %1327 = vmatprep.subr.bf16.mxu0 0
      %1328 = vmatpush1.bf16.xpose.msra.mxu0 0
      %1329 = vmatprep.subr.bf16.mxu0 0
      %1330 = vmatpush1.bf16.xpose.msra.mxu0 0
      %1331 = vmatprep.subr.bf16.mxu0 0
      %1332 = vmatpush1.bf16.xpose.msra.mxu0 0
      %1333 = vmatprep.subr.bf16.mxu0 0
      %1334 = vmatpush1.bf16.xpose.msra.mxu0 0
      %1335 = vmatprep.subr.bf16.mxu0 0
      %1336 = vmatpush1.bf16.xpose.msra.mxu0 0
      %1337 = vmatprep.subr.bf16.mxu0 0
      %1338 = vmatpush1.bf16.xpose.msra.mxu0 0
      %1339 = vmatprep.subr.bf16.mxu0 0
      %1340 = vmatpush1.bf16.xpose.msra.mxu0 0
      %1341 = vmatprep.subr.bf16.mxu0 0
      %1342 = vmatpush1.bf16.xpose.msra.mxu0 0
      %1343 = vmatprep.subr.bf16.mxu0 0
      %1344 = vmatpush1.bf16.xpose.msra.mxu0 0
      %1345 = vmatprep.subr.bf16.mxu0 0
      %1346 = vmatpush1.bf16.xpose.msra.mxu0 0
      %1347 = vmatprep.subr.bf16.mxu0 0
      %1348 = vmatpush1.bf16.xpose.msra.mxu0 0
      %1349 = vmatprep.subr.bf16.mxu0 0
      %1350 = vmatpush1.bf16.xpose.msra.mxu0 0
      %1351 = vmatprep.subr.bf16.mxu0 0
      %1352 = vmatpush1.bf16.xpose.msra.mxu0 0
      %1353 = vmatprep.subr.bf16.mxu0 0
      %1354 = vmatpush1.bf16.xpose.msra.mxu0 0
      %1355 = vmatprep.mubr.bf16.mxu0 0
      %1356 = vmatmul.mubr.bf16.gmra.mrb[0].mxu0 %v1318
      %v1357 = vpop.f32.mrb[0].mxu0
      %v1358 = vadd.f32 0.0, %v1357
      %v1359 = vpop.f32.mrb[0].mxu0
      %v1360 = vpop.f32.mrb[0].mxu0
      %v1361 = vpop.f32.mrb[0].mxu0
      %1362 = vdwg.mxu0
      %v1363 = vsel %vm973, %v1358, -inf
      %1364 = vmax.xlane.f32.xlu0 %v1363
      %v1365 = vpop.xlane.xlu0 %1364
      %v1366 = vsub.f32 %v1358, %v1365
      %v1367 = vmul.f32 %v1366, 1.442695
      %v1368 = vpow.pop %v1367
      %v1369 = vsel %vm973, %v1368, 0.0
      %1370 = vadd.xlane.f32.xlu0 %v1369
      %v1371 = vpop.xlane.xlu0 %1370
      %v1372 = vrcp.pop %v1371
      %v1373 = vmul.f32 %v1368, %v1372
      %v1374 = vpack.c.bf16 %v1373, %v1373
      %1375 = vrot.lane.b32.xlu0 %v969, 104
      %v1376 = vpop.permute.xlu0 %1375
      %v1378 = vsel %vm973, %v1374, 0
      %v1381 = vsel %vm1035, %v1376, 0
      %1383 = vmatprep.subr.bf16.mxu0 0
      %1384 = vmatpush1.bf16.msra.mxu0 %v1381
      %1385 = vmatprep.subr.bf16.mxu0 0
      %1386 = vmatpush1.bf16.msra.mxu0 0
      %1387 = vmatprep.subr.bf16.mxu0 0
      %1388 = vmatpush1.bf16.msra.mxu0 0
      %1389 = vmatprep.subr.bf16.mxu0 0
      %1390 = vmatpush1.bf16.msra.mxu0 0
      %1391 = vmatprep.subr.bf16.mxu0 0
      %1392 = vmatpush1.bf16.msra.mxu0 0
      %1393 = vmatprep.subr.bf16.mxu0 0
      %1394 = vmatpush1.bf16.msra.mxu0 0
      %1395 = vmatprep.subr.bf16.mxu0 0
      %1396 = vmatpush1.bf16.msra.mxu0 0
      %1397 = vmatprep.subr.bf16.mxu0 0
      %1398 = vmatpush1.bf16.msra.mxu0 0
      %1399 = vmatprep.subr.bf16.mxu0 0
      %1400 = vmatpush1.bf16.msra.mxu0 0
      %1401 = vmatprep.subr.bf16.mxu0 0
      %1402 = vmatpush1.bf16.msra.mxu0 0
      %1403 = vmatprep.subr.bf16.mxu0 0
      %1404 = vmatpush1.bf16.msra.mxu0 0
      %1405 = vmatprep.subr.bf16.mxu0 0
      %1406 = vmatpush1.bf16.msra.mxu0 0
      %1407 = vmatprep.subr.bf16.mxu0 0
      %1408 = vmatpush1.bf16.msra.mxu0 0
      %1409 = vmatprep.subr.bf16.mxu0 0
      %1410 = vmatpush1.bf16.msra.mxu0 0
      %1411 = vmatprep.subr.bf16.mxu0 0
      %1412 = vmatpush1.bf16.msra.mxu0 0
      %1413 = vmatprep.subr.bf16.mxu0 0
      %1414 = vmatpush1.bf16.msra.mxu0 0
      %1415 = vmatprep.mubr.bf16.mxu0 0
      %1416 = vmatmul.mubr.bf16.gmra.mrb[0].mxu0 %v1378
      %v1417 = vpop.f32.mrb[0].mxu0
      %v1418 = vadd.f32 0.0, %v1417
      %v1419 = vpop.f32.mrb[0].mxu0
      %v1420 = vpop.f32.mrb[0].mxu0
      %v1421 = vpop.f32.mrb[0].mxu0
      %1422 = vdwg.mxu0
      %1424 = vrot.lane.b32.xlu0 %v1418, 24
      %v1425 = vpop.permute.xlu0 %1424
      %vm1427 = vcmask 261312
      %1428 = vst.msk [vmem:[#allocation2] sm:$0xff] %vm1427, %v1425
      %v1429 = vld [vmem:[#allocation2] sm:$0xff]
      %v1430 = vpack.c.bf16 %v1429, %v1429
      %v1431 = vld [vmem:[%s7] sm:$0xf]
      %v1432 = vld [vmem:[%s7 + $0x4] sm:$0xf]
      %v1433 = vld [vmem:[%s7 + $0x8] sm:$0xf]
      %v1434 = vld [vmem:[%s7 + $0xc] sm:$0xf]
      %v1435 = vld [vmem:[%s8] sm:$0x1]
      %v1437 = vlaneseq
      %v1438 = vshrl.u32 %v1437, 7
      %v1439 = vsub.s32 0, %v1438
      %v1440 = vrot.slane %v1435, %v1439
      %v1446 = vunpack.c.l.b16 %v1431
      %v1447 = vunpack.c.l.b16 %v1432
      %v1448 = vunpack.c.l.b16 %v1433
      %v1449 = vunpack.c.l.b16 %v1434
      %v1450 = vpack.c.b16 %v1447, %v1446
      %v1451 = vpack.c.b16 %v1449, %v1448
      %v1455 = vsel %vm827, %v1430, 0
      %1457 = vmatprep.subr.bf16.mxu0 0
      %1458 = vmatpush1.bf16.msra.mxu0 %v1450
      %1459 = vmatprep.subr.bf16.mxu0 0
      %1460 = vmatpush1.bf16.msra.mxu0 %v1451
      %1461 = vmatprep.subr.bf16.mxu0 0
      %1462 = vmatpush1.bf16.msra.mxu0 0
      %1463 = vmatprep.subr.bf16.mxu0 0
      %1464 = vmatpush1.bf16.msra.mxu0 0
      %1465 = vmatprep.subr.bf16.mxu0 0
      %1466 = vmatpush1.bf16.msra.mxu0 0
      %1467 = vmatprep.subr.bf16.mxu0 0
      %1468 = vmatpush1.bf16.msra.mxu0 0
      %1469 = vmatprep.subr.bf16.mxu0 0
      %1470 = vmatpush1.bf16.msra.mxu0 0
      %1471 = vmatprep.subr.bf16.mxu0 0
      %1472 = vmatpush1.bf16.msra.mxu0 0
      %1473 = vmatprep.subr.bf16.mxu0 0
      %1474 = vmatpush1.bf16.msra.mxu0 0
      %1475 = vmatprep.subr.bf16.mxu0 0
      %1476 = vmatpush1.bf16.msra.mxu0 0
      %1477 = vmatprep.subr.bf16.mxu0 0
      %1478 = vmatpush1.bf16.msra.mxu0 0
      %1479 = vmatprep.subr.bf16.mxu0 0
      %1480 = vmatpush1.bf16.msra.mxu0 0
      %1481 = vmatprep.subr.bf16.mxu0 0
      %1482 = vmatpush1.bf16.msra.mxu0 0
      %1483 = vmatprep.subr.bf16.mxu0 0
      %1484 = vmatpush1.bf16.msra.mxu0 0
      %1485 = vmatprep.subr.bf16.mxu0 0
      %1486 = vmatpush1.bf16.msra.mxu0 0
      %1487 = vmatprep.subr.bf16.mxu0 0
      %1488 = vmatpush1.bf16.msra.mxu0 0
      %1489 = vmatprep.mubr.bf16.mxu0 0
      %1490 = vmatmul.mubr.bf16.gmra.mrb[0].mxu0 %v1455
      %v1491 = vpop.f32.mrb[0].mxu0
      %v1492 = vadd.f32 %v1440, %v1491
      %v1493 = vpop.f32.mrb[0].mxu0
      %v1494 = vpop.f32.mrb[0].mxu0
      %v1495 = vpop.f32.mrb[0].mxu0
      %1496 = vdwg.mxu0
      %v1497 = vadd.f32 %v798, %v1492
      %v1498 = vld [vmem:[%s21] sm:$0x1]
      %v1499 = vld [vmem:[%s22] sm:$0x1]
      %v1500 = vsel %vm827, %v1497, 0.0
      %1501 = vadd.xlane.f32.xlu0 %v1500
      %v1502 = vpop.xlane.xlu0 %1501
      %v1503 = vmul.f32 %v1502, %v876
      %v1504 = vsub.f32 %v1497, %v1503
      %v1505 = vmul.f32 %v1504, %v1504
      %v1506 = vsel %vm827, %v1505, 0.0
      %1507 = vadd.xlane.f32.xlu0 %v1506
      %v1508 = vpop.xlane.xlu0 %1507
      %v1509 = vmul.f32 %v1508, %v876
      %v1510 = vadd.f32 %v1509, 1e-05
      %v1511 = vrsqrt.pop %v1510
      %v1512 = vmul.f32 %v1504, %v1511
      %v1514 = vlaneseq
      %v1515 = vshrl.u32 %v1514, 7
      %v1516 = vsub.s32 0, %v1515
      %v1517 = vrot.slane %v1498, %v1516
      %v1519 = vmul.f32 %v1512, %v1517
      %v1521 = vlaneseq
      %v1522 = vshrl.u32 %v1521, 7
      %v1523 = vsub.s32 0, %v1522
      %v1524 = vrot.slane %v1499, %v1523
      %v1526 = vadd.f32 %v1519, %v1524
      %v1527 = vadd.f32 %v1526, %v801
      %v1528 = vpack.c.bf16 %v1527, %v1527
      %v1529 = vld [vmem:[%s9] sm:$0xf]
      %v1530 = vld [vmem:[%s9 + $0x4] sm:$0xf]
      %v1531 = vld [vmem:[%s9 + $0x8] sm:$0xf]
      %v1532 = vld [vmem:[%s9 + $0xc] sm:$0xf]
      %v1533 = vld [vmem:[%s10] sm:$0x1]
      %v1535 = vlaneseq
      %v1536 = vshrl.u32 %v1535, 7
      %v1537 = vsub.s32 0, %v1536
      %v1538 = vrot.slane %v1533, %v1537
      %v1544 = vunpack.c.l.b16 %v1529
      %v1545 = vunpack.c.l.b16 %v1530
      %v1546 = vunpack.c.l.b16 %v1531
      %v1547 = vunpack.c.l.b16 %v1532
      %v1548 = vpack.c.b16 %v1545, %v1544
      %v1549 = vpack.c.b16 %v1547, %v1546
      %v1553 = vsel %vm827, %v1528, 0
      %1555 = vmatprep.subr.bf16.mxu0 0
      %1556 = vmatpush1.bf16.msra.mxu0 %v1548
      %1557 = vmatprep.subr.bf16.mxu0 0
      %1558 = vmatpush1.bf16.msra.mxu0 %v1549
      %1559 = vmatprep.subr.bf16.mxu0 0
      %1560 = vmatpush1.bf16.msra.mxu0 0
      %1561 = vmatprep.subr.bf16.mxu0 0
      %1562 = vmatpush1.bf16.msra.mxu0 0
      %1563 = vmatprep.subr.bf16.mxu0 0
      %1564 = vmatpush1.bf16.msra.mxu0 0
      %1565 = vmatprep.subr.bf16.mxu0 0
      %1566 = vmatpush1.bf16.msra.mxu0 0
      %1567 = vmatprep.subr.bf16.mxu0 0
      %1568 = vmatpush1.bf16.msra.mxu0 0
      %1569 = vmatprep.subr.bf16.mxu0 0
      %1570 = vmatpush1.bf16.msra.mxu0 0
      %1571 = vmatprep.subr.bf16.mxu0 0
      %1572 = vmatpush1.bf16.msra.mxu0 0
      %1573 = vmatprep.subr.bf16.mxu0 0
      %1574 = vmatpush1.bf16.msra.mxu0 0
      %1575 = vmatprep.subr.bf16.mxu0 0
      %1576 = vmatpush1.bf16.msra.mxu0 0
      %1577 = vmatprep.subr.bf16.mxu0 0
      %1578 = vmatpush1.bf16.msra.mxu0 0
      %1579 = vmatprep.subr.bf16.mxu0 0
      %1580 = vmatpush1.bf16.msra.mxu0 0
      %1581 = vmatprep.subr.bf16.mxu0 0
      %1582 = vmatpush1.bf16.msra.mxu0 0
      %1583 = vmatprep.subr.bf16.mxu0 0
      %1584 = vmatpush1.bf16.msra.mxu0 0
      %1585 = vmatprep.subr.bf16.mxu0 0
      %1586 = vmatpush1.bf16.msra.mxu0 0
      %1587 = vmatprep.mubr.bf16.mxu0 0
      %1588 = vmatmul.mubr.bf16.gmra.mrb[0].mxu0 %v1553
      %v1589 = vpop.f32.mrb[0].mxu0
      %v1590 = vadd.f32 %v1538, %v1589
      %v1591 = vpop.f32.mrb[0].mxu0
      %v1592 = vpop.f32.mrb[0].mxu0
      %v1593 = vpop.f32.mrb[0].mxu0
      %1594 = vdwg.mxu0
      %v1595 = vpack.c.bf16 %v800, %v799
      %v1596 = vld [vmem:[%s11] sm:$0xf]
      %v1597 = vld [vmem:[%s11 + $0x4] sm:$0xf]
      %v1598 = vld [vmem:[%s11 + $0x8] sm:$0xf]
      %v1599 = vld [vmem:[%s11 + $0xc] sm:$0xf]
      %v1600 = vld [vmem:[%s12] sm:$0x1]
      %v1602 = vlaneseq
      %v1603 = vshrl.u32 %v1602, 7
      %v1604 = vsub.s32 0, %v1603
      %v1605 = vrot.slane %v1600, %v1604
      %v1611 = vunpack.c.l.b16 %v1596
      %v1612 = vunpack.c.l.b16 %v1597
      %v1613 = vunpack.c.l.b16 %v1598
      %v1614 = vunpack.c.l.b16 %v1599
      %v1615 = vpack.c.b16 %v1612, %v1611
      %v1616 = vpack.c.b16 %v1614, %v1613
      %v1620 = vsel %vm827, %v1595, 0
      %1622 = vmatprep.subr.bf16.mxu0 0
      %1623 = vmatpush1.bf16.msra.mxu0 %v1615
      %1624 = vmatprep.subr.bf16.mxu0 0
      %1625 = vmatpush1.bf16.msra.mxu0 %v1616
      %1626 = vmatprep.subr.bf16.mxu0 0
      %1627 = vmatpush1.bf16.msra.mxu0 0
      %1628 = vmatprep.subr.bf16.mxu0 0
      %1629 = vmatpush1.bf16.msra.mxu0 0
      %1630 = vmatprep.subr.bf16.mxu0 0
      %1631 = vmatpush1.bf16.msra.mxu0 0
      %1632 = vmatprep.subr.bf16.mxu0 0
      %1633 = vmatpush1.bf16.msra.mxu0 0
      %1634 = vmatprep.subr.bf16.mxu0 0
      %1635 = vmatpush1.bf16.msra.mxu0 0
      %1636 = vmatprep.subr.bf16.mxu0 0
      %1637 = vmatpush1.bf16.msra.mxu0 0
      %1638 = vmatprep.subr.bf16.mxu0 0
      %1639 = vmatpush1.bf16.msra.mxu0 0
      %1640 = vmatprep.subr.bf16.mxu0 0
      %1641 = vmatpush1.bf16.msra.mxu0 0
      %1642 = vmatprep.subr.bf16.mxu0 0
      %1643 = vmatpush1.bf16.msra.mxu0 0
      %1644 = vmatprep.subr.bf16.mxu0 0
      %1645 = vmatpush1.bf16.msra.mxu0 0
      %1646 = vmatprep.subr.bf16.mxu0 0
      %1647 = vmatpush1.bf16.msra.mxu0 0
      %1648 = vmatprep.subr.bf16.mxu0 0
      %1649 = vmatpush1.bf16.msra.mxu0 0
      %1650 = vmatprep.subr.bf16.mxu0 0
      %1651 = vmatpush1.bf16.msra.mxu0 0
      %1652 = vmatprep.subr.bf16.mxu0 0
      %1653 = vmatpush1.bf16.msra.mxu0 0
      %1654 = vmatprep.mubr.bf16.mxu0 0
      %1655 = vmatmul.mubr.bf16.gmra.mrb[0].mxu0 %v1620
      %v1656 = vpop.f32.mrb[0].mxu0
      %v1657 = vadd.f32 %v1605, %v1656
      %v1658 = vpop.f32.mrb[0].mxu0
      %v1659 = vpop.f32.mrb[0].mxu0
      %v1660 = vadd.f32 %v1605, %v1659
      %v1661 = vpop.f32.mrb[0].mxu0
      %1662 = vdwg.mxu0
      %v1663 = vpack.c.bf16 %v1590, %v1590
      %v1664 = vpack.c.bf16 %v1660, %v1657
      %v1666 = vsel %vm973, %v1663, 0
      %v1669 = vsel %vm973, %v1664, 0
      %1671 = vmatprep.subr.bf16.mxu0 0
      %1672 = vmatpush1.bf16.xpose.msra.mxu0 %v1669
      %1673 = vmatprep.subr.bf16.mxu0 0
      %1674 = vmatpush1.bf16.xpose.msra.mxu0 0
      %1675 = vmatprep.subr.bf16.mxu0 0
      %1676 = vmatpush1.bf16.xpose.msra.mxu0 0
      %1677 = vmatprep.subr.bf16.mxu0 0
      %1678 = vmatpush1.bf16.xpose.msra.mxu0 0
      %1679 = vmatprep.subr.bf16.mxu0 0
      %1680 = vmatpush1.bf16.xpose.msra.mxu0 0
      %1681 = vmatprep.subr.bf16.mxu0 0
      %1682 = vmatpush1.bf16.xpose.msra.mxu0 0
      %1683 = vmatprep.subr.bf16.mxu0 0
      %1684 = vmatpush1.bf16.xpose.msra.mxu0 0
      %1685 = vmatprep.subr.bf16.mxu0 0
      %1686 = vmatpush1.bf16.xpose.msra.mxu0 0
      %1687 = vmatprep.subr.bf16.mxu0 0
      %1688 = vmatpush1.bf16.xpose.msra.mxu0 0
      %1689 = vmatprep.subr.bf16.mxu0 0
      %1690 = vmatpush1.bf16.xpose.msra.mxu0 0
      %1691 = vmatprep.subr.bf16.mxu0 0
      %1692 = vmatpush1.bf16.xpose.msra.mxu0 0
      %1693 = vmatprep.subr.bf16.mxu0 0
      %1694 = vmatpush1.bf16.xpose.msra.mxu0 0
      %1695 = vmatprep.subr.bf16.mxu0 0
      %1696 = vmatpush1.bf16.xpose.msra.mxu0 0
      %1697 = vmatprep.subr.bf16.mxu0 0
      %1698 = vmatpush1.bf16.xpose.msra.mxu0 0
      %1699 = vmatprep.subr.bf16.mxu0 0
      %1700 = vmatpush1.bf16.xpose.msra.mxu0 0
      %1701 = vmatprep.subr.bf16.mxu0 0
      %1702 = vmatpush1.bf16.xpose.msra.mxu0 0
      %1703 = vmatprep.mubr.bf16.mxu0 0
      %1704 = vmatmul.mubr.bf16.gmra.mrb[0].mxu0 %v1666
      %v1705 = vpop.f32.mrb[0].mxu0
      %v1706 = vadd.f32 0.0, %v1705
      %v1707 = vpop.f32.mrb[0].mxu0
      %v1708 = vpop.f32.mrb[0].mxu0
      %v1709 = vpop.f32.mrb[0].mxu0
      %1710 = vdwg.mxu0
      %vm1711 = vcmask 130048
      %v1712 = vsel %vm1711, %v1706, -inf
      %1713 = vmax.xlane.f32.xlu0 %v1712
      %v1714 = vpop.xlane.xlu0 %1713
      %v1715 = vsub.f32 %v1706, %v1714
      %v1716 = vmul.f32 %v1715, 1.442695
      %v1717 = vpow.pop %v1716
      %v1718 = vsel %vm1711, %v1717, 0.0
      %1719 = vadd.xlane.f32.xlu0 %v1718
      %v1720 = vpop.xlane.xlu0 %1719
      %v1721 = vrcp.pop %v1720
      %v1722 = vmul.f32 %v1717, %v1721
      %v1723 = vpack.c.bf16 %v1722, %v1722
      %1725 = vrot.lane.b32.xlu0 %v1664, 96
      %v1726 = vpop.permute.xlu0 %1725
      %v1729 = vsel %vm1711, %v1723, 0
      %1731 = vmatprep.subr.bf16.mxu0 0
      %1732 = vmatpush1.bf16.msra.mxu0 %v1726
      %1733 = vmatprep.subr.bf16.mxu0 0
      %1734 = vmatpush1.bf16.msra.mxu0 0
      %1735 = vmatprep.subr.bf16.mxu0 0
      %1736 = vmatpush1.bf16.msra.mxu0 0
      %1737 = vmatprep.subr.bf16.mxu0 0
      %1738 = vmatpush1.bf16.msra.mxu0 0
      %1739 = vmatprep.subr.bf16.mxu0 0
      %1740 = vmatpush1.bf16.msra.mxu0 0
      %1741 = vmatprep.subr.bf16.mxu0 0
      %1742 = vmatpush1.bf16.msra.mxu0 0
      %1743 = vmatprep.subr.bf16.mxu0 0
      %1744 = vmatpush1.bf16.msra.mxu0 0
      %1745 = vmatprep.subr.bf16.mxu0 0
      %1746 = vmatpush1.bf16.msra.mxu0 0
      %1747 = vmatprep.subr.bf16.mxu0 0
      %1748 = vmatpush1.bf16.msra.mxu0 0
      %1749 = vmatprep.subr.bf16.mxu0 0
      %1750 = vmatpush1.bf16.msra.mxu0 0
      %1751 = vmatprep.subr.bf16.mxu0 0
      %1752 = vmatpush1.bf16.msra.mxu0 0
      %1753 = vmatprep.subr.bf16.mxu0 0
      %1754 = vmatpush1.bf16.msra.mxu0 0
      %1755 = vmatprep.subr.bf16.mxu0 0
      %1756 = vmatpush1.bf16.msra.mxu0 0
      %1757 = vmatprep.subr.bf16.mxu0 0
      %1758 = vmatpush1.bf16.msra.mxu0 0
      %1759 = vmatprep.subr.bf16.mxu0 0
      %1760 = vmatpush1.bf16.msra.mxu0 0
      %1761 = vmatprep.subr.bf16.mxu0 0
      %1762 = vmatpush1.bf16.msra.mxu0 0
      %1763 = vmatprep.mubr.bf16.mxu0 0
      %1764 = vmatmul.mubr.bf16.gmra.mrb[0].mxu0 %v1729
      %v1765 = vpop.f32.mrb[0].mxu0
      %v1766 = vadd.f32 0.0, %v1765
      %v1767 = vpop.f32.mrb[0].mxu0
      %v1768 = vpop.f32.mrb[0].mxu0
      %v1769 = vpop.f32.mrb[0].mxu0
      %1770 = vdwg.mxu0
      %1771 = vst.msk [vmem:[#allocation2] sm:$0xff] %vm973, %v1766
      %1773 = vrot.lane.b32.xlu0 %v1663, 120
      %v1774 = vpop.permute.xlu0 %1773
      %1775 = vrot.lane.b32.xlu0 %v1664, 120
      %v1776 = vpop.permute.xlu0 %1775
      %v1778 = vsel %vm973, %v1774, 0
      %v1781 = vsel %vm973, %v1776, 0
      %1783 = vmatprep.subr.bf16.mxu0 0
      %1784 = vmatpush1.bf16.xpose.msra.mxu0 %v1781
      %1785 = vmatprep.subr.bf16.mxu0 0
      %1786 = vmatpush1.bf16.xpose.msra.mxu0 0
      %1787 = vmatprep.subr.bf16.mxu0 0
      %1788 = vmatpush1.bf16.xpose.msra.mxu0 0
      %1789 = vmatprep.subr.bf16.mxu0 0
      %1790 = vmatpush1.bf16.xpose.msra.mxu0 0
      %1791 = vmatprep.subr.bf16.mxu0 0
      %1792 = vmatpush1.bf16.xpose.msra.mxu0 0
      %1793 = vmatprep.subr.bf16.mxu0 0
      %1794 = vmatpush1.bf16.xpose.msra.mxu0 0
      %1795 = vmatprep.subr.bf16.mxu0 0
      %1796 = vmatpush1.bf16.xpose.msra.mxu0 0
      %1797 = vmatprep.subr.bf16.mxu0 0
      %1798 = vmatpush1.bf16.xpose.msra.mxu0 0
      %1799 = vmatprep.subr.bf16.mxu0 0
      %1800 = vmatpush1.bf16.xpose.msra.mxu0 0
      %1801 = vmatprep.subr.bf16.mxu0 0
      %1802 = vmatpush1.bf16.xpose.msra.mxu0 0
      %1803 = vmatprep.subr.bf16.mxu0 0
      %1804 = vmatpush1.bf16.xpose.msra.mxu0 0
      %1805 = vmatprep.subr.bf16.mxu0 0
      %1806 = vmatpush1.bf16.xpose.msra.mxu0 0
      %1807 = vmatprep.subr.bf16.mxu0 0
      %1808 = vmatpush1.bf16.xpose.msra.mxu0 0
      %1809 = vmatprep.subr.bf16.mxu0 0
      %1810 = vmatpush1.bf16.xpose.msra.mxu0 0
      %1811 = vmatprep.subr.bf16.mxu0 0
      %1812 = vmatpush1.bf16.xpose.msra.mxu0 0
      %1813 = vmatprep.subr.bf16.mxu0 0
      %1814 = vmatpush1.bf16.xpose.msra.mxu0 0
      %1815 = vmatprep.mubr.bf16.mxu0 0
      %1816 = vmatmul.mubr.bf16.gmra.mrb[0].mxu0 %v1778
      %v1817 = vpop.f32.mrb[0].mxu0
      %v1818 = vadd.f32 0.0, %v1817
      %v1819 = vpop.f32.mrb[0].mxu0
      %v1820 = vpop.f32.mrb[0].mxu0
      %v1821 = vpop.f32.mrb[0].mxu0
      %1822 = vdwg.mxu0
      %v1823 = vsel %vm1711, %v1818, -inf
      %1824 = vmax.xlane.f32.xlu0 %v1823
      %v1825 = vpop.xlane.xlu0 %1824
      %v1826 = vsub.f32 %v1818, %v1825
      %v1827 = vmul.f32 %v1826, 1.442695
      %v1828 = vpow.pop %v1827
      %v1829 = vsel %vm1711, %v1828, 0.0
      %1830 = vadd.xlane.f32.xlu0 %v1829
      %v1831 = vpop.xlane.xlu0 %1830
      %v1832 = vrcp.pop %v1831
      %v1833 = vmul.f32 %v1828, %v1832
      %v1834 = vpack.c.bf16 %v1833, %v1833
      %1835 = vrot.lane.b32.xlu0 %v1664, 88
      %v1836 = vpop.permute.xlu0 %1835
      %v1839 = vsel %vm1711, %v1834, 0
      %1841 = vmatprep.subr.bf16.mxu0 0
      %1842 = vmatpush1.bf16.msra.mxu0 %v1836
      %1843 = vmatprep.subr.bf16.mxu0 0
      %1844 = vmatpush1.bf16.msra.mxu0 0
      %1845 = vmatprep.subr.bf16.mxu0 0
      %1846 = vmatpush1.bf16.msra.mxu0 0
      %1847 = vmatprep.subr.bf16.mxu0 0
      %1848 = vmatpush1.bf16.msra.mxu0 0
      %1849 = vmatprep.subr.bf16.mxu0 0
      %1850 = vmatpush1.bf16.msra.mxu0 0
      %1851 = vmatprep.subr.bf16.mxu0 0
      %1852 = vmatpush1.bf16.msra.mxu0 0
      %1853 = vmatprep.subr.bf16.mxu0 0
      %1854 = vmatpush1.bf16.msra.mxu0 0
      %1855 = vmatprep.subr.bf16.mxu0 0
      %1856 = vmatpush1.bf16.msra.mxu0 0
      %1857 = vmatprep.subr.bf16.mxu0 0
      %1858 = vmatpush1.bf16.msra.mxu0 0
      %1859 = vmatprep.subr.bf16.mxu0 0
      %1860 = vmatpush1.bf16.msra.mxu0 0
      %1861 = vmatprep.subr.bf16.mxu0 0
      %1862 = vmatpush1.bf16.msra.mxu0 0
      %1863 = vmatprep.subr.bf16.mxu0 0
      %1864 = vmatpush1.bf16.msra.mxu0 0
      %1865 = vmatprep.subr.bf16.mxu0 0
      %1866 = vmatpush1.bf16.msra.mxu0 0
      %1867 = vmatprep.subr.bf16.mxu0 0
      %1868 = vmatpush1.bf16.msra.mxu0 0
      %1869 = vmatprep.subr.bf16.mxu0 0
      %1870 = vmatpush1.bf16.msra.mxu0 0
      %1871 = vmatprep.subr.bf16.mxu0 0
      %1872 = vmatpush1.bf16.msra.mxu0 0
      %1873 = vmatprep.mubr.bf16.mxu0 0
      %1874 = vmatmul.mubr.bf16.gmra.mrb[0].mxu0 %v1839
      %v1875 = vpop.f32.mrb[0].mxu0
      %v1876 = vadd.f32 0.0, %v1875
      %v1877 = vpop.f32.mrb[0].mxu0
      %v1878 = vpop.f32.mrb[0].mxu0
      %v1879 = vpop.f32.mrb[0].mxu0
      %1880 = vdwg.mxu0
      %1882 = vrot.lane.b32.xlu0 %v1876, 8
      %v1883 = vpop.permute.xlu0 %1882
      %1885 = vst.msk [vmem:[#allocation2] sm:$0xff] %vm1195, %v1883
      %1886 = vrot.lane.b32.xlu0 %v1663, 112
      %v1887 = vpop.permute.xlu0 %1886
      %1888 = vrot.lane.b32.xlu0 %v1664, 112
      %v1889 = vpop.permute.xlu0 %1888
      %v1891 = vsel %vm973, %v1887, 0
      %v1894 = vsel %vm973, %v1889, 0
      %1896 = vmatprep.subr.bf16.mxu0 0
      %1897 = vmatpush1.bf16.xpose.msra.mxu0 %v1894
      %1898 = vmatprep.subr.bf16.mxu0 0
      %1899 = vmatpush1.bf16.xpose.msra.mxu0 0
      %1900 = vmatprep.subr.bf16.mxu0 0
      %1901 = vmatpush1.bf16.xpose.msra.mxu0 0
      %1902 = vmatprep.subr.bf16.mxu0 0
      %1903 = vmatpush1.bf16.xpose.msra.mxu0 0
      %1904 = vmatprep.subr.bf16.mxu0 0
      %1905 = vmatpush1.bf16.xpose.msra.mxu0 0
      %1906 = vmatprep.subr.bf16.mxu0 0
      %1907 = vmatpush1.bf16.xpose.msra.mxu0 0
      %1908 = vmatprep.subr.bf16.mxu0 0
      %1909 = vmatpush1.bf16.xpose.msra.mxu0 0
      %1910 = vmatprep.subr.bf16.mxu0 0
      %1911 = vmatpush1.bf16.xpose.msra.mxu0 0
      %1912 = vmatprep.subr.bf16.mxu0 0
      %1913 = vmatpush1.bf16.xpose.msra.mxu0 0
      %1914 = vmatprep.subr.bf16.mxu0 0
      %1915 = vmatpush1.bf16.xpose.msra.mxu0 0
      %1916 = vmatprep.subr.bf16.mxu0 0
      %1917 = vmatpush1.bf16.xpose.msra.mxu0 0
      %1918 = vmatprep.subr.bf16.mxu0 0
      %1919 = vmatpush1.bf16.xpose.msra.mxu0 0
      %1920 = vmatprep.subr.bf16.mxu0 0
      %1921 = vmatpush1.bf16.xpose.msra.mxu0 0
      %1922 = vmatprep.subr.bf16.mxu0 0
      %1923 = vmatpush1.bf16.xpose.msra.mxu0 0
      %1924 = vmatprep.subr.bf16.mxu0 0
      %1925 = vmatpush1.bf16.xpose.msra.mxu0 0
      %1926 = vmatprep.subr.bf16.mxu0 0
      %1927 = vmatpush1.bf16.xpose.msra.mxu0 0
      %1928 = vmatprep.mubr.bf16.mxu0 0
      %1929 = vmatmul.mubr.bf16.gmra.mrb[0].mxu0 %v1891
      %v1930 = vpop.f32.mrb[0].mxu0
      %v1931 = vadd.f32 0.0, %v1930
      %v1932 = vpop.f32.mrb[0].mxu0
      %v1933 = vpop.f32.mrb[0].mxu0
      %v1934 = vpop.f32.mrb[0].mxu0
      %1935 = vdwg.mxu0
      %v1936 = vsel %vm1711, %v1931, -inf
      %1937 = vmax.xlane.f32.xlu0 %v1936
      %v1938 = vpop.xlane.xlu0 %1937
      %v1939 = vsub.f32 %v1931, %v1938
      %v1940 = vmul.f32 %v1939, 1.442695
      %v1941 = vpow.pop %v1940
      %v1942 = vsel %vm1711, %v1941, 0.0
      %1943 = vadd.xlane.f32.xlu0 %v1942
      %v1944 = vpop.xlane.xlu0 %1943
      %v1945 = vrcp.pop %v1944
      %v1946 = vmul.f32 %v1941, %v1945
      %v1947 = vpack.c.bf16 %v1946, %v1946
      %1948 = vrot.lane.b32.xlu0 %v1664, 80
      %v1949 = vpop.permute.xlu0 %1948
      %v1952 = vsel %vm1711, %v1947, 0
      %1954 = vmatprep.subr.bf16.mxu0 0
      %1955 = vmatpush1.bf16.msra.mxu0 %v1949
      %1956 = vmatprep.subr.bf16.mxu0 0
      %1957 = vmatpush1.bf16.msra.mxu0 0
      %1958 = vmatprep.subr.bf16.mxu0 0
      %1959 = vmatpush1.bf16.msra.mxu0 0
      %1960 = vmatprep.subr.bf16.mxu0 0
      %1961 = vmatpush1.bf16.msra.mxu0 0
      %1962 = vmatprep.subr.bf16.mxu0 0
      %1963 = vmatpush1.bf16.msra.mxu0 0
      %1964 = vmatprep.subr.bf16.mxu0 0
      %1965 = vmatpush1.bf16.msra.mxu0 0
      %1966 = vmatprep.subr.bf16.mxu0 0
      %1967 = vmatpush1.bf16.msra.mxu0 0
      %1968 = vmatprep.subr.bf16.mxu0 0
      %1969 = vmatpush1.bf16.msra.mxu0 0
      %1970 = vmatprep.subr.bf16.mxu0 0
      %1971 = vmatpush1.bf16.msra.mxu0 0
      %1972 = vmatprep.subr.bf16.mxu0 0
      %1973 = vmatpush1.bf16.msra.mxu0 0
      %1974 = vmatprep.subr.bf16.mxu0 0
      %1975 = vmatpush1.bf16.msra.mxu0 0
      %1976 = vmatprep.subr.bf16.mxu0 0
      %1977 = vmatpush1.bf16.msra.mxu0 0
      %1978 = vmatprep.subr.bf16.mxu0 0
      %1979 = vmatpush1.bf16.msra.mxu0 0
      %1980 = vmatprep.subr.bf16.mxu0 0
      %1981 = vmatpush1.bf16.msra.mxu0 0
      %1982 = vmatprep.subr.bf16.mxu0 0
      %1983 = vmatpush1.bf16.msra.mxu0 0
      %1984 = vmatprep.subr.bf16.mxu0 0
      %1985 = vmatpush1.bf16.msra.mxu0 0
      %1986 = vmatprep.mubr.bf16.mxu0 0
      %1987 = vmatmul.mubr.bf16.gmra.mrb[0].mxu0 %v1952
      %v1988 = vpop.f32.mrb[0].mxu0
      %v1989 = vadd.f32 0.0, %v1988
      %v1990 = vpop.f32.mrb[0].mxu0
      %v1991 = vpop.f32.mrb[0].mxu0
      %v1992 = vpop.f32.mrb[0].mxu0
      %1993 = vdwg.mxu0
      %1995 = vrot.lane.b32.xlu0 %v1989, 16
      %v1996 = vpop.permute.xlu0 %1995
      %1998 = vst.msk [vmem:[#allocation2] sm:$0xff] %vm1311, %v1996
      %1999 = vrot.lane.b32.xlu0 %v1663, 104
      %v2000 = vpop.permute.xlu0 %1999
      %2001 = vrot.lane.b32.xlu0 %v1664, 104
      %v2002 = vpop.permute.xlu0 %2001
      %v2004 = vsel %vm973, %v2000, 0
      %v2007 = vsel %vm973, %v2002, 0
      %2009 = vmatprep.subr.bf16.mxu0 0
      %2010 = vmatpush1.bf16.xpose.msra.mxu0 %v2007
      %2011 = vmatprep.subr.bf16.mxu0 0
      %2012 = vmatpush1.bf16.xpose.msra.mxu0 0
      %2013 = vmatprep.subr.bf16.mxu0 0
      %2014 = vmatpush1.bf16.xpose.msra.mxu0 0
      %2015 = vmatprep.subr.bf16.mxu0 0
      %2016 = vmatpush1.bf16.xpose.msra.mxu0 0
      %2017 = vmatprep.subr.bf16.mxu0 0
      %2018 = vmatpush1.bf16.xpose.msra.mxu0 0
      %2019 = vmatprep.subr.bf16.mxu0 0
      %2020 = vmatpush1.bf16.xpose.msra.mxu0 0
      %2021 = vmatprep.subr.bf16.mxu0 0
      %2022 = vmatpush1.bf16.xpose.msra.mxu0 0
      %2023 = vmatprep.subr.bf16.mxu0 0
      %2024 = vmatpush1.bf16.xpose.msra.mxu0 0
      %2025 = vmatprep.subr.bf16.mxu0 0
      %2026 = vmatpush1.bf16.xpose.msra.mxu0 0
      %2027 = vmatprep.subr.bf16.mxu0 0
      %2028 = vmatpush1.bf16.xpose.msra.mxu0 0
      %2029 = vmatprep.subr.bf16.mxu0 0
      %2030 = vmatpush1.bf16.xpose.msra.mxu0 0
      %2031 = vmatprep.subr.bf16.mxu0 0
      %2032 = vmatpush1.bf16.xpose.msra.mxu0 0
      %2033 = vmatprep.subr.bf16.mxu0 0
      %2034 = vmatpush1.bf16.xpose.msra.mxu0 0
      %2035 = vmatprep.subr.bf16.mxu0 0
      %2036 = vmatpush1.bf16.xpose.msra.mxu0 0
      %2037 = vmatprep.subr.bf16.mxu0 0
      %2038 = vmatpush1.bf16.xpose.msra.mxu0 0
      %2039 = vmatprep.subr.bf16.mxu0 0
      %2040 = vmatpush1.bf16.xpose.msra.mxu0 0
      %2041 = vmatprep.mubr.bf16.mxu0 0
      %2042 = vmatmul.mubr.bf16.gmra.mrb[0].mxu0 %v2004
      %v2043 = vpop.f32.mrb[0].mxu0
      %v2044 = vadd.f32 0.0, %v2043
      %v2045 = vpop.f32.mrb[0].mxu0
      %v2046 = vpop.f32.mrb[0].mxu0
      %v2047 = vpop.f32.mrb[0].mxu0
      %2048 = vdwg.mxu0
      %v2049 = vsel %vm1711, %v2044, -inf
      %2050 = vmax.xlane.f32.xlu0 %v2049
      %v2051 = vpop.xlane.xlu0 %2050
      %v2052 = vsub.f32 %v2044, %v2051
      %v2053 = vmul.f32 %v2052, 1.442695
      %v2054 = vpow.pop %v2053
      %v2055 = vsel %vm1711, %v2054, 0.0
      %2056 = vadd.xlane.f32.xlu0 %v2055
      %v2057 = vpop.xlane.xlu0 %2056
      %v2058 = vrcp.pop %v2057
      %v2059 = vmul.f32 %v2054, %v2058
      %v2060 = vpack.c.bf16 %v2059, %v2059
      %2061 = vrot.lane.b32.xlu0 %v1664, 72
      %v2062 = vpop.permute.xlu0 %2061
      %v2065 = vsel %vm1711, %v2060, 0
      %2067 = vmatprep.subr.bf16.mxu0 0
      %2068 = vmatpush1.bf16.msra.mxu0 %v2062
      %2069 = vmatprep.subr.bf16.mxu0 0
      %2070 = vmatpush1.bf16.msra.mxu0 0
      %2071 = vmatprep.subr.bf16.mxu0 0
      %2072 = vmatpush1.bf16.msra.mxu0 0
      %2073 = vmatprep.subr.bf16.mxu0 0
      %2074 = vmatpush1.bf16.msra.mxu0 0
      %2075 = vmatprep.subr.bf16.mxu0 0
      %2076 = vmatpush1.bf16.msra.mxu0 0
      %2077 = vmatprep.subr.bf16.mxu0 0
      %2078 = vmatpush1.bf16.msra.mxu0 0
      %2079 = vmatprep.subr.bf16.mxu0 0
      %2080 = vmatpush1.bf16.msra.mxu0 0
      %2081 = vmatprep.subr.bf16.mxu0 0
      %2082 = vmatpush1.bf16.msra.mxu0 0
      %2083 = vmatprep.subr.bf16.mxu0 0
      %2084 = vmatpush1.bf16.msra.mxu0 0
      %2085 = vmatprep.subr.bf16.mxu0 0
      %2086 = vmatpush1.bf16.msra.mxu0 0
      %2087 = vmatprep.subr.bf16.mxu0 0
      %2088 = vmatpush1.bf16.msra.mxu0 0
      %2089 = vmatprep.subr.bf16.mxu0 0
      %2090 = vmatpush1.bf16.msra.mxu0 0
      %2091 = vmatprep.subr.bf16.mxu0 0
      %2092 = vmatpush1.bf16.msra.mxu0 0
      %2093 = vmatprep.subr.bf16.mxu0 0
      %2094 = vmatpush1.bf16.msra.mxu0 0
      %2095 = vmatprep.subr.bf16.mxu0 0
      %2096 = vmatpush1.bf16.msra.mxu0 0
      %2097 = vmatprep.subr.bf16.mxu0 0
      %2098 = vmatpush1.bf16.msra.mxu0 0
      %2099 = vmatprep.mubr.bf16.mxu0 0
      %2100 = vmatmul.mubr.bf16.gmra.mrb[0].mxu0 %v2065
      %v2101 = vpop.f32.mrb[0].mxu0
      %v2102 = vadd.f32 0.0, %v2101
      %v2103 = vpop.f32.mrb[0].mxu0
      %v2104 = vpop.f32.mrb[0].mxu0
      %v2105 = vpop.f32.mrb[0].mxu0
      %2106 = vdwg.mxu0
      %2108 = vrot.lane.b32.xlu0 %v2102, 24
      %v2109 = vpop.permute.xlu0 %2108
      %2111 = vst.msk [vmem:[#allocation2] sm:$0xff] %vm1427, %v2109
      %v2112 = vld [vmem:[#allocation2] sm:$0xff]
      %v2113 = vpack.c.bf16 %v2112, %v2112
      %v2114 = vld [vmem:[%s13] sm:$0xf]
      %v2115 = vld [vmem:[%s13 + $0x4] sm:$0xf]
      %v2116 = vld [vmem:[%s13 + $0x8] sm:$0xf]
      %v2117 = vld [vmem:[%s13 + $0xc] sm:$0xf]
      %v2118 = vld [vmem:[%s14] sm:$0x1]
      %v2120 = vlaneseq
      %v2121 = vshrl.u32 %v2120, 7
      %v2122 = vsub.s32 0, %v2121
      %v2123 = vrot.slane %v2118, %v2122
      %v2129 = vunpack.c.l.b16 %v2114
      %v2130 = vunpack.c.l.b16 %v2115
      %v2131 = vunpack.c.l.b16 %v2116
      %v2132 = vunpack.c.l.b16 %v2117
      %v2133 = vpack.c.b16 %v2130, %v2129
      %v2134 = vpack.c.b16 %v2132, %v2131
      %v2138 = vsel %vm827, %v2113, 0
      %2140 = vmatprep.subr.bf16.mxu0 0
      %2141 = vmatpush1.bf16.msra.mxu0 %v2133
      %2142 = vmatprep.subr.bf16.mxu0 0
      %2143 = vmatpush1.bf16.msra.mxu0 %v2134
      %2144 = vmatprep.subr.bf16.mxu0 0
      %2145 = vmatpush1.bf16.msra.mxu0 0
      %2146 = vmatprep.subr.bf16.mxu0 0
      %2147 = vmatpush1.bf16.msra.mxu0 0
      %2148 = vmatprep.subr.bf16.mxu0 0
      %2149 = vmatpush1.bf16.msra.mxu0 0
      %2150 = vmatprep.subr.bf16.mxu0 0
      %2151 = vmatpush1.bf16.msra.mxu0 0
      %2152 = vmatprep.subr.bf16.mxu0 0
      %2153 = vmatpush1.bf16.msra.mxu0 0
      %2154 = vmatprep.subr.bf16.mxu0 0
      %2155 = vmatpush1.bf16.msra.mxu0 0
      %2156 = vmatprep.subr.bf16.mxu0 0
      %2157 = vmatpush1.bf16.msra.mxu0 0
      %2158 = vmatprep.subr.bf16.mxu0 0
      %2159 = vmatpush1.bf16.msra.mxu0 0
      %2160 = vmatprep.subr.bf16.mxu0 0
      %2161 = vmatpush1.bf16.msra.mxu0 0
      %2162 = vmatprep.subr.bf16.mxu0 0
      %2163 = vmatpush1.bf16.msra.mxu0 0
      %2164 = vmatprep.subr.bf16.mxu0 0
      %2165 = vmatpush1.bf16.msra.mxu0 0
      %2166 = vmatprep.subr.bf16.mxu0 0
      %2167 = vmatpush1.bf16.msra.mxu0 0
      %2168 = vmatprep.subr.bf16.mxu0 0
      %2169 = vmatpush1.bf16.msra.mxu0 0
      %2170 = vmatprep.subr.bf16.mxu0 0
      %2171 = vmatpush1.bf16.msra.mxu0 0
      %2172 = vmatprep.mubr.bf16.mxu0 0
      %2173 = vmatmul.mubr.bf16.gmra.mrb[0].mxu0 %v2138
      %v2174 = vpop.f32.mrb[0].mxu0
      %v2175 = vadd.f32 %v2123, %v2174
      %v2176 = vpop.f32.mrb[0].mxu0
      %v2177 = vpop.f32.mrb[0].mxu0
      %v2178 = vpop.f32.mrb[0].mxu0
      %2179 = vdwg.mxu0
      %v2180 = vadd.f32 %v1497, %v2175
      %v2181 = vld [vmem:[%s23] sm:$0x1]
      %v2182 = vld [vmem:[%s24] sm:$0x1]
      %v2183 = vsel %vm827, %v2180, 0.0
      %2184 = vadd.xlane.f32.xlu0 %v2183
      %v2185 = vpop.xlane.xlu0 %2184
      %v2186 = vmul.f32 %v2185, %v876
      %v2187 = vsub.f32 %v2180, %v2186
      %v2188 = vmul.f32 %v2187, %v2187
      %v2189 = vsel %vm827, %v2188, 0.0
      %2190 = vadd.xlane.f32.xlu0 %v2189
      %v2191 = vpop.xlane.xlu0 %2190
      %v2192 = vmul.f32 %v2191, %v876
      %v2193 = vadd.f32 %v2192, 1e-05
      %v2194 = vrsqrt.pop %v2193
      %v2195 = vmul.f32 %v2187, %v2194
      %v2197 = vlaneseq
      %v2198 = vshrl.u32 %v2197, 7
      %v2199 = vsub.s32 0, %v2198
      %v2200 = vrot.slane %v2181, %v2199
      %v2202 = vmul.f32 %v2195, %v2200
      %v2204 = vlaneseq
      %v2205 = vshrl.u32 %v2204, 7
      %v2206 = vsub.s32 0, %v2205
      %v2207 = vrot.slane %v2182, %v2206
      %v2209 = vadd.f32 %v2202, %v2207
      %v2210 = vpack.c.bf16 %v2209, %v2209
      %v2211 = vld [vmem:[%s15] sm:$0xf]
      %v2212 = vld [vmem:[%s15 + $0x4] sm:$0xf]
      %v2213 = vld [vmem:[%s15 + $0x8] sm:$0xf]
      %v2214 = vld [vmem:[%s15 + $0xc] sm:$0xf]
      %v2215 = vld [vmem:[%s16] sm:$0x1]
      %v2217 = vlaneseq
      %v2218 = vshrl.u32 %v2217, 7
      %v2219 = vsub.s32 0, %v2218
      %v2220 = vrot.slane %v2215, %v2219
      %v2226 = vunpack.c.l.b16 %v2211
      %v2227 = vunpack.c.l.b16 %v2212
      %v2228 = vunpack.c.l.b16 %v2213
      %v2229 = vunpack.c.l.b16 %v2214
      %v2230 = vpack.c.b16 %v2227, %v2226
      %v2231 = vpack.c.b16 %v2229, %v2228
      %v2235 = vsel %vm827, %v2210, 0
      %2237 = vmatprep.subr.bf16.mxu0 0
      %2238 = vmatpush1.bf16.msra.mxu0 %v2230
      %2239 = vmatprep.subr.bf16.mxu0 0
      %2240 = vmatpush1.bf16.msra.mxu0 %v2231
      %2241 = vmatprep.subr.bf16.mxu0 0
      %2242 = vmatpush1.bf16.msra.mxu0 0
      %2243 = vmatprep.subr.bf16.mxu0 0
      %2244 = vmatpush1.bf16.msra.mxu0 0
      %2245 = vmatprep.subr.bf16.mxu0 0
      %2246 = vmatpush1.bf16.msra.mxu0 0
      %2247 = vmatprep.subr.bf16.mxu0 0
      %2248 = vmatpush1.bf16.msra.mxu0 0
      %2249 = vmatprep.subr.bf16.mxu0 0
      %2250 = vmatpush1.bf16.msra.mxu0 0
      %2251 = vmatprep.subr.bf16.mxu0 0
      %2252 = vmatpush1.bf16.msra.mxu0 0
      %2253 = vmatprep.subr.bf16.mxu0 0
      %2254 = vmatpush1.bf16.msra.mxu0 0
      %2255 = vmatprep.subr.bf16.mxu0 0
      %2256 = vmatpush1.bf16.msra.mxu0 0
      %2257 = vmatprep.subr.bf16.mxu0 0
      %2258 = vmatpush1.bf16.msra.mxu0 0
      %2259 = vmatprep.subr.bf16.mxu0 0
      %2260 = vmatpush1.bf16.msra.mxu0 0
      %2261 = vmatprep.subr.bf16.mxu0 0
      %2262 = vmatpush1.bf16.msra.mxu0 0
      %2263 = vmatprep.subr.bf16.mxu0 0
      %2264 = vmatpush1.bf16.msra.mxu0 0
      %2265 = vmatprep.subr.bf16.mxu0 0
      %2266 = vmatpush1.bf16.msra.mxu0 0
      %2267 = vmatprep.subr.bf16.mxu0 0
      %2268 = vmatpush1.bf16.msra.mxu0 0
      %2269 = vmatprep.mubr.bf16.mxu0 0
      %2270 = vmatmul.mubr.bf16.gmra.mrb[0].mxu0 %v2235
      %v2271 = vpop.f32.mrb[0].mxu0
      %v2272 = vadd.f32 %v2220, %v2271
      %v2273 = vpop.f32.mrb[0].mxu0
      %v2274 = vpop.f32.mrb[0].mxu0
      %v2275 = vpop.f32.mrb[0].mxu0
      %2276 = vdwg.mxu0
      %v2277 = vmax.f32 %v2272, 0.0
      %v2278 = vpack.c.bf16 %v2277, %v2277
      %v2279 = vld [vmem:[%s17] sm:$0xf]
      %v2280 = vld [vmem:[%s17 + $0x4] sm:$0xf]
      %v2281 = vld [vmem:[%s17 + $0x8] sm:$0xf]
      %v2282 = vld [vmem:[%s17 + $0xc] sm:$0xf]
      %v2283 = vld [vmem:[%s17 + $0x10] sm:$0xf]
      %v2284 = vld [vmem:[%s17 + $0x14] sm:$0xf]
      %v2285 = vld [vmem:[%s17 + $0x18] sm:$0xf]
      %v2286 = vld [vmem:[%s17 + $0x1c] sm:$0xf]
      %v2287 = vld [vmem:[%s18] sm:$0x1]
      %v2289 = vlaneseq
      %v2290 = vshrl.u32 %v2289, 7
      %v2291 = vsub.s32 0, %v2290
      %v2292 = vrot.slane %v2287, %v2291
      %v2302 = vunpack.c.l.b16 %v2279
      %v2303 = vunpack.c.l.b16 %v2280
      %v2304 = vunpack.c.l.b16 %v2281
      %v2305 = vunpack.c.l.b16 %v2282
      %v2306 = vunpack.c.l.b16 %v2283
      %v2307 = vunpack.c.l.b16 %v2284
      %v2308 = vunpack.c.l.b16 %v2285
      %v2309 = vunpack.c.l.b16 %v2286
      %v2310 = vpack.c.b16 %v2303, %v2302
      %v2311 = vpack.c.b16 %v2305, %v2304
      %v2312 = vpack.c.b16 %v2307, %v2306
      %v2313 = vpack.c.b16 %v2309, %v2308
      %vm2318 = vcmask 523264
      %v2320 = vsel %vm2318, %v2278, 0
      %2322 = vmatprep.subr.bf16.mxu0 0
      %2323 = vmatpush1.bf16.msra.mxu0 %v2310
      %2324 = vmatprep.subr.bf16.mxu0 0
      %2325 = vmatpush1.bf16.msra.mxu0 %v2311
      %2326 = vmatprep.subr.bf16.mxu0 0
      %2327 = vmatpush1.bf16.msra.mxu0 %v2312
      %2328 = vmatprep.subr.bf16.mxu0 0
      %2329 = vmatpush1.bf16.msra.mxu0 %v2313
      %2330 = vmatprep.subr.bf16.mxu0 0
      %2331 = vmatpush1.bf16.msra.mxu0 0
      %2332 = vmatprep.subr.bf16.mxu0 0
      %2333 = vmatpush1.bf16.msra.mxu0 0
      %2334 = vmatprep.subr.bf16.mxu0 0
      %2335 = vmatpush1.bf16.msra.mxu0 0
      %2336 = vmatprep.subr.bf16.mxu0 0
      %2337 = vmatpush1.bf16.msra.mxu0 0
      %2338 = vmatprep.subr.bf16.mxu0 0
      %2339 = vmatpush1.bf16.msra.mxu0 0
      %2340 = vmatprep.subr.bf16.mxu0 0
      %2341 = vmatpush1.bf16.msra.mxu0 0
      %2342 = vmatprep.subr.bf16.mxu0 0
      %2343 = vmatpush1.bf16.msra.mxu0 0
      %2344 = vmatprep.subr.bf16.mxu0 0
      %2345 = vmatpush1.bf16.msra.mxu0 0
      %2346 = vmatprep.subr.bf16.mxu0 0
      %2347 = vmatpush1.bf16.msra.mxu0 0
      %2348 = vmatprep.subr.bf16.mxu0 0
      %2349 = vmatpush1.bf16.msra.mxu0 0
      %2350 = vmatprep.subr.bf16.mxu0 0
      %2351 = vmatpush1.bf16.msra.mxu0 0
      %2352 = vmatprep.subr.bf16.mxu0 0
      %2353 = vmatpush1.bf16.msra.mxu0 0
      %2354 = vmatprep.mubr.bf16.mxu0 0
      %2355 = vmatmul.mubr.bf16.gmra.mrb[0].mxu0 %v2320
      %v2356 = vpop.f32.mrb[0].mxu0
      %v2357 = vadd.f32 %v2292, %v2356
      %v2358 = vpop.f32.mrb[0].mxu0
      %v2359 = vpop.f32.mrb[0].mxu0
      %v2360 = vpop.f32.mrb[0].mxu0
      %2361 = vdwg.mxu0
      %v2362 = vadd.f32 %v2180, %v2357
      %2363 = vst.msk [vmem:[%s796] sm:$0xff] %vm827, %v2362
      %p2364 = scmp.lt.s32.totalorder %s36, 1
      %s2365 = scalar_select %p2364, %s36, 1
      %s2366 = smul.addr %s2365, 8
      %s2367 = scalar_lea.vmem %s25, %s2366
      // Predicated region
      $region121: #{decoder_layer_forward.1} parent=119 // pred_check
        %p2368 = pneg %p594
      $region122: #{decoder_layer_forward.1} parent=119 // pred_check_branch
        %2370 = sbr.rel (%p2368) target = $region124
      $region123: #{decoder_layer_forward.1} parent=119 // pred_region
        _
      $region124: #{decoder_layer_forward.1} parent=119 // pred_fallthru
        _
    $region120: #{decoder_layer_forward.1} parent=5 // pred_fallthru
      _
    %p2371 = scmp.le.s32.totalorder 2, %s31
    // Predicated region
    $region125: #{decoder_layer_forward.1} parent=5 // pred_check
      %p2372 = pneg %p2371
    $region126: #{decoder_layer_forward.1} parent=5 // pred_check_branch
      %2374 = sbr.rel (%p2372) target = $region128
    $region127: #{decoder_layer_forward.1} parent=5 // pred_region
      %s2375 = ssub.s32 %s31, 2
      // Predicated region
      $region129: #{decoder_layer_forward.1} parent=127 // pred_check
        %p2376 = pneg %p600
      $region130: #{decoder_layer_forward.1} parent=127 // pred_check_branch
        %2378 = sbr.rel (%p2376) target = $region132
      $region131: #{decoder_layer_forward.1} parent=127 // pred_region
        %p2379 = scmp.lt.s32.totalorder %s37, 1
        %s2380 = scalar_select %p2379, %s37, 1
        %s2381 = smul.addr %s2380, 8
        %s2382 = scalar_lea.vmem %s25, %s2381
      $region132: #{decoder_layer_forward.1} parent=127 // pred_fallthru
        _
    $region128: #{decoder_layer_forward.1} parent=5 // pred_fallthru
      _
  $region6: #{decoder_layer_forward.1} parent=0 // loop_footer
    %s35 = sadd.s32 1, %s31
  $region7: #{decoder_layer_forward.1} parent=0 // loop_footer_branch
    %30 = sbr.rel target = $region3
  $region8: #{decoder_layer_forward.1} parent=0 // loop_exit
    _

</llo_original>
